<compile_context>
chip_gen: v5e
topology: v5e:2x2
jax: 0.10.0
libtpu: 0.0.40
codegen_flags: <defaults>
</compile_context>

<pallas_src>
import math

import jax
import jax.numpy as jnp
from jax import lax
from jax.experimental import pallas as pl
from jax.experimental.pallas import tpu as pltpu

# ---------------- config (stands in for `cfg` of CATSSHead) ----------------
NUM_CLASSES    = 4       # cfg.MODEL.ATSS.NUM_CLASSES
NUM_ANCHORS    = 1       # len(cfg.MODEL.ANCHOR_GENERATOR.ASPECT_RATIOS)
NUM_CONVS      = 2       # cfg.MODEL.ATSS.NUM_CONVS
CHANNELS       = 64      # cfg.MODEL.ATSS.CHANNELS
IN_CHANNELS    = 64      # FPN channels (all levels equal, as asserted in torch)
PRIOR_PROB     = 0.01    # cfg.MODEL.ATSS.PRIOR_PROB
USE_GN         = False   # cfg.MODEL.ATSS.USE_GN
CONCEPT_FUSION = "mul"   # cfg.CONCEPT.CONCEPT_FUSION -> channels == CHANNELS
# TODO(synk): GroupNorm path (USE_GN=True) and NUM_CONVS==0 (identity towers)
#             are not implemented; the chosen config matches the torch module.

KC = NUM_ANCHORS * NUM_CLASSES   # cls logits channels   (4)
KB = NUM_ANCHORS * 4             # bbox channels         (4)
KT = NUM_ANCHORS * 1             # centerness channels   (1)
KH = KC + KB + KT                # concatenated head out (9)

_CS = 8   # interior column offset in the halo scratch (f32 sublane-aligned)


# ------------------------------ fused kernel --------------------------------
def _fused_level_kernel(f_ref, wconv_ref, bconv_ref, whead_ref, bhead_ref,
                        out_ref, xp_ref):
    """One batch item of one pyramid level, fully fused.

    f_ref     : (H, W, Cin) f32           input feature (NHWC block)
    wconv_ref : (L*9*C2, C2) bf16         per-layer, per-tap stacked conv weights
                                          (layer 0: only rows [:cin] of each tap
                                           block are real; rest unused)
    bconv_ref : (L, 1, C2) f32            conv biases, [cls | box] concatenated
    whead_ref : (KH, C2) bf16             transposed fused 1x1 head weights
                                          (bbox rows pre-scaled by Scale[l])
    bhead_ref : (KH, 1) f32               fused head biases (scale folded)
    out_ref   : (KH, H*W) f32             concat(logits, bbox*scale, centerness)
    xp_ref    : (H+2, _CS+W+1, C2) f32    VMEM halo scratch; interior columns
                                          start at _CS, halo at _CS-1 / _CS+W.
    """
    H, W, cin = f_ref.shape
    Wp = xp_ref.shape[1]
    C2 = xp_ref.shape[-1]
    HW = H * W
    n_layers = bconv_ref.shape[0]
    cs0 = _CS - 1                         # leftmost column read by the taps

    # Zero ONLY the halo ring the 3x3 taps will read; the interior is always
    # fully (re)written below.  Done every grid step (cheap — ring only) so it
    # is correct regardless of how the "parallel" batch axis is core-split.
    zrow = jnp.zeros((1, Wp, C2), xp_ref.dtype)
    xp_ref[0:1, :, :] = zrow
    xp_ref[H + 1:H + 2, :, :] = zrow
    zcol = jnp.zeros((H + 2, 1, C2), xp_ref.dtype)
    xp_ref[:, cs0:cs0 + 1, :] = zcol
    xp_ref[:, _CS + W:_CS + W + 1, :] = zcol

    # Input feature -> interior channels [:cin].  (Upper channels are only
    # read by layers >= 1, which first overwrite the whole interior.)
    xp_ref[1:H + 1, _CS:_CS + W, :cin] = f_ref[...]

    act = None
    for i in range(n_layers):                       # static unroll (NUM_CONVS)
        kin = cin if i == 0 else C2
        acc = jnp.zeros((HW, C2), jnp.float32)
        for t in range(9):                          # 9 accumulating MXU dots
            dy, dx = t // 3, t % 3
            tap = xp_ref[dy:dy + H, cs0 + dx:cs0 + dx + W, :kin]
            r0 = (i * 9 + t) * C2
            acc = acc + jnp.dot(tap.reshape(HW, kin).astype(jnp.bfloat16),
                                wconv_ref[r0:r0 + kin, :],
                                preferred_element_type=jnp.float32)
        act = jnp.maximum(acc + bconv_ref[i], 0.0)  # (HW, C2) f32, [cls | box]
        if i + 1 < n_layers:                        # halo ring stays zero
            xp_ref[1:H + 1, _CS:_CS + W, :] = act.reshape(H, W, C2)

    # Fused 1x1 heads, produced directly in lane-dense (KH, H*W) layout:
    #   head_t[k, m] = sum_c whead[k, c] * act[m, c]   (= whead @ act.T on MXU)
    head_t = lax.dot_general(
        whead_ref[...], act.astype(jnp.bfloat16),
        dimension_numbers=(((1,), (1,)), ((), ())),
        preferred_element_type=jnp.float32) + bhead_ref[...]
    out_ref[...] = head_t


# ------------------------------ wrapper --------------------------------------
def fused_level(f_nhwc, wconv, bconv, wheadT, bheadT):
    """f_nhwc: (N,H,W,Cin) f32 -> (N, KH, H*W) fused per-level head output."""
    N, H, W, cin = f_nhwc.shape
    C2 = wconv.shape[-1]
    L = bconv.shape[0]
    HW = H * W

    flops = 2 * N * HW * (9 * cin * C2 + (L - 1) * 9 * C2 * C2 + C2 * KH)
    bytes_accessed = (f_nhwc.size * 4 + wconv.size * 2 + bconv.size * 4
                      + wheadT.size * 2 + bheadT.size * 4 + N * KH * HW * 4)

    return pl.pallas_call(
        _fused_level_kernel,
        out_shape=jax.ShapeDtypeStruct((N, KH, HW), jnp.float32),
        grid=(N,),
        in_specs=[
            pl.BlockSpec((None, H, W, cin), lambda n: (n, 0, 0, 0)),
            pl.BlockSpec(wconv.shape, lambda n: (0, 0)),
            pl.BlockSpec(bconv.shape, lambda n: (0, 0, 0)),
            pl.BlockSpec(wheadT.shape, lambda n: (0, 0)),
            pl.BlockSpec(bheadT.shape, lambda n: (0, 0)),
        ],
        out_specs=pl.BlockSpec((None, KH, HW), lambda n: (n, 0, 0)),
        scratch_shapes=[pltpu.VMEM((H + 2, _CS + W + 1, C2), jnp.float32)],
        compiler_params=pltpu.CompilerParams(
            dimension_semantics=("parallel",),      # batch items independent
            vmem_limit_bytes=32 * 1024 * 1024),
        cost_estimate=pl.CostEstimate(flops=flops, transcendentals=0,
                                      bytes_accessed=bytes_accessed),
    )(f_nhwc, wconv, bconv, wheadT, bheadT)


# --------------------------- parameter packing --------------------------------
def _pack_conv_layer(wc, wb, first):
    """wc/wb: (3,3,cin,C) HWIO.  Returns (9*C2, C2) with tap-major rows so each
    conv layer runs as 9 accumulating matmuls computing BOTH towers' output
    [cls | box] at once.  Layer 0 keeps real weights only in rows [:cin] of
    each tap block (the kernel contracts only those, K = 9*cin)."""
    C = wc.shape[-1]
    cin = wc.shape[2]
    C2 = 2 * C
    if first:
        w = jnp.concatenate([wc, wb], axis=3).reshape(9, cin, C2)
        w = jnp.concatenate(
            [w, jnp.zeros((9, C2 - cin, C2), w.dtype)], axis=1)    # unused rows
    else:
        z = jnp.zeros((3, 3, cin, C), wc.dtype)
        w = jnp.concatenate([jnp.concatenate([wc, z], axis=3),     # cls -> cls
                             jnp.concatenate([z, wb], axis=3)],    # box -> box
                            axis=2)
        w = w.reshape(9, C2, C2)
    return w.reshape(9 * C2, C2)


def pack_params(p):
    """Pack torch-equivalent params into fused, kernel-friendly tensors."""
    C = CHANNELS
    C2 = 2 * C
    wconv = jnp.concatenate(
        [_pack_conv_layer(p["cls_tower"][i]["w"], p["bbox_tower"][i]["w"],
                          i == 0) for i in range(NUM_CONVS)],
        axis=0).astype(jnp.bfloat16)                               # (L*9*C2, C2)
    bconv = jnp.stack([jnp.concatenate(
        [p["cls_tower"][i]["b"].reshape(C),
         p["bbox_tower"][i]["b"].reshape(C)]).reshape(1, C2)
        for i in range(NUM_CONVS)])                                # (L, 1, C2)

    heads = []
    for s in p["scales"]:
        sv = s[0, 0]                                               # Scale module
        top = jnp.concatenate([p["w_cls"].T,
                               jnp.zeros((KC, C), jnp.float32)], axis=1)
        bot = jnp.concatenate(
            [jnp.zeros((KB + KT, C), jnp.float32),
             jnp.concatenate([(p["w_bbox"] * sv).T, p["w_ctr"].T], axis=0)],
            axis=1)
        wheadT = jnp.concatenate([top, bot], axis=0).astype(jnp.bfloat16)  # (KH,C2)
        bheadT = jnp.concatenate([p["b_cls"].reshape(KC),
                                  p["b_bbox"].reshape(KB) * sv,
                                  p["b_ctr"].reshape(KT)]).reshape(KH, 1)  # f32
        heads.append((wheadT, bheadT))
    return wconv, bconv, heads


# --------------------------- parameter init ---------------------------------
def init_params(key):
    """Mirror CATSSHead.__init__: conv weights ~ N(0, 0.01), biases 0,
    cls_logits bias = -log((1-p)/p), Scale init 1.0."""
    keys = iter(jax.random.split(key, 2 * NUM_CONVS + 3))

    def nrm(shape):
        return 0.01 * jax.random.normal(next(keys), shape, jnp.float32)

    p = {"cls_tower": [], "bbox_tower": []}
    for i in range(NUM_CONVS):
        cin = IN_CHANNELS if i == 0 else CHANNELS
        p["cls_tower"].append({"w": nrm((3, 3, cin, CHANNELS)),
                               "b": jnp.zeros((1, CHANNELS), jnp.float32)})
        p["bbox_tower"].append({"w": nrm((3, 3, cin, CHANNELS)),
                                "b": jnp.zeros((1, CHANNELS), jnp.float32)})
    bias_value = -math.log((1 - PRIOR_PROB) / PRIOR_PROB)
    p["w_cls"] = nrm((CHANNELS, KC))
    p["b_cls"] = jnp.full((1, KC), bias_value, jnp.float32)
    p["w_bbox"] = nrm((CHANNELS, KB))
    p["b_bbox"] = jnp.zeros((1, KB), jnp.float32)
    p["w_ctr"] = nrm((CHANNELS, KT))
    p["b_ctr"] = jnp.zeros((1, KT), jnp.float32)
    p["scales"] = [jnp.ones((1, 1), jnp.float32) for _ in range(5)]
    return p


# ------------------------------ forward --------------------------------------
def catss_head_forward(params, x_list):
    """x_list: list of NCHW feature maps (like the torch module input)."""
    assert NUM_CONVS >= 1, "NUM_CONVS == 0 (towers = identity) not implemented"
    assert IN_CHANNELS <= 2 * CHANNELS
    wconv, bconv, heads = pack_params(params)
    logits, bbox_reg, centerness, features = [], [], [], []
    for l, feat_nchw in enumerate(x_list):
        features.append(feat_nchw)
        N, _, H, W = feat_nchw.shape
        f = jnp.transpose(feat_nchw, (0, 2, 3, 1))         # single NCHW->NHWC
        wheadT, bheadT = heads[l]
        out = fused_level(f, wconv, bconv, wheadT, bheadT)  # (N, KH, H*W)
        out4 = out.reshape(N, KH, H, W)                     # no output transpose
        logits.append(out4[:, :KC])
        bbox_reg.append(out4[:, KC:KC + KB])
        centerness.append(out4[:, KC + KB:])
    return logits, bbox_reg, centerness, features


# --------------------------- pure-JAX reference ------------------------------
def _ref_conv3x3_relu(x, w, b):
    y = lax.conv_general_dilated(x, w, (1, 1), "SAME",
                                 dimension_numbers=("NHWC", "HWIO", "NHWC"),
                                 precision=lax.Precision.HIGHEST)
    return jnp.maximum(y + b.reshape(1, 1, 1, -1), 0.0)


def _ref_forward(params, x_list):
    def head(t, w, b):
        return jnp.einsum("nhwc,ck->nhwk", t, w,
                          precision=lax.Precision.HIGHEST) + b.reshape(1, 1, 1, -1)

    logits, bbox_reg, centerness, features = [], [], [], []
    for l, feat in enumerate(x_list):
        features.append(feat)
        f = jnp.transpose(feat, (0, 2, 3, 1))
        cls_t, box_t = f, f
        for layer in params["cls_tower"]:
            cls_t = _ref_conv3x3_relu(cls_t, layer["w"], layer["b"])
        for layer in params["bbox_tower"]:
            box_t = _ref_conv3x3_relu(box_t, layer["w"], layer["b"])
        lg = head(cls_t, params["w_cls"], params["b_cls"])
        bb = head(box_t, params["w_bbox"], params["b_bbox"]) * params["scales"][l][0, 0]
        ct = head(box_t, params["w_ctr"], params["b_ctr"])
        logits.append(jnp.transpose(lg, (0, 3, 1, 2)))
        bbox_reg.append(jnp.transpose(bb, (0, 3, 1, 2)))
        centerness.append(jnp.transpose(ct, (0, 3, 1, 2)))
    return logits, bbox_reg, centerness, features


# --------------------------------- main ---------------------------------------
if __name__ == "__main__":
    key = jax.random.PRNGKey(0)
    pkey, xkey1, xkey2 = jax.random.split(key, 3)
    params = init_params(pkey)

    # Two pyramid levels, NCHW like the torch module expects.
    x = [jax.random.normal(xkey1, (2, IN_CHANNELS, 16, 16), jnp.float32),
         jax.random.normal(xkey2, (2, IN_CHANNELS, 8, 8), jnp.float32)]

    logits, bbox_reg, centerness, features = catss_head_forward(params, x)
    jax.block_until_ready((logits, bbox_reg, centerness, features))

    # Sanity check against a pure-JAX f32 reference (tolerance absorbs the
    # bf16 MXU operands used in the kernel).
    r_logits, r_bbox, r_ctr, r_feat = _ref_forward(params, x)
    for a, b in zip(logits + bbox_reg + centerness,
                    r_logits + r_bbox + r_ctr):
        assert a.shape == b.shape, (a.shape, b.shape)
        err = float(jnp.max(jnp.abs(a - b)))
        assert jnp.allclose(a, b, atol=2e-2, rtol=2e-2), err
    for a, b in zip(features, r_feat):
        assert a.shape == b.shape

    print("KERNEL_OK")
</pallas_src>

<mosaic_0001>
module attributes {stable_mosaic.version = 11 : i64} {
  func.func @_fused_level_kernel(%arg0: i32, %arg1: memref<1x16x16x64xf32, #tpu.memory_space<vmem>>, %arg2: memref<2304x128xbf16, #tpu.memory_space<vmem>>, %arg3: memref<2x1x128xf32, #tpu.memory_space<vmem>>, %arg4: memref<9x128xbf16, #tpu.memory_space<vmem>>, %arg5: memref<9x1xf32, #tpu.memory_space<vmem>>, %arg6: memref<1x9x256xf32, #tpu.memory_space<vmem>>, %arg7: memref<18x25x128xf32, #tpu.memory_space<vmem>>) attributes {dimension_semantics = [#tpu.dimension_semantics<parallel>], iteration_bounds = array<i64: 2>, scalar_prefetch = 0 : i64, scratch_operands = 1 : i64, tpu.core_type = #tpu.core_type<tc>, window_params = [{transform_indices = @transform_0, window_bounds = array<i64: 1, 16, 16, 64>}, {pipeline_mode = #tpu.pipeline_mode<synchronous>, transform_indices = @transform_1, window_bounds = array<i64: 2304, 128>}, {pipeline_mode = #tpu.pipeline_mode<synchronous>, transform_indices = @transform_2, window_bounds = array<i64: 2, 1, 128>}, {pipeline_mode = #tpu.pipeline_mode<synchronous>, transform_indices = @transform_3, window_bounds = array<i64: 9, 128>}, {pipeline_mode = #tpu.pipeline_mode<synchronous>, transform_indices = @transform_4, window_bounds = array<i64: 9, 1>}, {transform_indices = @transform_5, window_bounds = array<i64: 1, 9, 256>}]} {
    %cst = arith.constant 0.000000e+00 : f32
    %0 = vector.broadcast %cst : f32 to vector<1x25x128xf32>
    %c0 = arith.constant 0 : index
    %c0_0 = arith.constant 0 : index
    %c0_1 = arith.constant 0 : index
    %1 = vector.load %arg7[%c0, %c0_0, %c0_1] : memref<18x25x128xf32, #tpu.memory_space<vmem>>, vector<1x25x128xf32>
    tpu.vector_store %arg7[%c0, %c0_0, %c0_1], %0 {strides = array<i32>} : memref<18x25x128xf32, #tpu.memory_space<vmem>>, vector<1x25x128xf32>,
    %c17 = arith.constant 17 : index
    %c0_2 = arith.constant 0 : index
    %c0_3 = arith.constant 0 : index
    %2 = vector.load %arg7[%c17, %c0_2, %c0_3] : memref<18x25x128xf32, #tpu.memory_space<vmem>>, vector<1x25x128xf32>
    tpu.vector_store %arg7[%c17, %c0_2, %c0_3], %0 {strides = array<i32>} : memref<18x25x128xf32, #tpu.memory_space<vmem>>, vector<1x25x128xf32>,
    %cst_4 = arith.constant 0.000000e+00 : f32
    %3 = vector.broadcast %cst_4 : f32 to vector<18x1x128xf32>
    %c0_5 = arith.constant 0 : index
    %c7 = arith.constant 7 : index
    %c0_6 = arith.constant 0 : index
    %4 = vector.load %arg7[%c0_5, %c7, %c0_6] : memref<18x25x128xf32, #tpu.memory_space<vmem>>, vector<18x1x128xf32>
    tpu.vector_store %arg7[%c0_5, %c7, %c0_6], %3 {strides = array<i32>} : memref<18x25x128xf32, #tpu.memory_space<vmem>>, vector<18x1x128xf32>,
    %c0_7 = arith.constant 0 : index
    %c24 = arith.constant 24 : index
    %c0_8 = arith.constant 0 : index
    %5 = vector.load %arg7[%c0_7, %c24, %c0_8] : memref<18x25x128xf32, #tpu.memory_space<vmem>>, vector<18x1x128xf32>
    tpu.vector_store %arg7[%c0_7, %c24, %c0_8], %3 {strides = array<i32>} : memref<18x25x128xf32, #tpu.memory_space<vmem>>, vector<18x1x128xf32>,
    %c0_9 = arith.constant 0 : index
    %c0_10 = arith.constant 0 : index
    %c0_11 = arith.constant 0 : index
    %c0_12 = arith.constant 0 : index
    %6 = vector.load %arg1[%c0_9, %c0_10, %c0_11, %c0_12] : memref<1x16x16x64xf32, #tpu.memory_space<vmem>>, vector<1x16x16x64xf32>
    %7 = vector.shape_cast %6 : vector<1x16x16x64xf32> to vector<16x16x64xf32>
    %c1 = arith.constant 1 : index
    %c8 = arith.constant 8 : index
    %c0_13 = arith.constant 0 : index
    %8 = vector.load %arg7[%c1, %c8, %c0_13] : memref<18x25x128xf32, #tpu.memory_space<vmem>>, vector<16x16x64xf32>
    tpu.vector_store %arg7[%c1, %c8, %c0_13], %7 {strides = array<i32>} : memref<18x25x128xf32, #tpu.memory_space<vmem>>, vector<16x16x64xf32>,
    %cst_14 = arith.constant 0.000000e+00 : f32
    %9 = vector.broadcast %cst_14 : f32 to vector<256x128xf32>
    %c0_15 = arith.constant 0 : index
    %c7_16 = arith.constant 7 : index
    %c0_17 = arith.constant 0 : index
    %10 = vector.load %arg7[%c0_15, %c7_16, %c0_17] : memref<18x25x128xf32, #tpu.memory_space<vmem>>, vector<16x16x64xf32>
    %11 = vector.shape_cast %10 : vector<16x16x64xf32> to vector<256x64xf32>
    %12 = arith.truncf %11 : vector<256x64xf32> to vector<256x64xbf16>
    %c0_18 = arith.constant 0 : index
    %c0_19 = arith.constant 0 : index
    %13 = vector.load %arg2[%c0_18, %c0_19] : memref<2304x128xbf16, #tpu.memory_space<vmem>>, vector<64x128xbf16>
    %cst_20 = arith.constant dense<0.000000e+00> : vector<256x128xf32>
    %14 = tpu.matmul %12, %13, %cst_20 {dimension_numbers = #tpu.dot_dimension_numbers<[1], [0], [0], [1], [0, 0, 1, 1], [], []>} : vector<256x64xbf16>, vector<64x128xbf16>, vector<256x128xf32> -> vector<256x128xf32>
    %15 = arith.addf %9, %14 : vector<256x128xf32>
    %c0_21 = arith.constant 0 : index
    %c8_22 = arith.constant 8 : index
    %c0_23 = arith.constant 0 : index
    %16 = vector.load %arg7[%c0_21, %c8_22, %c0_23] : memref<18x25x128xf32, #tpu.memory_space<vmem>>, vector<16x16x64xf32>
    %17 = vector.shape_cast %16 : vector<16x16x64xf32> to vector<256x64xf32>
    %18 = arith.truncf %17 : vector<256x64xf32> to vector<256x64xbf16>
    %c128 = arith.constant 128 : index
    %c0_24 = arith.constant 0 : index
    %19 = vector.load %arg2[%c128, %c0_24] : memref<2304x128xbf16, #tpu.memory_space<vmem>>, vector<64x128xbf16>
    %cst_25 = arith.constant dense<0.000000e+00> : vector<256x128xf32>
    %20 = tpu.matmul %18, %19, %cst_25 {dimension_numbers = #tpu.dot_dimension_numbers<[1], [0], [0], [1], [0, 0, 1, 1], [], []>} : vector<256x64xbf16>, vector<64x128xbf16>, vector<256x128xf32> -> vector<256x128xf32>
    %21 = arith.addf %15, %20 : vector<256x128xf32>
    %c0_26 = arith.constant 0 : index
    %c9 = arith.constant 9 : index
    %c0_27 = arith.constant 0 : index
    %22 = vector.load %arg7[%c0_26, %c9, %c0_27] : memref<18x25x128xf32, #tpu.memory_space<vmem>>, vector<16x16x64xf32>
    %23 = vector.shape_cast %22 : vector<16x16x64xf32> to vector<256x64xf32>
    %24 = arith.truncf %23 : vector<256x64xf32> to vector<256x64xbf16>
    %c256 = arith.constant 256 : index
    %c0_28 = arith.constant 0 : index
    %25 = vector.load %arg2[%c256, %c0_28] : memref<2304x128xbf16, #tpu.memory_space<vmem>>, vector<64x128xbf16>
    %cst_29 = arith.constant dense<0.000000e+00> : vector<256x128xf32>
    %26 = tpu.matmul %24, %25, %cst_29 {dimension_numbers = #tpu.dot_dimension_numbers<[1], [0], [0], [1], [0, 0, 1, 1], [], []>} : vector<256x64xbf16>, vector<64x128xbf16>, vector<256x128xf32> -> vector<256x128xf32>
    %27 = arith.addf %21, %26 : vector<256x128xf32>
    %c1_30 = arith.constant 1 : index
    %c7_31 = arith.constant 7 : index
    %c0_32 = arith.constant 0 : index
    %28 = vector.load %arg7[%c1_30, %c7_31, %c0_32] : memref<18x25x128xf32, #tpu.memory_space<vmem>>, vector<16x16x64xf32>
    %29 = vector.shape_cast %28 : vector<16x16x64xf32> to vector<256x64xf32>
    %30 = arith.truncf %29 : vector<256x64xf32> to vector<256x64xbf16>
    %c384 = arith.constant 384 : index
    %c0_33 = arith.constant 0 : index
    %31 = vector.load %arg2[%c384, %c0_33] : memref<2304x128xbf16, #tpu.memory_space<vmem>>, vector<64x128xbf16>
    %cst_34 = arith.constant dense<0.000000e+00> : vector<256x128xf32>
    %32 = tpu.matmul %30, %31, %cst_34 {dimension_numbers = #tpu.dot_dimension_numbers<[1], [0], [0], [1], [0, 0, 1, 1], [], []>} : vector<256x64xbf16>, vector<64x128xbf16>, vector<256x128xf32> -> vector<256x128xf32>
    %33 = arith.addf %27, %32 : vector<256x128xf32>
    %c1_35 = arith.constant 1 : index
    %c8_36 = arith.constant 8 : index
    %c0_37 = arith.constant 0 : index
    %34 = vector.load %arg7[%c1_35, %c8_36, %c0_37] : memref<18x25x128xf32, #tpu.memory_space<vmem>>, vector<16x16x64xf32>
    %35 = vector.shape_cast %34 : vector<16x16x64xf32> to vector<256x64xf32>
    %36 = arith.truncf %35 : vector<256x64xf32> to vector<256x64xbf16>
    %c512 = arith.constant 512 : index
    %c0_38 = arith.constant 0 : index
    %37 = vector.load %arg2[%c512, %c0_38] : memref<2304x128xbf16, #tpu.memory_space<vmem>>, vector<64x128xbf16>
    %cst_39 = arith.constant dense<0.000000e+00> : vector<256x128xf32>
    %38 = tpu.matmul %36, %37, %cst_39 {dimension_numbers = #tpu.dot_dimension_numbers<[1], [0], [0], [1], [0, 0, 1, 1], [], []>} : vector<256x64xbf16>, vector<64x128xbf16>, vector<256x128xf32> -> vector<256x128xf32>
    %39 = arith.addf %33, %38 : vector<256x128xf32>
    %c1_40 = arith.constant 1 : index
    %c9_41 = arith.constant 9 : index
    %c0_42 = arith.constant 0 : index
    %40 = vector.load %arg7[%c1_40, %c9_41, %c0_42] : memref<18x25x128xf32, #tpu.memory_space<vmem>>, vector<16x16x64xf32>
    %41 = vector.shape_cast %40 : vector<16x16x64xf32> to vector<256x64xf32>
    %42 = arith.truncf %41 : vector<256x64xf32> to vector<256x64xbf16>
    %c640 = arith.constant 640 : index
    %c0_43 = arith.constant 0 : index
    %43 = vector.load %arg2[%c640, %c0_43] : memref<2304x128xbf16, #tpu.memory_space<vmem>>, vector<64x128xbf16>
    %cst_44 = arith.constant dense<0.000000e+00> : vector<256x128xf32>
    %44 = tpu.matmul %42, %43, %cst_44 {dimension_numbers = #tpu.dot_dimension_numbers<[1], [0], [0], [1], [0, 0, 1, 1], [], []>} : vector<256x64xbf16>, vector<64x128xbf16>, vector<256x128xf32> -> vector<256x128xf32>
    %45 = arith.addf %39, %44 : vector<256x128xf32>
    %c2 = arith.constant 2 : index
    %c7_45 = arith.constant 7 : index
    %c0_46 = arith.constant 0 : index
    %46 = vector.load %arg7[%c2, %c7_45, %c0_46] : memref<18x25x128xf32, #tpu.memory_space<vmem>>, vector<16x16x64xf32>
    %47 = vector.shape_cast %46 : vector<16x16x64xf32> to vector<256x64xf32>
    %48 = arith.truncf %47 : vector<256x64xf32> to vector<256x64xbf16>
    %c768 = arith.constant 768 : index
    %c0_47 = arith.constant 0 : index
    %49 = vector.load %arg2[%c768, %c0_47] : memref<2304x128xbf16, #tpu.memory_space<vmem>>, vector<64x128xbf16>
    %cst_48 = arith.constant dense<0.000000e+00> : vector<256x128xf32>
    %50 = tpu.matmul %48, %49, %cst_48 {dimension_numbers = #tpu.dot_dimension_numbers<[1], [0], [0], [1], [0, 0, 1, 1], [], []>} : vector<256x64xbf16>, vector<64x128xbf16>, vector<256x128xf32> -> vector<256x128xf32>
    %51 = arith.addf %45, %50 : vector<256x128xf32>
    %c2_49 = arith.constant 2 : index
    %c8_50 = arith.constant 8 : index
    %c0_51 = arith.constant 0 : index
    %52 = vector.load %arg7[%c2_49, %c8_50, %c0_51] : memref<18x25x128xf32, #tpu.memory_space<vmem>>, vector<16x16x64xf32>
    %53 = vector.shape_cast %52 : vector<16x16x64xf32> to vector<256x64xf32>
    %54 = arith.truncf %53 : vector<256x64xf32> to vector<256x64xbf16>
    %c896 = arith.constant 896 : index
    %c0_52 = arith.constant 0 : index
    %55 = vector.load %arg2[%c896, %c0_52] : memref<2304x128xbf16, #tpu.memory_space<vmem>>, vector<64x128xbf16>
    %cst_53 = arith.constant dense<0.000000e+00> : vector<256x128xf32>
    %56 = tpu.matmul %54, %55, %cst_53 {dimension_numbers = #tpu.dot_dimension_numbers<[1], [0], [0], [1], [0, 0, 1, 1], [], []>} : vector<256x64xbf16>, vector<64x128xbf16>, vector<256x128xf32> -> vector<256x128xf32>
    %57 = arith.addf %51, %56 : vector<256x128xf32>
    %c2_54 = arith.constant 2 : index
    %c9_55 = arith.constant 9 : index
    %c0_56 = arith.constant 0 : index
    %58 = vector.load %arg7[%c2_54, %c9_55, %c0_56] : memref<18x25x128xf32, #tpu.memory_space<vmem>>, vector<16x16x64xf32>
    %59 = vector.shape_cast %58 : vector<16x16x64xf32> to vector<256x64xf32>
    %60 = arith.truncf %59 : vector<256x64xf32> to vector<256x64xbf16>
    %c1024 = arith.constant 1024 : index
    %c0_57 = arith.constant 0 : index
    %61 = vector.load %arg2[%c1024, %c0_57] : memref<2304x128xbf16, #tpu.memory_space<vmem>>, vector<64x128xbf16>
    %cst_58 = arith.constant dense<0.000000e+00> : vector<256x128xf32>
    %62 = tpu.matmul %60, %61, %cst_58 {dimension_numbers = #tpu.dot_dimension_numbers<[1], [0], [0], [1], [0, 0, 1, 1], [], []>} : vector<256x64xbf16>, vector<64x128xbf16>, vector<256x128xf32> -> vector<256x128xf32>
    %63 = arith.addf %57, %62 : vector<256x128xf32>
    %c0_59 = arith.constant 0 : index
    %c0_60 = arith.constant 0 : index
    %c0_61 = arith.constant 0 : index
    %64 = vector.load %arg3[%c0_59, %c0_60, %c0_61] : memref<2x1x128xf32, #tpu.memory_space<vmem>>, vector<1x1x128xf32>
    %65 = vector.shape_cast %64 : vector<1x1x128xf32> to vector<1x128xf32>
    %66 = vector.broadcast %65 : vector<1x128xf32> to vector<256x128xf32>
    %67 = arith.addf %63, %66 : vector<256x128xf32>
    %cst_62 = arith.constant 0.000000e+00 : f32
    %68 = vector.broadcast %cst_62 : f32 to vector<256x128xf32>
    %69 = arith.maximumf %67, %68 : vector<256x128xf32>
    %70 = vector.shape_cast %69 : vector<256x128xf32> to vector<16x16x128xf32>
    %c1_63 = arith.constant 1 : index
    %c8_64 = arith.constant 8 : index
    %c0_65 = arith.constant 0 : index
    %71 = vector.load %arg7[%c1_63, %c8_64, %c0_65] : memref<18x25x128xf32, #tpu.memory_space<vmem>>, vector<16x16x128xf32>
    tpu.vector_store %arg7[%c1_63, %c8_64, %c0_65], %70 {strides = array<i32>} : memref<18x25x128xf32, #tpu.memory_space<vmem>>, vector<16x16x128xf32>,
    %cst_66 = arith.constant 0.000000e+00 : f32
    %72 = vector.broadcast %cst_66 : f32 to vector<256x128xf32>
    %c0_67 = arith.constant 0 : index
    %c7_68 = arith.constant 7 : index
    %c0_69 = arith.constant 0 : index
    %73 = vector.load %arg7[%c0_67, %c7_68, %c0_69] : memref<18x25x128xf32, #tpu.memory_space<vmem>>, vector<16x16x128xf32>
    %74 = vector.shape_cast %73 : vector<16x16x128xf32> to vector<256x128xf32>
    %75 = arith.truncf %74 : vector<256x128xf32> to vector<256x128xbf16>
    %c1152 = arith.constant 1152 : index
    %c0_70 = arith.constant 0 : index
    %76 = vector.load %arg2[%c1152, %c0_70] : memref<2304x128xbf16, #tpu.memory_space<vmem>>, vector<128x128xbf16>
    %cst_71 = arith.constant dense<0.000000e+00> : vector<256x128xf32>
    %77 = tpu.matmul %75, %76, %cst_71 {dimension_numbers = #tpu.dot_dimension_numbers<[1], [0], [0], [1], [0, 0, 1, 1], [], []>} : vector<256x128xbf16>, vector<128x128xbf16>, vector<256x128xf32> -> vector<256x128xf32>
    %78 = arith.addf %72, %77 : vector<256x128xf32>
    %c0_72 = arith.constant 0 : index
    %c8_73 = arith.constant 8 : index
    %c0_74 = arith.constant 0 : index
    %79 = vector.load %arg7[%c0_72, %c8_73, %c0_74] : memref<18x25x128xf32, #tpu.memory_space<vmem>>, vector<16x16x128xf32>
    %80 = vector.shape_cast %79 : vector<16x16x128xf32> to vector<256x128xf32>
    %81 = arith.truncf %80 : vector<256x128xf32> to vector<256x128xbf16>
    %c1280 = arith.constant 1280 : index
    %c0_75 = arith.constant 0 : index
    %82 = vector.load %arg2[%c1280, %c0_75] : memref<2304x128xbf16, #tpu.memory_space<vmem>>, vector<128x128xbf16>
    %cst_76 = arith.constant dense<0.000000e+00> : vector<256x128xf32>
    %83 = tpu.matmul %81, %82, %cst_76 {dimension_numbers = #tpu.dot_dimension_numbers<[1], [0], [0], [1], [0, 0, 1, 1], [], []>} : vector<256x128xbf16>, vector<128x128xbf16>, vector<256x128xf32> -> vector<256x128xf32>
    %84 = arith.addf %78, %83 : vector<256x128xf32>
    %c0_77 = arith.constant 0 : index
    %c9_78 = arith.constant 9 : index
    %c0_79 = arith.constant 0 : index
    %85 = vector.load %arg7[%c0_77, %c9_78, %c0_79] : memref<18x25x128xf32, #tpu.memory_space<vmem>>, vector<16x16x128xf32>
    %86 = vector.shape_cast %85 : vector<16x16x128xf32> to vector<256x128xf32>
    %87 = arith.truncf %86 : vector<256x128xf32> to vector<256x128xbf16>
    %c1408 = arith.constant 1408 : index
    %c0_80 = arith.constant 0 : index
    %88 = vector.load %arg2[%c1408, %c0_80] : memref<2304x128xbf16, #tpu.memory_space<vmem>>, vector<128x128xbf16>
    %cst_81 = arith.constant dense<0.000000e+00> : vector<256x128xf32>
    %89 = tpu.matmul %87, %88, %cst_81 {dimension_numbers = #tpu.dot_dimension_numbers<[1], [0], [0], [1], [0, 0, 1, 1], [], []>} : vector<256x128xbf16>, vector<128x128xbf16>, vector<256x128xf32> -> vector<256x128xf32>
    %90 = arith.addf %84, %89 : vector<256x128xf32>
    %c1_82 = arith.constant 1 : index
    %c7_83 = arith.constant 7 : index
    %c0_84 = arith.constant 0 : index
    %91 = vector.load %arg7[%c1_82, %c7_83, %c0_84] : memref<18x25x128xf32, #tpu.memory_space<vmem>>, vector<16x16x128xf32>
    %92 = vector.shape_cast %91 : vector<16x16x128xf32> to vector<256x128xf32>
    %93 = arith.truncf %92 : vector<256x128xf32> to vector<256x128xbf16>
    %c1536 = arith.constant 1536 : index
    %c0_85 = arith.constant 0 : index
    %94 = vector.load %arg2[%c1536, %c0_85] : memref<2304x128xbf16, #tpu.memory_space<vmem>>, vector<128x128xbf16>
    %cst_86 = arith.constant dense<0.000000e+00> : vector<256x128xf32>
    %95 = tpu.matmul %93, %94, %cst_86 {dimension_numbers = #tpu.dot_dimension_numbers<[1], [0], [0], [1], [0, 0, 1, 1], [], []>} : vector<256x128xbf16>, vector<128x128xbf16>, vector<256x128xf32> -> vector<256x128xf32>
    %96 = arith.addf %90, %95 : vector<256x128xf32>
    %c1_87 = arith.constant 1 : index
    %c8_88 = arith.constant 8 : index
    %c0_89 = arith.constant 0 : index
    %97 = vector.load %arg7[%c1_87, %c8_88, %c0_89] : memref<18x25x128xf32, #tpu.memory_space<vmem>>, vector<16x16x128xf32>
    %98 = vector.shape_cast %97 : vector<16x16x128xf32> to vector<256x128xf32>
    %99 = arith.truncf %98 : vector<256x128xf32> to vector<256x128xbf16>
    %c1664 = arith.constant 1664 : index
    %c0_90 = arith.constant 0 : index
    %100 = vector.load %arg2[%c1664, %c0_90] : memref<2304x128xbf16, #tpu.memory_space<vmem>>, vector<128x128xbf16>
    %cst_91 = arith.constant dense<0.000000e+00> : vector<256x128xf32>
    %101 = tpu.matmul %99, %100, %cst_91 {dimension_numbers = #tpu.dot_dimension_numbers<[1], [0], [0], [1], [0, 0, 1, 1], [], []>} : vector<256x128xbf16>, vector<128x128xbf16>, vector<256x128xf32> -> vector<256x128xf32>
    %102 = arith.addf %96, %101 : vector<256x128xf32>
    %c1_92 = arith.constant 1 : index
    %c9_93 = arith.constant 9 : index
    %c0_94 = arith.constant 0 : index
    %103 = vector.load %arg7[%c1_92, %c9_93, %c0_94] : memref<18x25x128xf32, #tpu.memory_space<vmem>>, vector<16x16x128xf32>
    %104 = vector.shape_cast %103 : vector<16x16x128xf32> to vector<256x128xf32>
    %105 = arith.truncf %104 : vector<256x128xf32> to vector<256x128xbf16>
    %c1792 = arith.constant 1792 : index
    %c0_95 = arith.constant 0 : index
    %106 = vector.load %arg2[%c1792, %c0_95] : memref<2304x128xbf16, #tpu.memory_space<vmem>>, vector<128x128xbf16>
    %cst_96 = arith.constant dense<0.000000e+00> : vector<256x128xf32>
    %107 = tpu.matmul %105, %106, %cst_96 {dimension_numbers = #tpu.dot_dimension_numbers<[1], [0], [0], [1], [0, 0, 1, 1], [], []>} : vector<256x128xbf16>, vector<128x128xbf16>, vector<256x128xf32> -> vector<256x128xf32>
    %108 = arith.addf %102, %107 : vector<256x128xf32>
    %c2_97 = arith.constant 2 : index
    %c7_98 = arith.constant 7 : index
    %c0_99 = arith.constant 0 : index
    %109 = vector.load %arg7[%c2_97, %c7_98, %c0_99] : memref<18x25x128xf32, #tpu.memory_space<vmem>>, vector<16x16x128xf32>
    %110 = vector.shape_cast %109 : vector<16x16x128xf32> to vector<256x128xf32>
    %111 = arith.truncf %110 : vector<256x128xf32> to vector<256x128xbf16>
    %c1920 = arith.constant 1920 : index
    %c0_100 = arith.constant 0 : index
    %112 = vector.load %arg2[%c1920, %c0_100] : memref<2304x128xbf16, #tpu.memory_space<vmem>>, vector<128x128xbf16>
    %cst_101 = arith.constant dense<0.000000e+00> : vector<256x128xf32>
    %113 = tpu.matmul %111, %112, %cst_101 {dimension_numbers = #tpu.dot_dimension_numbers<[1], [0], [0], [1], [0, 0, 1, 1], [], []>} : vector<256x128xbf16>, vector<128x128xbf16>, vector<256x128xf32> -> vector<256x128xf32>
    %114 = arith.addf %108, %113 : vector<256x128xf32>
    %c2_102 = arith.constant 2 : index
    %c8_103 = arith.constant 8 : index
    %c0_104 = arith.constant 0 : index
    %115 = vector.load %arg7[%c2_102, %c8_103, %c0_104] : memref<18x25x128xf32, #tpu.memory_space<vmem>>, vector<16x16x128xf32>
    %116 = vector.shape_cast %115 : vector<16x16x128xf32> to vector<256x128xf32>
    %117 = arith.truncf %116 : vector<256x128xf32> to vector<256x128xbf16>
    %c2048 = arith.constant 2048 : index
    %c0_105 = arith.constant 0 : index
    %118 = vector.load %arg2[%c2048, %c0_105] : memref<2304x128xbf16, #tpu.memory_space<vmem>>, vector<128x128xbf16>
    %cst_106 = arith.constant dense<0.000000e+00> : vector<256x128xf32>
    %119 = tpu.matmul %117, %118, %cst_106 {dimension_numbers = #tpu.dot_dimension_numbers<[1], [0], [0], [1], [0, 0, 1, 1], [], []>} : vector<256x128xbf16>, vector<128x128xbf16>, vector<256x128xf32> -> vector<256x128xf32>
    %120 = arith.addf %114, %119 : vector<256x128xf32>
    %c2_107 = arith.constant 2 : index
    %c9_108 = arith.constant 9 : index
    %c0_109 = arith.constant 0 : index
    %121 = vector.load %arg7[%c2_107, %c9_108, %c0_109] : memref<18x25x128xf32, #tpu.memory_space<vmem>>, vector<16x16x128xf32>
    %122 = vector.shape_cast %121 : vector<16x16x128xf32> to vector<256x128xf32>
    %123 = arith.truncf %122 : vector<256x128xf32> to vector<256x128xbf16>
    %c2176 = arith.constant 2176 : index
    %c0_110 = arith.constant 0 : index
    %124 = vector.load %arg2[%c2176, %c0_110] : memref<2304x128xbf16, #tpu.memory_space<vmem>>, vector<128x128xbf16>
    %cst_111 = arith.constant dense<0.000000e+00> : vector<256x128xf32>
    %125 = tpu.matmul %123, %124, %cst_111 {dimension_numbers = #tpu.dot_dimension_numbers<[1], [0], [0], [1], [0, 0, 1, 1], [], []>} : vector<256x128xbf16>, vector<128x128xbf16>, vector<256x128xf32> -> vector<256x128xf32>
    %126 = arith.addf %120, %125 : vector<256x128xf32>
    %c1_112 = arith.constant 1 : index
    %c0_113 = arith.constant 0 : index
    %c0_114 = arith.constant 0 : index
    %127 = vector.load %arg3[%c1_112, %c0_113, %c0_114] : memref<2x1x128xf32, #tpu.memory_space<vmem>>, vector<1x1x128xf32>
    %128 = vector.shape_cast %127 : vector<1x1x128xf32> to vector<1x128xf32>
    %129 = vector.broadcast %128 : vector<1x128xf32> to vector<256x128xf32>
    %130 = arith.addf %126, %129 : vector<256x128xf32>
    %cst_115 = arith.constant 0.000000e+00 : f32
    %131 = vector.broadcast %cst_115 : f32 to vector<256x128xf32>
    %132 = arith.maximumf %130, %131 : vector<256x128xf32>
    %c0_116 = arith.constant 0 : index
    %c0_117 = arith.constant 0 : index
    %133 = vector.load %arg4[%c0_116, %c0_117] : memref<9x128xbf16, #tpu.memory_space<vmem>>, vector<9x128xbf16>
    %134 = arith.truncf %132 : vector<256x128xf32> to vector<256x128xbf16>
    %cst_118 = arith.constant dense<0.000000e+00> : vector<9x256xf32>
    %135 = tpu.matmul %133, %134, %cst_118 {dimension_numbers = #tpu.dot_dimension_numbers<[1], [1], [0], [0], [0, 0, 1, 0], [], []>} : vector<9x128xbf16>, vector<256x128xbf16>, vector<9x256xf32> -> vector<9x256xf32>
    %c0_119 = arith.constant 0 : index
    %c0_120 = arith.constant 0 : index
    %136 = vector.load %arg5[%c0_119, %c0_120] : memref<9x1xf32, #tpu.memory_space<vmem>>, vector<9x1xf32>
    %137 = vector.broadcast %136 : vector<9x1xf32> to vector<9x256xf32>
    %138 = arith.addf %135, %137 : vector<9x256xf32>
    %c0_121 = arith.constant 0 : index
    %c0_122 = arith.constant 0 : index
    %c0_123 = arith.constant 0 : index
    %139 = vector.load %arg6[%c0_121, %c0_122, %c0_123] : memref<1x9x256xf32, #tpu.memory_space<vmem>>, vector<1x9x256xf32>
    %140 = vector.shape_cast %139 : vector<1x9x256xf32> to vector<9x256xf32>
    %141 = vector.shape_cast %138 : vector<9x256xf32> to vector<1x9x256xf32>
    tpu.vector_store %arg6[%c0_121, %c0_122, %c0_123], %141 {strides = array<i32>} : memref<1x9x256xf32, #tpu.memory_space<vmem>>, vector<1x9x256xf32>,
    return
  }
  func.func @transform_0(%arg0: i32) -> (i32, i32, i32, i32) {
    %c0_i32 = arith.constant 0 : i32
    %c0_i32_0 = arith.constant 0 : i32
    %c0_i32_1 = arith.constant 0 : i32
    %c0_i32_2 = arith.constant 0 : i32
    return %arg0, %c0_i32, %c0_i32_0, %c0_i32_1 : i32, i32, i32, i32
  }
  func.func @transform_1(%arg0: i32) -> (i32, i32) {
    %c0_i32 = arith.constant 0 : i32
    %c0_i32_0 = arith.constant 0 : i32
    %c0_i32_1 = arith.constant 0 : i32
    return %c0_i32, %c0_i32_0 : i32, i32
  }
  func.func @transform_2(%arg0: i32) -> (i32, i32, i32) {
    %c0_i32 = arith.constant 0 : i32
    %c0_i32_0 = arith.constant 0 : i32
    %c0_i32_1 = arith.constant 0 : i32
    %c0_i32_2 = arith.constant 0 : i32
    return %c0_i32, %c0_i32_0, %c0_i32_1 : i32, i32, i32
  }
  func.func @transform_3(%arg0: i32) -> (i32, i32) {
    %c0_i32 = arith.constant 0 : i32
    %c0_i32_0 = arith.constant 0 : i32
    %c0_i32_1 = arith.constant 0 : i32
    return %c0_i32, %c0_i32_0 : i32, i32
  }
  func.func @transform_4(%arg0: i32) -> (i32, i32) {
    %c0_i32 = arith.constant 0 : i32
    %c0_i32_0 = arith.constant 0 : i32
    %c0_i32_1 = arith.constant 0 : i32
    return %c0_i32, %c0_i32_0 : i32, i32
  }
  func.func @transform_5(%arg0: i32) -> (i32, i32, i32) {
    %c0_i32 = arith.constant 0 : i32
    %c0_i32_0 = arith.constant 0 : i32
    %c0_i32_1 = arith.constant 0 : i32
    return %arg0, %c0_i32, %c0_i32_0 : i32, i32, i32
  }
}

</mosaic_0001>

<llo_original>
// kernel: tpu_custom_call.1
$region0: #{tpu_custom_call.1}
  #allocation0 [shape = 'u32[]', space=smem, size = 0x4, offset = 0x4, fixed_abs, tag = 'smem constant byte address 0x4 - core index']
  #allocation1 [shape = 'u32[72,128]{1,0:T(1,128)}', space=vmem, size = 0x9000, scoped, tag = 'internal scratch']
  #allocation2 [shape = 'f32[18,25,128]{2,1,0:T(8,128)}', space=vmem, size = 0x48000, scoped, tag = 'scratch operand']
  %s0 = inlined_call_operand.hbm [shape: f32[2,16,16,64], index: 0, kind: input, shape index: {}]
  %s1 = inlined_call_operand.hbm [shape: bf16[2304,128], index: 1, kind: input, shape index: {}]
  %s2 = inlined_call_operand.vmem [shape: f32[2,1,128], index: 2, kind: input, shape index: {}]
  %s3 = inlined_call_operand.vmem [shape: bf16[9,128], index: 3, kind: input, shape index: {}]
  %s4 = inlined_call_operand.vmem [shape: f32[9,1], index: 4, kind: input, shape index: {}]
  %s5 = inlined_call_operand.vmem [shape: f32[2,9,256], index: 5, kind: output, shape index: {}]
  %s6 = sld [smem:[#allocation0]]
  $region61: #{tpu_custom_call.1} parent=0
    _
  %s8 = ssub.s32 1, %s6
  %s9 = scalar_select 0, %s8, %s6
  $region1: #{tpu_custom_call.1} parent=0
    #allocation3 [shape = 'u8[262144]{0}', space=vmem, size = 0x40000, scoped, tag = 'input window, operand 0']
    #allocation4 [shape = 's32[2]{0}', space=sflag, size = 0x8, scoped, tag = 'scoped memory for tpu_custom_call.1']
    #allocation5 [shape = 'u8[589824]{0}', space=vmem, size = 0x90000, scoped, tag = 'input window, operand 1, single buffered']
    #allocation6 [shape = 's32[1]{0}', space=sflag, size = 0x4, scoped, tag = 'scoped memory for tpu_custom_call.1']
    %10 = vsyncpa [#allocation4], 0
    %s11 = scalar_lea.sflag [#allocation4], 1
    %12 = vsyncpa %s11, 0
    %13 = vsyncpa [#allocation6], 0
    loop: start=0, step=1, limit=4
    $region2: #{tpu_custom_call.1} parent=1 // loop_pre_header
      _
    $region3: #{tpu_custom_call.1} parent=1 // loop_header
      %s15 = sphi 0, %s19
      %p16 = scmp.ge.s32.totalorder %s15, 4
      %s25 = sphi 0, %s27
      %s28 = sphi 0, %s25
      %s29 = sphi 0, %s28
      %s45 = sphi 0, %s29
      %s49 = sphi 0, %s49
      %s51 = sphi 0, %s49
      %s52 = sphi 0, %s51
      %s66 = sphi 0, %s52
      %s70 = sphi 0, %s70
      %s72 = sphi 0, %s70
      %s73 = sphi 0, %s72
      %s87 = sphi 0, %s73
      %s91 = sphi 0, %s91
      %s93 = sphi 0, %s91
      %s94 = sphi 0, %s93
      %s108 = sphi 0, %s94
      %s112 = sphi 0, %s112
      %s114 = sphi 0, %s112
      %s115 = sphi 0, %s114
      %s129 = sphi 0, %s115
      %s135 = sphi 0, %s137
      %s138 = sphi 0, %s135
      %s139 = sphi 0, %s138
      %s155 = sphi 0, %s139
    $region4: #{tpu_custom_call.1} parent=1 // loop_header_branch
      %18 = sbr.rel (%p16) target = $region8
    $region5: #{tpu_custom_call.1} parent=1 // loop_body
      %s20 = ssub.s32 %s15, 1
      %s21 = ssub.s32 %s15, 2
      %s22 = sadd.s32 %s15, 1
      %s23 = ssub.s32 %s15, %s22
      %p24 = scmp.eq.s32.totalorder %s23, 0
      %s26 = sadd.s32 %s25, 1
      %s27 = scalar_select %p24, %s25, %s26
      %p30 = pneg %p24
      %p31 = scmp.eq.s32.totalorder %s15, 1
      %p32 = por %p30, %p31
      %p33 = scmp.ne.s32.totalorder %s25, %s28
      %p34 = scmp.eq.s32.totalorder %s15, 0
      %p35 = por %p33, %p34
      %p36 = scmp.ne.s32.totalorder %s25, %s28
      %p37 = scmp.eq.s32.totalorder %s20, 1
      %p38 = por %p36, %p37
      %p39 = scmp.ne.s32.totalorder %s28, %s29
      %p40 = scmp.eq.s32.totalorder %s20, 0
      %p41 = por %p39, %p40
      %p42 = scmp.ne.s32.totalorder %s28, %s29
      %p43 = scmp.eq.s32.totalorder %s21, 1
      %p44 = por %p42, %p43
      %p46 = scmp.ne.s32.totalorder %s29, %s45
      %p47 = scmp.eq.s32.totalorder %s21, 0
      %p48 = por %p46, %p47
      %s50 = sadd.s32 %s49, 1
      %p53 = scmp.eq.s32.totalorder %s15, 1
      %p54 = scmp.ne.s32.totalorder %s49, %s51
      %p55 = scmp.eq.s32.totalorder %s15, 0
      %p56 = por %p54, %p55
      %p57 = scmp.ne.s32.totalorder %s49, %s51
      %p58 = scmp.eq.s32.totalorder %s20, 1
      %p59 = por %p57, %p58
      %p60 = scmp.ne.s32.totalorder %s51, %s52
      %p61 = scmp.eq.s32.totalorder %s20, 0
      %p62 = por %p60, %p61
      %p63 = scmp.ne.s32.totalorder %s51, %s52
      %p64 = scmp.eq.s32.totalorder %s21, 1
      %p65 = por %p63, %p64
      %p67 = scmp.ne.s32.totalorder %s52, %s66
      %p68 = scmp.eq.s32.totalorder %s21, 0
      %p69 = por %p67, %p68
      %s71 = sadd.s32 %s70, 1
      %p74 = scmp.eq.s32.totalorder %s15, 1
      %p75 = scmp.ne.s32.totalorder %s70, %s72
      %p76 = scmp.eq.s32.totalorder %s15, 0
      %p77 = por %p75, %p76
      %p78 = scmp.ne.s32.totalorder %s70, %s72
      %p79 = scmp.eq.s32.totalorder %s20, 1
      %p80 = por %p78, %p79
      %p81 = scmp.ne.s32.totalorder %s72, %s73
      %p82 = scmp.eq.s32.totalorder %s20, 0
      %p83 = por %p81, %p82
      %p84 = scmp.ne.s32.totalorder %s72, %s73
      %p85 = scmp.eq.s32.totalorder %s21, 1
      %p86 = por %p84, %p85
      %p88 = scmp.ne.s32.totalorder %s73, %s87
      %p89 = scmp.eq.s32.totalorder %s21, 0
      %p90 = por %p88, %p89
      %s92 = sadd.s32 %s91, 1
      %p95 = scmp.eq.s32.totalorder %s15, 1
      %p96 = scmp.ne.s32.totalorder %s91, %s93
      %p97 = scmp.eq.s32.totalorder %s15, 0
      %p98 = por %p96, %p97
      %p99 = scmp.ne.s32.totalorder %s91, %s93
      %p100 = scmp.eq.s32.totalorder %s20, 1
      %p101 = por %p99, %p100
      %p102 = scmp.ne.s32.totalorder %s93, %s94
      %p103 = scmp.eq.s32.totalorder %s20, 0
      %p104 = por %p102, %p103
      %p105 = scmp.ne.s32.totalorder %s93, %s94
      %p106 = scmp.eq.s32.totalorder %s21, 1
      %p107 = por %p105, %p106
      %p109 = scmp.ne.s32.totalorder %s94, %s108
      %p110 = scmp.eq.s32.totalorder %s21, 0
      %p111 = por %p109, %p110
      %s113 = sadd.s32 %s112, 1
      %p116 = scmp.eq.s32.totalorder %s15, 1
      %p117 = scmp.ne.s32.totalorder %s112, %s114
      %p118 = scmp.eq.s32.totalorder %s15, 0
      %p119 = por %p117, %p118
      %p120 = scmp.ne.s32.totalorder %s112, %s114
      %p121 = scmp.eq.s32.totalorder %s20, 1
      %p122 = por %p120, %p121
      %p123 = scmp.ne.s32.totalorder %s114, %s115
      %p124 = scmp.eq.s32.totalorder %s20, 0
      %p125 = por %p123, %p124
      %p126 = scmp.ne.s32.totalorder %s114, %s115
      %p127 = scmp.eq.s32.totalorder %s21, 1
      %p128 = por %p126, %p127
      %p130 = scmp.ne.s32.totalorder %s115, %s129
      %p131 = scmp.eq.s32.totalorder %s21, 0
      %p132 = por %p130, %p131
      %s133 = ssub.s32 %s15, %s22
      %p134 = scmp.eq.s32.totalorder %s133, 0
      %s136 = sadd.s32 %s135, 1
      %s137 = scalar_select %p134, %s135, %s136
      %p140 = pneg %p134
      %p141 = scmp.eq.s32.totalorder %s15, 1
      %p142 = por %p140, %p141
      %p143 = scmp.ne.s32.totalorder %s135, %s138
      %p144 = scmp.eq.s32.totalorder %s15, 0
      %p145 = por %p143, %p144
      %p146 = scmp.ne.s32.totalorder %s135, %s138
      %p147 = scmp.eq.s32.totalorder %s20, 1
      %p148 = por %p146, %p147
      %p149 = scmp.ne.s32.totalorder %s138, %s139
      %p150 = scmp.eq.s32.totalorder %s20, 0
      %p151 = por %p149, %p150
      %p152 = scmp.ne.s32.totalorder %s138, %s139
      %p153 = scmp.eq.s32.totalorder %s21, 1
      %p154 = por %p152, %p153
      %p156 = scmp.ne.s32.totalorder %s139, %s155
      %p157 = scmp.eq.s32.totalorder %s21, 0
      %p158 = por %p156, %p157
      %p159 = scmp.le.s32.totalorder 1, %s15
      %p160 = scmp.lt.s32.totalorder %s15, 3
      %p161 = pnand %p159, %p160
      %p162 = pneg %p161
      // Predicated region
      $region9: #{tpu_custom_call.1} parent=5 // pred_check
        _
      $region10: #{tpu_custom_call.1} parent=5 // pred_check_branch
        %164 = sbr.rel (%p161) target = $region12
      $region11: #{tpu_custom_call.1} parent=5 // pred_region
        %s165 = ssub.s32 %s15, 1
        // Predicated region
        $region13: #{tpu_custom_call.1} parent=11 // pred_check
          %p166 = pneg %p62
        $region14: #{tpu_custom_call.1} parent=11 // pred_check_branch
          %168 = sbr.rel (%p166) target = $region16
        $region15: #{tpu_custom_call.1} parent=11 // pred_region
          %170 = vsyncadd [#allocation6], 0
          %s171 = sshll.u32 %s1, 4
          %s172 = int_to_ptr.hbm [resolvable:$true] %s171
          %s173 = sshll.u32 [#allocation5], 4
          %s174 = int_to_ptr.vmem [resolvable:$true] %s173
          %179 = dma.hbm_to_vmem [thread:$0]  %s172, 18432, %s174, [#allocation6], 64, 64, 4
        $region16: #{tpu_custom_call.1} parent=11 // pred_fallthru
          _
        // Predicated region
        $region17: #{tpu_custom_call.1} parent=11 // pred_check
          %p180 = pneg %p83
        $region18: #{tpu_custom_call.1} parent=11 // pred_check_branch
          %182 = sbr.rel (%p180) target = $region20
        $region19: #{tpu_custom_call.1} parent=11 // pred_region
          _
        $region20: #{tpu_custom_call.1} parent=11 // pred_fallthru
          _
        // Predicated region
        $region21: #{tpu_custom_call.1} parent=11 // pred_check
          %p183 = pneg %p104
        $region22: #{tpu_custom_call.1} parent=11 // pred_check_branch
          %185 = sbr.rel (%p183) target = $region24
        $region23: #{tpu_custom_call.1} parent=11 // pred_region
          _
        $region24: #{tpu_custom_call.1} parent=11 // pred_fallthru
          _
        // Predicated region
        $region25: #{tpu_custom_call.1} parent=11 // pred_check
          %p186 = pneg %p125
        $region26: #{tpu_custom_call.1} parent=11 // pred_check_branch
          %188 = sbr.rel (%p186) target = $region28
        $region27: #{tpu_custom_call.1} parent=11 // pred_region
          _
        $region28: #{tpu_custom_call.1} parent=11 // pred_fallthru
          _
      $region12: #{tpu_custom_call.1} parent=5 // pred_fallthru
        _
      %p189 = scmp.lt.s32.totalorder %s15, 2
      // Predicated region
      $region29: #{tpu_custom_call.1} parent=5 // pred_check
        %p190 = pneg %p189
      $region30: #{tpu_custom_call.1} parent=5 // pred_check_branch
        %192 = sbr.rel (%p190) target = $region32
      $region31: #{tpu_custom_call.1} parent=5 // pred_region
        // Predicated region
        $region33: #{tpu_custom_call.1} parent=31 // pred_check
          %p193 = pneg %p35
        $region34: #{tpu_custom_call.1} parent=31 // pred_check_branch
          %195 = sbr.rel (%p193) target = $region36
        $region35: #{tpu_custom_call.1} parent=31 // pred_region
          %s196 = sand.u32 %s25, 1
          %s197 = scalar_lea.sflag [#allocation4], %s196
          %s198 = sand.u32 %s25, 1
          %s199 = smul.addr %s198, 256
          %s200 = scalar_lea.vmem [#allocation3], %s199
          %202 = vsyncadd %s197, 0
          %s203 = smul.addr %s15, 32
          %s204 = smul.addr %s203, 8
          %s205 = scalar_lea.hbm %s0, %s204
          %s206 = sshll.u32 %s205, 4
          %s207 = int_to_ptr.hbm [resolvable:$true] %s206
          %s208 = sshll.u32 %s200, 4
          %s209 = int_to_ptr.vmem [resolvable:$true] %s208
          %214 = dma.hbm_to_vmem [thread:$0]  %s207, 4096, %s209, %s197, 128, 128, 8
        $region36: #{tpu_custom_call.1} parent=31 // pred_fallthru
          _
      $region32: #{tpu_custom_call.1} parent=5 // pred_fallthru
        _
      %p215 = scmp.le.s32.totalorder 1, %s15
      %p216 = scmp.lt.s32.totalorder %s15, 3
      %p217 = pnand %p215, %p216
      %p218 = pneg %p217
      // Predicated region
      $region37: #{tpu_custom_call.1} parent=5 // pred_check
        _
      $region38: #{tpu_custom_call.1} parent=5 // pred_check_branch
        %220 = sbr.rel (%p217) target = $region40
      $region39: #{tpu_custom_call.1} parent=5 // pred_region
        %s221 = ssub.s32 %s15, 1
        %s222 = sand.u32 %s28, 1
        %s223 = scalar_lea.sflag [#allocation4], %s222
        %s224 = sand.u32 %s28, 1
        %s225 = smul.addr %s224, 256
        %s226 = scalar_lea.vmem [#allocation3], %s225
        // Predicated region
        $region41: #{tpu_custom_call.1} parent=39 // pred_check
          %p227 = pneg %p41
        $region42: #{tpu_custom_call.1} parent=39 // pred_check_branch
          %229 = sbr.rel (%p227) target = $region44
        $region43: #{tpu_custom_call.1} parent=39 // pred_region
          %231 = dma.done %s223, 4096
        $region44: #{tpu_custom_call.1} parent=39 // pred_fallthru
          _
        // Predicated region
        $region45: #{tpu_custom_call.1} parent=39 // pred_check
          %p232 = pneg %p62
        $region46: #{tpu_custom_call.1} parent=39 // pred_check_branch
          %234 = sbr.rel (%p232) target = $region48
        $region47: #{tpu_custom_call.1} parent=39 // pred_region
          %236 = dma.done [#allocation6], 18432
        $region48: #{tpu_custom_call.1} parent=39 // pred_fallthru
          _
        %s237 = sand.u32 %s28, 1
        %s238 = scalar_lea.sflag [#allocation4], %s237
        %s239 = sand.u32 %s28, 1
        %s240 = smul.addr %s239, 256
        %s241 = scalar_lea.vmem [#allocation3], %s240
        %p242 = pneg %p41
        %p243 = pneg %p38
        %p244 = pneg %p62
        %p245 = pneg %p59
        %p246 = pneg %p83
        %p247 = pneg %p80
        %p248 = pneg %p104
        %p249 = pneg %p101
        %p250 = pneg %p125
        %p251 = pneg %p122
        %p252 = pneg %p151
        %p253 = pneg %p148
        %p254 = scmp.lt.s32.totalorder %s20, 1
        %s255 = scalar_select %p254, %s20, 1
        %s256 = smul.addr %s255, 4
        %s257 = smul.addr %s256, 8
        %s258 = scalar_lea.vmem %s5, %s257
        %p259 = scmp.lt.s32.totalorder %s20, 1
        %s260 = scalar_select %p259, %s20, 1
        %s261 = smul.addr %s260, 4
        %s262 = smul.addr %s261, 8
        %s263 = scalar_lea.vmem %s5, %s262
        %265 = vst [vmem:[#allocation2] sm:$0xff] 0.0
        %266 = vst [vmem:[#allocation2 + $0x8] sm:$0xff] 0.0
        %267 = vst [vmem:[#allocation2 + $0x10] sm:$0xff] 0.0
        %268 = vst [vmem:[#allocation2 + $0x18] sm:$0x1] 0.0
        %s269 = scalar_lea.vmem [#allocation2], 544
        %270 = vst [vmem:[%s269] sm:$0xff] 0.0
        %271 = vst [vmem:[%s269 + $0x8] sm:$0xff] 0.0
        %272 = vst [vmem:[%s269 + $0x10] sm:$0xff] 0.0
        %273 = vst [vmem:[%s269 + $0x18] sm:$0x1] 0.0
        %274 = vst [vmem:[#allocation2 + $0x7] sm:$0x1] 0.0
        %275 = vst [vmem:[#allocation2 + $0x27] sm:$0x1] 0.0
        %276 = vst [vmem:[#allocation2 + $0x47] sm:$0x1] 0.0
        %277 = vst [vmem:[#allocation2 + $0x67] sm:$0x1] 0.0
        %278 = vst [vmem:[#allocation2 + $0x87] sm:$0x1] 0.0
        %279 = vst [vmem:[#allocation2 + $0xa7] sm:$0x1] 0.0
        %280 = vst [vmem:[#allocation2 + $0xc7] sm:$0x1] 0.0
        %281 = vst [vmem:[#allocation2 + $0xe7] sm:$0x1] 0.0
        %282 = vst [vmem:[#allocation2 + $0x107] sm:$0x1] 0.0
        %283 = vst [vmem:[#allocation2 + $0x127] sm:$0x1] 0.0
        %284 = vst [vmem:[#allocation2 + $0x147] sm:$0x1] 0.0
        %285 = vst [vmem:[#allocation2 + $0x167] sm:$0x1] 0.0
        %286 = vst [vmem:[#allocation2 + $0x187] sm:$0x1] 0.0
        %287 = vst [vmem:[#allocation2 + $0x1a7] sm:$0x1] 0.0
        %288 = vst [vmem:[#allocation2 + $0x1c7] sm:$0x1] 0.0
        %289 = vst [vmem:[#allocation2 + $0x1e7] sm:$0x1] 0.0
        %290 = vst [vmem:[#allocation2 + $0x207] sm:$0x1] 0.0
        %291 = vst [vmem:[#allocation2 + $0x227] sm:$0x1] 0.0
        %292 = vst [vmem:[#allocation2 + $0x18] sm:$0x1] 0.0
        %293 = vst [vmem:[#allocation2 + $0x38] sm:$0x1] 0.0
        %294 = vst [vmem:[#allocation2 + $0x58] sm:$0x1] 0.0
        %295 = vst [vmem:[#allocation2 + $0x78] sm:$0x1] 0.0
        %296 = vst [vmem:[#allocation2 + $0x98] sm:$0x1] 0.0
        %297 = vst [vmem:[#allocation2 + $0xb8] sm:$0x1] 0.0
        %298 = vst [vmem:[#allocation2 + $0xd8] sm:$0x1] 0.0
        %299 = vst [vmem:[#allocation2 + $0xf8] sm:$0x1] 0.0
        %300 = vst [vmem:[#allocation2 + $0x118] sm:$0x1] 0.0
        %301 = vst [vmem:[#allocation2 + $0x138] sm:$0x1] 0.0
        %302 = vst [vmem:[#allocation2 + $0x158] sm:$0x1] 0.0
        %303 = vst [vmem:[#allocation2 + $0x178] sm:$0x1] 0.0
        %304 = vst [vmem:[#allocation2 + $0x198] sm:$0x1] 0.0
        %305 = vst [vmem:[#allocation2 + $0x1b8] sm:$0x1] 0.0
        %306 = vst [vmem:[#allocation2 + $0x1d8] sm:$0x1] 0.0
        %307 = vst [vmem:[#allocation2 + $0x1f8] sm:$0x1] 0.0
        %308 = vst [vmem:[#allocation2 + $0x218] sm:$0x1] 0.0
        %309 = vst [vmem:[#allocation2 + $0x238] sm:$0x1] 0.0
        %v310 = vld [vmem:[%s226] sm:$0xff]
        %v311 = vld [vmem:[%s226 + $0x8] sm:$0xff]
        %v312 = vld [vmem:[%s226 + $0x10] sm:$0xff]
        %v313 = vld [vmem:[%s226 + $0x18] sm:$0xff]
        %v314 = vld [vmem:[%s226 + $0x20] sm:$0xff]
        %v315 = vld [vmem:[%s226 + $0x28] sm:$0xff]
        %v316 = vld [vmem:[%s226 + $0x30] sm:$0xff]
        %v317 = vld [vmem:[%s226 + $0x38] sm:$0xff]
        %v318 = vld [vmem:[%s226 + $0x40] sm:$0xff]
        %v319 = vld [vmem:[%s226 + $0x48] sm:$0xff]
        %v320 = vld [vmem:[%s226 + $0x50] sm:$0xff]
        %v321 = vld [vmem:[%s226 + $0x58] sm:$0xff]
        %v322 = vld [vmem:[%s226 + $0x60] sm:$0xff]
        %v323 = vld [vmem:[%s226 + $0x68] sm:$0xff]
        %v324 = vld [vmem:[%s226 + $0x70] sm:$0xff]
        %v325 = vld [vmem:[%s226 + $0x78] sm:$0xff]
        %v326 = vld [vmem:[%s226 + $0x80] sm:$0xff]
        %v327 = vld [vmem:[%s226 + $0x88] sm:$0xff]
        %v328 = vld [vmem:[%s226 + $0x90] sm:$0xff]
        %v329 = vld [vmem:[%s226 + $0x98] sm:$0xff]
        %v330 = vld [vmem:[%s226 + $0xa0] sm:$0xff]
        %v331 = vld [vmem:[%s226 + $0xa8] sm:$0xff]
        %v332 = vld [vmem:[%s226 + $0xb0] sm:$0xff]
        %v333 = vld [vmem:[%s226 + $0xb8] sm:$0xff]
        %v334 = vld [vmem:[%s226 + $0xc0] sm:$0xff]
        %v335 = vld [vmem:[%s226 + $0xc8] sm:$0xff]
        %v336 = vld [vmem:[%s226 + $0xd0] sm:$0xff]
        %v337 = vld [vmem:[%s226 + $0xd8] sm:$0xff]
        %v338 = vld [vmem:[%s226 + $0xe0] sm:$0xff]
        %v339 = vld [vmem:[%s226 + $0xe8] sm:$0xff]
        %v340 = vld [vmem:[%s226 + $0xf0] sm:$0xff]
        %v341 = vld [vmem:[%s226 + $0xf8] sm:$0xff]
        %s342 = scalar_lea.vmem [#allocation2], 32
        %vm343 = vcmask 523264
        %344 = vst.msk [vmem:[%s342 + $0x8] sm:$0xff] %vm343, %v310
        %345 = vst.msk [vmem:[%s342 + $0x10] sm:$0xff] %vm343, %v311
        %346 = vst.msk [vmem:[%s342 + $0x28] sm:$0xff] %vm343, %v312
        %347 = vst.msk [vmem:[%s342 + $0x30] sm:$0xff] %vm343, %v313
        %348 = vst.msk [vmem:[%s342 + $0x48] sm:$0xff] %vm343, %v314
        %349 = vst.msk [vmem:[%s342 + $0x50] sm:$0xff] %vm343, %v315
        %350 = vst.msk [vmem:[%s342 + $0x68] sm:$0xff] %vm343, %v316
        %351 = vst.msk [vmem:[%s342 + $0x70] sm:$0xff] %vm343, %v317
        %352 = vst.msk [vmem:[%s342 + $0x88] sm:$0xff] %vm343, %v318
        %353 = vst.msk [vmem:[%s342 + $0x90] sm:$0xff] %vm343, %v319
        %354 = vst.msk [vmem:[%s342 + $0xa8] sm:$0xff] %vm343, %v320
        %355 = vst.msk [vmem:[%s342 + $0xb0] sm:$0xff] %vm343, %v321
        %356 = vst.msk [vmem:[%s342 + $0xc8] sm:$0xff] %vm343, %v322
        %357 = vst.msk [vmem:[%s342 + $0xd0] sm:$0xff] %vm343, %v323
        %358 = vst.msk [vmem:[%s342 + $0xe8] sm:$0xff] %vm343, %v324
        %359 = vst.msk [vmem:[%s342 + $0xf0] sm:$0xff] %vm343, %v325
        %360 = vst.msk [vmem:[%s342 + $0x108] sm:$0xff] %vm343, %v326
        %361 = vst.msk [vmem:[%s342 + $0x110] sm:$0xff] %vm343, %v327
        %362 = vst.msk [vmem:[%s342 + $0x128] sm:$0xff] %vm343, %v328
        %363 = vst.msk [vmem:[%s342 + $0x130] sm:$0xff] %vm343, %v329
        %364 = vst.msk [vmem:[%s342 + $0x148] sm:$0xff] %vm343, %v330
        %365 = vst.msk [vmem:[%s342 + $0x150] sm:$0xff] %vm343, %v331
        %366 = vst.msk [vmem:[%s342 + $0x168] sm:$0xff] %vm343, %v332
        %367 = vst.msk [vmem:[%s342 + $0x170] sm:$0xff] %vm343, %v333
        %368 = vst.msk [vmem:[%s342 + $0x188] sm:$0xff] %vm343, %v334
        %369 = vst.msk [vmem:[%s342 + $0x190] sm:$0xff] %vm343, %v335
        %370 = vst.msk [vmem:[%s342 + $0x1a8] sm:$0xff] %vm343, %v336
        %371 = vst.msk [vmem:[%s342 + $0x1b0] sm:$0xff] %vm343, %v337
        %372 = vst.msk [vmem:[%s342 + $0x1c8] sm:$0xff] %vm343, %v338
        %373 = vst.msk [vmem:[%s342 + $0x1d0] sm:$0xff] %vm343, %v339
        %374 = vst.msk [vmem:[%s342 + $0x1e8] sm:$0xff] %vm343, %v340
        %375 = vst.msk [vmem:[%s342 + $0x1f0] sm:$0xff] %vm343, %v341
        %v376 = vld [vmem:[#allocation2 + $0x7] sm:$0xff]
        %v377 = vld [vmem:[#allocation2 + $0xf] sm:$0xff]
        %v378 = vld [vmem:[#allocation2 + $0x27] sm:$0xff]
        %v379 = vld [vmem:[#allocation2 + $0x2f] sm:$0xff]
        %v380 = vld [vmem:[#allocation2 + $0x47] sm:$0xff]
        %v381 = vld [vmem:[#allocation2 + $0x4f] sm:$0xff]
        %v382 = vld [vmem:[#allocation2 + $0x67] sm:$0xff]
        %v383 = vld [vmem:[#allocation2 + $0x6f] sm:$0xff]
        %v384 = vld [vmem:[#allocation2 + $0x87] sm:$0xff]
        %v385 = vld [vmem:[#allocation2 + $0x8f] sm:$0xff]
        %v386 = vld [vmem:[#allocation2 + $0xa7] sm:$0xff]
        %v387 = vld [vmem:[#allocation2 + $0xaf] sm:$0xff]
        %v388 = vld [vmem:[#allocation2 + $0xc7] sm:$0xff]
        %v389 = vld [vmem:[#allocation2 + $0xcf] sm:$0xff]
        %v390 = vld [vmem:[#allocation2 + $0xe7] sm:$0xff]
        %v391 = vld [vmem:[#allocation2 + $0xef] sm:$0xff]
        %v392 = vld [vmem:[#allocation2 + $0x107] sm:$0xff]
        %v393 = vld [vmem:[#allocation2 + $0x10f] sm:$0xff]
        %v394 = vld [vmem:[#allocation2 + $0x127] sm:$0xff]
        %v395 = vld [vmem:[#allocation2 + $0x12f] sm:$0xff]
        %v396 = vld [vmem:[#allocation2 + $0x147] sm:$0xff]
        %v397 = vld [vmem:[#allocation2 + $0x14f] sm:$0xff]
        %v398 = vld [vmem:[#allocation2 + $0x167] sm:$0xff]
        %v399 = vld [vmem:[#allocation2 + $0x16f] sm:$0xff]
        %v400 = vld [vmem:[#allocation2 + $0x187] sm:$0xff]
        %v401 = vld [vmem:[#allocation2 + $0x18f] sm:$0xff]
        %v402 = vld [vmem:[#allocation2 + $0x1a7] sm:$0xff]
        %v403 = vld [vmem:[#allocation2 + $0x1af] sm:$0xff]
        %v404 = vld [vmem:[#allocation2 + $0x1c7] sm:$0xff]
        %v405 = vld [vmem:[#allocation2 + $0x1cf] sm:$0xff]
        %v406 = vld [vmem:[#allocation2 + $0x1e7] sm:$0xff]
        %v407 = vld [vmem:[#allocation2 + $0x1ef] sm:$0xff]
        %v408 = vpack.c.bf16 %v377, %v376
        %v409 = vpack.c.bf16 %v379, %v378
        %v410 = vpack.c.bf16 %v381, %v380
        %v411 = vpack.c.bf16 %v383, %v382
        %v412 = vpack.c.bf16 %v385, %v384
        %v413 = vpack.c.bf16 %v387, %v386
        %v414 = vpack.c.bf16 %v389, %v388
        %v415 = vpack.c.bf16 %v391, %v390
        %v416 = vpack.c.bf16 %v393, %v392
        %v417 = vpack.c.bf16 %v395, %v394
        %v418 = vpack.c.bf16 %v397, %v396
        %v419 = vpack.c.bf16 %v399, %v398
        %v420 = vpack.c.bf16 %v401, %v400
        %v421 = vpack.c.bf16 %v403, %v402
        %v422 = vpack.c.bf16 %v405, %v404
        %v423 = vpack.c.bf16 %v407, %v406
        %v424 = vld [vmem:[#allocation5] sm:$0xf]
        %v425 = vld [vmem:[#allocation5 + $0x4] sm:$0xf]
        %v426 = vld [vmem:[#allocation5 + $0x8] sm:$0xf]
        %v427 = vld [vmem:[#allocation5 + $0xc] sm:$0xf]
        %v428 = vld [vmem:[#allocation5 + $0x10] sm:$0xf]
        %v429 = vld [vmem:[#allocation5 + $0x14] sm:$0xf]
        %v430 = vld [vmem:[#allocation5 + $0x18] sm:$0xf]
        %v431 = vld [vmem:[#allocation5 + $0x1c] sm:$0xf]
        %v432 = vld [vmem:[#allocation2 + $0x8] sm:$0xff]
        %v433 = vld [vmem:[#allocation2 + $0x10] sm:$0xff]
        %v434 = vld [vmem:[#allocation2 + $0x28] sm:$0xff]
        %v435 = vld [vmem:[#allocation2 + $0x30] sm:$0xff]
        %v436 = vld [vmem:[#allocation2 + $0x48] sm:$0xff]
        %v437 = vld [vmem:[#allocation2 + $0x50] sm:$0xff]
        %v438 = vld [vmem:[#allocation2 + $0x68] sm:$0xff]
        %v439 = vld [vmem:[#allocation2 + $0x70] sm:$0xff]
        %v440 = vld [vmem:[#allocation2 + $0x88] sm:$0xff]
        %v441 = vld [vmem:[#allocation2 + $0x90] sm:$0xff]
        %v442 = vld [vmem:[#allocation2 + $0xa8] sm:$0xff]
        %v443 = vld [vmem:[#allocation2 + $0xb0] sm:$0xff]
        %v444 = vld [vmem:[#allocation2 + $0xc8] sm:$0xff]
        %v445 = vld [vmem:[#allocation2 + $0xd0] sm:$0xff]
        %v446 = vld [vmem:[#allocation2 + $0xe8] sm:$0xff]
        %v447 = vld [vmem:[#allocation2 + $0xf0] sm:$0xff]
        %v448 = vld [vmem:[#allocation2 + $0x108] sm:$0xff]
        %v449 = vld [vmem:[#allocation2 + $0x110] sm:$0xff]
        %v450 = vld [vmem:[#allocation2 + $0x128] sm:$0xff]
        %v451 = vld [vmem:[#allocation2 + $0x130] sm:$0xff]
        %v452 = vld [vmem:[#allocation2 + $0x148] sm:$0xff]
        %v453 = vld [vmem:[#allocation2 + $0x150] sm:$0xff]
        %v454 = vld [vmem:[#allocation2 + $0x168] sm:$0xff]
        %v455 = vld [vmem:[#allocation2 + $0x170] sm:$0xff]
        %v456 = vld [vmem:[#allocation2 + $0x188] sm:$0xff]
        %v457 = vld [vmem:[#allocation2 + $0x190] sm:$0xff]
        %v458 = vld [vmem:[#allocation2 + $0x1a8] sm:$0xff]
        %v459 = vld [vmem:[#allocation2 + $0x1b0] sm:$0xff]
        %v460 = vld [vmem:[#allocation2 + $0x1c8] sm:$0xff]
        %v461 = vld [vmem:[#allocation2 + $0x1d0] sm:$0xff]
        %v462 = vld [vmem:[#allocation2 + $0x1e8] sm:$0xff]
        %v463 = vld [vmem:[#allocation2 + $0x1f0] sm:$0xff]
        %v464 = vpack.c.bf16 %v433, %v432
        %v465 = vpack.c.bf16 %v435, %v434
        %v466 = vpack.c.bf16 %v437, %v436
        %v467 = vpack.c.bf16 %v439, %v438
        %v468 = vpack.c.bf16 %v441, %v440
        %v469 = vpack.c.bf16 %v443, %v442
        %v470 = vpack.c.bf16 %v445, %v444
        %v471 = vpack.c.bf16 %v447, %v446
        %v472 = vpack.c.bf16 %v449, %v448
        %v473 = vpack.c.bf16 %v451, %v450
        %v474 = vpack.c.bf16 %v453, %v452
        %v475 = vpack.c.bf16 %v455, %v454
        %v476 = vpack.c.bf16 %v457, %v456
        %v477 = vpack.c.bf16 %v459, %v458
        %v478 = vpack.c.bf16 %v461, %v460
        %v479 = vpack.c.bf16 %v463, %v462
        %v480 = vld [vmem:[#allocation5 + $0x40] sm:$0xf]
        %v481 = vld [vmem:[#allocation5 + $0x44] sm:$0xf]
        %v482 = vld [vmem:[#allocation5 + $0x48] sm:$0xf]
        %v483 = vld [vmem:[#allocation5 + $0x4c] sm:$0xf]
        %v484 = vld [vmem:[#allocation5 + $0x50] sm:$0xf]
        %v485 = vld [vmem:[#allocation5 + $0x54] sm:$0xf]
        %v486 = vld [vmem:[#allocation5 + $0x58] sm:$0xf]
        %v487 = vld [vmem:[#allocation5 + $0x5c] sm:$0xf]
        %v496 = vunpack.c.l.b16 %v480
        %v497 = vunpack.c.l.b16 %v481
        %v498 = vunpack.c.l.b16 %v482
        %v499 = vunpack.c.l.b16 %v483
        %v500 = vunpack.c.l.b16 %v484
        %v501 = vunpack.c.l.b16 %v485
        %v502 = vunpack.c.l.b16 %v486
        %v503 = vunpack.c.l.b16 %v487
        %v504 = vpack.c.b16 %v497, %v496
        %v505 = vpack.c.b16 %v499, %v498
        %v506 = vpack.c.b16 %v501, %v500
        %v507 = vpack.c.b16 %v503, %v502
        %v513 = vsel %vm343, %v464, 0
        %v516 = vsel %vm343, %v465, 0
        %v519 = vsel %vm343, %v466, 0
        %v522 = vsel %vm343, %v467, 0
        %v525 = vsel %vm343, %v468, 0
        %v528 = vsel %vm343, %v469, 0
        %v531 = vsel %vm343, %v470, 0
        %v534 = vsel %vm343, %v471, 0
        %v537 = vsel %vm343, %v472, 0
        %v540 = vsel %vm343, %v473, 0
        %v543 = vsel %vm343, %v474, 0
        %v546 = vsel %vm343, %v475, 0
        %v549 = vsel %vm343, %v476, 0
        %v552 = vsel %vm343, %v477, 0
        %v555 = vsel %vm343, %v478, 0
        %v558 = vsel %vm343, %v479, 0
        %560 = vmatpush.bf16.msra.mxu0 0
        %561 = vmatpush.bf16.msra.mxu0 0
        %562 = vmatpush.bf16.msra.mxu0 0
        %563 = vmatpush.bf16.msra.mxu0 0
        %564 = vmatpush.bf16.msra.mxu0 %v507
        %565 = vmatpush.bf16.msra.mxu0 %v506
        %566 = vmatpush.bf16.msra.mxu0 %v505
        %567 = vmatpush.bf16.msra.mxu0 %v504
        %568 = vmatmul.bf16.gmra.mxu0 %v513
        %v569 = vpop.f32.mrf.mxu0
        %v570 = vadd.f32 0.0, %v569
        %v571 = vpop.f32.mrf.mxu0
        %v572 = vadd.f32 0.0, %v571
        %573 = vmatmul.bf16.gmra.mxu0 %v516
        %v574 = vpop.f32.mrf.mxu0
        %v575 = vadd.f32 0.0, %v574
        %v576 = vpop.f32.mrf.mxu0
        %v577 = vadd.f32 0.0, %v576
        %578 = vmatmul.bf16.gmra.mxu0 %v519
        %v579 = vpop.f32.mrf.mxu0
        %v580 = vadd.f32 0.0, %v579
        %v581 = vpop.f32.mrf.mxu0
        %v582 = vadd.f32 0.0, %v581
        %583 = vmatmul.bf16.gmra.mxu0 %v522
        %v584 = vpop.f32.mrf.mxu0
        %v585 = vadd.f32 0.0, %v584
        %v586 = vpop.f32.mrf.mxu0
        %v587 = vadd.f32 0.0, %v586
        %588 = vmatmul.bf16.gmra.mxu0 %v525
        %v589 = vpop.f32.mrf.mxu0
        %v590 = vadd.f32 0.0, %v589
        %v591 = vpop.f32.mrf.mxu0
        %v592 = vadd.f32 0.0, %v591
        %593 = vmatmul.bf16.gmra.mxu0 %v528
        %v594 = vpop.f32.mrf.mxu0
        %v595 = vadd.f32 0.0, %v594
        %v596 = vpop.f32.mrf.mxu0
        %v597 = vadd.f32 0.0, %v596
        %598 = vmatmul.bf16.gmra.mxu0 %v531
        %v599 = vpop.f32.mrf.mxu0
        %v600 = vadd.f32 0.0, %v599
        %v601 = vpop.f32.mrf.mxu0
        %v602 = vadd.f32 0.0, %v601
        %603 = vmatmul.bf16.gmra.mxu0 %v534
        %v604 = vpop.f32.mrf.mxu0
        %v605 = vadd.f32 0.0, %v604
        %v606 = vpop.f32.mrf.mxu0
        %v607 = vadd.f32 0.0, %v606
        %608 = vmatmul.bf16.gmra.mxu0 %v537
        %v609 = vpop.f32.mrf.mxu0
        %v610 = vadd.f32 0.0, %v609
        %v611 = vpop.f32.mrf.mxu0
        %v612 = vadd.f32 0.0, %v611
        %613 = vmatmul.bf16.gmra.mxu0 %v540
        %v614 = vpop.f32.mrf.mxu0
        %v615 = vadd.f32 0.0, %v614
        %v616 = vpop.f32.mrf.mxu0
        %v617 = vadd.f32 0.0, %v616
        %618 = vmatmul.bf16.gmra.mxu0 %v543
        %v619 = vpop.f32.mrf.mxu0
        %v620 = vadd.f32 0.0, %v619
        %v621 = vpop.f32.mrf.mxu0
        %v622 = vadd.f32 0.0, %v621
        %623 = vmatmul.bf16.gmra.mxu0 %v546
        %v624 = vpop.f32.mrf.mxu0
        %v625 = vadd.f32 0.0, %v624
        %v626 = vpop.f32.mrf.mxu0
        %v627 = vadd.f32 0.0, %v626
        %628 = vmatmul.bf16.gmra.mxu0 %v549
        %v629 = vpop.f32.mrf.mxu0
        %v630 = vadd.f32 0.0, %v629
        %v631 = vpop.f32.mrf.mxu0
        %v632 = vadd.f32 0.0, %v631
        %633 = vmatmul.bf16.gmra.mxu0 %v552
        %v634 = vpop.f32.mrf.mxu0
        %v635 = vadd.f32 0.0, %v634
        %v636 = vpop.f32.mrf.mxu0
        %v637 = vadd.f32 0.0, %v636
        %638 = vmatmul.bf16.gmra.mxu0 %v555
        %v639 = vpop.f32.mrf.mxu0
        %v640 = vadd.f32 0.0, %v639
        %v641 = vpop.f32.mrf.mxu0
        %v642 = vadd.f32 0.0, %v641
        %643 = vmatmul.bf16.gmra.mxu0 %v558
        %v644 = vpop.f32.mrf.mxu0
        %v645 = vadd.f32 0.0, %v644
        %v646 = vpop.f32.mrf.mxu0
        %v647 = vadd.f32 0.0, %v646
        %648 = vdwg.mxu0
        %v657 = vunpack.c.l.b16 %v424
        %v658 = vunpack.c.l.b16 %v425
        %v659 = vunpack.c.l.b16 %v426
        %v660 = vunpack.c.l.b16 %v427
        %v661 = vunpack.c.l.b16 %v428
        %v662 = vunpack.c.l.b16 %v429
        %v663 = vunpack.c.l.b16 %v430
        %v664 = vunpack.c.l.b16 %v431
        %v665 = vpack.c.b16 %v658, %v657
        %v666 = vpack.c.b16 %v660, %v659
        %v667 = vpack.c.b16 %v662, %v661
        %v668 = vpack.c.b16 %v664, %v663
        %v674 = vsel %vm343, %v408, 0
        %v677 = vsel %vm343, %v409, 0
        %v680 = vsel %vm343, %v410, 0
        %v683 = vsel %vm343, %v411, 0
        %v686 = vsel %vm343, %v412, 0
        %v689 = vsel %vm343, %v413, 0
        %v692 = vsel %vm343, %v414, 0
        %v695 = vsel %vm343, %v415, 0
        %v698 = vsel %vm343, %v416, 0
        %v701 = vsel %vm343, %v417, 0
        %v704 = vsel %vm343, %v418, 0
        %v707 = vsel %vm343, %v419, 0
        %v710 = vsel %vm343, %v420, 0
        %v713 = vsel %vm343, %v421, 0
        %v716 = vsel %vm343, %v422, 0
        %v719 = vsel %vm343, %v423, 0
        %721 = vmatpush.bf16.msra.mxu0 0
        %722 = vmatpush.bf16.msra.mxu0 0
        %723 = vmatpush.bf16.msra.mxu0 0
        %724 = vmatpush.bf16.msra.mxu0 0
        %725 = vmatpush.bf16.msra.mxu0 %v668
        %726 = vmatpush.bf16.msra.mxu0 %v667
        %727 = vmatpush.bf16.msra.mxu0 %v666
        %728 = vmatpush.bf16.msra.mxu0 %v665
        %729 = vmatmul.bf16.gmra.mxu0 %v674
        %v730 = vpop.f32.mrf.mxu0
        %v731 = vadd.f32 %v570, %v730
        %v732 = vpop.f32.mrf.mxu0
        %v733 = vadd.f32 %v572, %v732
        %734 = vmatmul.bf16.gmra.mxu0 %v677
        %v735 = vpop.f32.mrf.mxu0
        %v736 = vadd.f32 %v575, %v735
        %v737 = vpop.f32.mrf.mxu0
        %v738 = vadd.f32 %v577, %v737
        %739 = vmatmul.bf16.gmra.mxu0 %v680
        %v740 = vpop.f32.mrf.mxu0
        %v741 = vadd.f32 %v580, %v740
        %v742 = vpop.f32.mrf.mxu0
        %v743 = vadd.f32 %v582, %v742
        %744 = vmatmul.bf16.gmra.mxu0 %v683
        %v745 = vpop.f32.mrf.mxu0
        %v746 = vadd.f32 %v585, %v745
        %v747 = vpop.f32.mrf.mxu0
        %v748 = vadd.f32 %v587, %v747
        %749 = vmatmul.bf16.gmra.mxu0 %v686
        %v750 = vpop.f32.mrf.mxu0
        %v751 = vadd.f32 %v590, %v750
        %v752 = vpop.f32.mrf.mxu0
        %v753 = vadd.f32 %v592, %v752
        %754 = vmatmul.bf16.gmra.mxu0 %v689
        %v755 = vpop.f32.mrf.mxu0
        %v756 = vadd.f32 %v595, %v755
        %v757 = vpop.f32.mrf.mxu0
        %v758 = vadd.f32 %v597, %v757
        %759 = vmatmul.bf16.gmra.mxu0 %v692
        %v760 = vpop.f32.mrf.mxu0
        %v761 = vadd.f32 %v600, %v760
        %v762 = vpop.f32.mrf.mxu0
        %v763 = vadd.f32 %v602, %v762
        %764 = vmatmul.bf16.gmra.mxu0 %v695
        %v765 = vpop.f32.mrf.mxu0
        %v766 = vadd.f32 %v605, %v765
        %v767 = vpop.f32.mrf.mxu0
        %v768 = vadd.f32 %v607, %v767
        %769 = vmatmul.bf16.gmra.mxu0 %v698
        %v770 = vpop.f32.mrf.mxu0
        %v771 = vadd.f32 %v610, %v770
        %v772 = vpop.f32.mrf.mxu0
        %v773 = vadd.f32 %v612, %v772
        %774 = vmatmul.bf16.gmra.mxu0 %v701
        %v775 = vpop.f32.mrf.mxu0
        %v776 = vadd.f32 %v615, %v775
        %v777 = vpop.f32.mrf.mxu0
        %v778 = vadd.f32 %v617, %v777
        %779 = vmatmul.bf16.gmra.mxu0 %v704
        %v780 = vpop.f32.mrf.mxu0
        %v781 = vadd.f32 %v620, %v780
        %v782 = vpop.f32.mrf.mxu0
        %v783 = vadd.f32 %v622, %v782
        %784 = vmatmul.bf16.gmra.mxu0 %v707
        %v785 = vpop.f32.mrf.mxu0
        %v786 = vadd.f32 %v625, %v785
        %v787 = vpop.f32.mrf.mxu0
        %v788 = vadd.f32 %v627, %v787
        %789 = vmatmul.bf16.gmra.mxu0 %v710
        %v790 = vpop.f32.mrf.mxu0
        %v791 = vadd.f32 %v630, %v790
        %v792 = vpop.f32.mrf.mxu0
        %v793 = vadd.f32 %v632, %v792
        %794 = vmatmul.bf16.gmra.mxu0 %v713
        %v795 = vpop.f32.mrf.mxu0
        %v796 = vadd.f32 %v635, %v795
        %v797 = vpop.f32.mrf.mxu0
        %v798 = vadd.f32 %v637, %v797
        %799 = vmatmul.bf16.gmra.mxu0 %v716
        %v800 = vpop.f32.mrf.mxu0
        %v801 = vadd.f32 %v640, %v800
        %v802 = vpop.f32.mrf.mxu0
        %v803 = vadd.f32 %v642, %v802
        %804 = vmatmul.bf16.gmra.mxu0 %v719
        %v805 = vpop.f32.mrf.mxu0
        %v806 = vadd.f32 %v645, %v805
        %v807 = vpop.f32.mrf.mxu0
        %v808 = vadd.f32 %v647, %v807
        %809 = vdwg.mxu0
        %v810 = vld [vmem:[#allocation2 + $0x9] sm:$0xff]
        %v811 = vld [vmem:[#allocation2 + $0x11] sm:$0xff]
        %v812 = vld [vmem:[#allocation2 + $0x29] sm:$0xff]
        %v813 = vld [vmem:[#allocation2 + $0x31] sm:$0xff]
        %v814 = vld [vmem:[#allocation2 + $0x49] sm:$0xff]
        %v815 = vld [vmem:[#allocation2 + $0x51] sm:$0xff]
        %v816 = vld [vmem:[#allocation2 + $0x69] sm:$0xff]
        %v817 = vld [vmem:[#allocation2 + $0x71] sm:$0xff]
        %v818 = vld [vmem:[#allocation2 + $0x89] sm:$0xff]
        %v819 = vld [vmem:[#allocation2 + $0x91] sm:$0xff]
        %v820 = vld [vmem:[#allocation2 + $0xa9] sm:$0xff]
        %v821 = vld [vmem:[#allocation2 + $0xb1] sm:$0xff]
        %v822 = vld [vmem:[#allocation2 + $0xc9] sm:$0xff]
        %v823 = vld [vmem:[#allocation2 + $0xd1] sm:$0xff]
        %v824 = vld [vmem:[#allocation2 + $0xe9] sm:$0xff]
        %v825 = vld [vmem:[#allocation2 + $0xf1] sm:$0xff]
        %v826 = vld [vmem:[#allocation2 + $0x109] sm:$0xff]
        %v827 = vld [vmem:[#allocation2 + $0x111] sm:$0xff]
        %v828 = vld [vmem:[#allocation2 + $0x129] sm:$0xff]
        %v829 = vld [vmem:[#allocation2 + $0x131] sm:$0xff]
        %v830 = vld [vmem:[#allocation2 + $0x149] sm:$0xff]
        %v831 = vld [vmem:[#allocation2 + $0x151] sm:$0xff]
        %v832 = vld [vmem:[#allocation2 + $0x169] sm:$0xff]
        %v833 = vld [vmem:[#allocation2 + $0x171] sm:$0xff]
        %v834 = vld [vmem:[#allocation2 + $0x189] sm:$0xff]
        %v835 = vld [vmem:[#allocation2 + $0x191] sm:$0xff]
        %v836 = vld [vmem:[#allocation2 + $0x1a9] sm:$0xff]
        %v837 = vld [vmem:[#allocation2 + $0x1b1] sm:$0xff]
        %v838 = vld [vmem:[#allocation2 + $0x1c9] sm:$0xff]
        %v839 = vld [vmem:[#allocation2 + $0x1d1] sm:$0xff]
        %v840 = vld [vmem:[#allocation2 + $0x1e9] sm:$0xff]
        %v841 = vld [vmem:[#allocation2 + $0x1f1] sm:$0xff]
        %v842 = vpack.c.bf16 %v811, %v810
        %v843 = vpack.c.bf16 %v813, %v812
        %v844 = vpack.c.bf16 %v815, %v814
        %v845 = vpack.c.bf16 %v817, %v816
        %v846 = vpack.c.bf16 %v819, %v818
        %v847 = vpack.c.bf16 %v821, %v820
        %v848 = vpack.c.bf16 %v823, %v822
        %v849 = vpack.c.bf16 %v825, %v824
        %v850 = vpack.c.bf16 %v827, %v826
        %v851 = vpack.c.bf16 %v829, %v828
        %v852 = vpack.c.bf16 %v831, %v830
        %v853 = vpack.c.bf16 %v833, %v832
        %v854 = vpack.c.bf16 %v835, %v834
        %v855 = vpack.c.bf16 %v837, %v836
        %v856 = vpack.c.bf16 %v839, %v838
        %v857 = vpack.c.bf16 %v841, %v840
        %v858 = vld [vmem:[#allocation5 + $0x80] sm:$0xf]
        %v859 = vld [vmem:[#allocation5 + $0x84] sm:$0xf]
        %v860 = vld [vmem:[#allocation5 + $0x88] sm:$0xf]
        %v861 = vld [vmem:[#allocation5 + $0x8c] sm:$0xf]
        %v862 = vld [vmem:[#allocation5 + $0x90] sm:$0xf]
        %v863 = vld [vmem:[#allocation5 + $0x94] sm:$0xf]
        %v864 = vld [vmem:[#allocation5 + $0x98] sm:$0xf]
        %v865 = vld [vmem:[#allocation5 + $0x9c] sm:$0xf]
        %v874 = vunpack.c.l.b16 %v858
        %v875 = vunpack.c.l.b16 %v859
        %v876 = vunpack.c.l.b16 %v860
        %v877 = vunpack.c.l.b16 %v861
        %v878 = vunpack.c.l.b16 %v862
        %v879 = vunpack.c.l.b16 %v863
        %v880 = vunpack.c.l.b16 %v864
        %v881 = vunpack.c.l.b16 %v865
        %v882 = vpack.c.b16 %v875, %v874
        %v883 = vpack.c.b16 %v877, %v876
        %v884 = vpack.c.b16 %v879, %v878
        %v885 = vpack.c.b16 %v881, %v880
        %v891 = vsel %vm343, %v842, 0
        %v894 = vsel %vm343, %v843, 0
        %v897 = vsel %vm343, %v844, 0
        %v900 = vsel %vm343, %v845, 0
        %v903 = vsel %vm343, %v846, 0
        %v906 = vsel %vm343, %v847, 0
        %v909 = vsel %vm343, %v848, 0
        %v912 = vsel %vm343, %v849, 0
        %v915 = vsel %vm343, %v850, 0
        %v918 = vsel %vm343, %v851, 0
        %v921 = vsel %vm343, %v852, 0
        %v924 = vsel %vm343, %v853, 0
        %v927 = vsel %vm343, %v854, 0
        %v930 = vsel %vm343, %v855, 0
        %v933 = vsel %vm343, %v856, 0
        %v936 = vsel %vm343, %v857, 0
        %938 = vmatpush.bf16.msra.mxu0 0
        %939 = vmatpush.bf16.msra.mxu0 0
        %940 = vmatpush.bf16.msra.mxu0 0
        %941 = vmatpush.bf16.msra.mxu0 0
        %942 = vmatpush.bf16.msra.mxu0 %v885
        %943 = vmatpush.bf16.msra.mxu0 %v884
        %944 = vmatpush.bf16.msra.mxu0 %v883
        %945 = vmatpush.bf16.msra.mxu0 %v882
        %946 = vmatmul.bf16.gmra.mxu0 %v891
        %v947 = vpop.f32.mrf.mxu0
        %v948 = vadd.f32 0.0, %v947
        %v949 = vpop.f32.mrf.mxu0
        %v950 = vadd.f32 0.0, %v949
        %951 = vmatmul.bf16.gmra.mxu0 %v894
        %v952 = vpop.f32.mrf.mxu0
        %v953 = vadd.f32 0.0, %v952
        %v954 = vpop.f32.mrf.mxu0
        %v955 = vadd.f32 0.0, %v954
        %956 = vmatmul.bf16.gmra.mxu0 %v897
        %v957 = vpop.f32.mrf.mxu0
        %v958 = vadd.f32 0.0, %v957
        %v959 = vpop.f32.mrf.mxu0
        %v960 = vadd.f32 0.0, %v959
        %961 = vmatmul.bf16.gmra.mxu0 %v900
        %v962 = vpop.f32.mrf.mxu0
        %v963 = vadd.f32 0.0, %v962
        %v964 = vpop.f32.mrf.mxu0
        %v965 = vadd.f32 0.0, %v964
        %966 = vmatmul.bf16.gmra.mxu0 %v903
        %v967 = vpop.f32.mrf.mxu0
        %v968 = vadd.f32 0.0, %v967
        %v969 = vpop.f32.mrf.mxu0
        %v970 = vadd.f32 0.0, %v969
        %971 = vmatmul.bf16.gmra.mxu0 %v906
        %v972 = vpop.f32.mrf.mxu0
        %v973 = vadd.f32 0.0, %v972
        %v974 = vpop.f32.mrf.mxu0
        %v975 = vadd.f32 0.0, %v974
        %976 = vmatmul.bf16.gmra.mxu0 %v909
        %v977 = vpop.f32.mrf.mxu0
        %v978 = vadd.f32 0.0, %v977
        %v979 = vpop.f32.mrf.mxu0
        %v980 = vadd.f32 0.0, %v979
        %981 = vmatmul.bf16.gmra.mxu0 %v912
        %v982 = vpop.f32.mrf.mxu0
        %v983 = vadd.f32 0.0, %v982
        %v984 = vpop.f32.mrf.mxu0
        %v985 = vadd.f32 0.0, %v984
        %986 = vmatmul.bf16.gmra.mxu0 %v915
        %v987 = vpop.f32.mrf.mxu0
        %v988 = vadd.f32 0.0, %v987
        %v989 = vpop.f32.mrf.mxu0
        %v990 = vadd.f32 0.0, %v989
        %991 = vmatmul.bf16.gmra.mxu0 %v918
        %v992 = vpop.f32.mrf.mxu0
        %v993 = vadd.f32 0.0, %v992
        %v994 = vpop.f32.mrf.mxu0
        %v995 = vadd.f32 0.0, %v994
        %996 = vmatmul.bf16.gmra.mxu0 %v921
        %v997 = vpop.f32.mrf.mxu0
        %v998 = vadd.f32 0.0, %v997
        %v999 = vpop.f32.mrf.mxu0
        %v1000 = vadd.f32 0.0, %v999
        %1001 = vmatmul.bf16.gmra.mxu0 %v924
        %v1002 = vpop.f32.mrf.mxu0
        %v1003 = vadd.f32 0.0, %v1002
        %v1004 = vpop.f32.mrf.mxu0
        %v1005 = vadd.f32 0.0, %v1004
        %1006 = vmatmul.bf16.gmra.mxu0 %v927
        %v1007 = vpop.f32.mrf.mxu0
        %v1008 = vadd.f32 0.0, %v1007
        %v1009 = vpop.f32.mrf.mxu0
        %v1010 = vadd.f32 0.0, %v1009
        %1011 = vmatmul.bf16.gmra.mxu0 %v930
        %v1012 = vpop.f32.mrf.mxu0
        %v1013 = vadd.f32 0.0, %v1012
        %v1014 = vpop.f32.mrf.mxu0
        %v1015 = vadd.f32 0.0, %v1014
        %1016 = vmatmul.bf16.gmra.mxu0 %v933
        %v1017 = vpop.f32.mrf.mxu0
        %v1018 = vadd.f32 0.0, %v1017
        %v1019 = vpop.f32.mrf.mxu0
        %v1020 = vadd.f32 0.0, %v1019
        %1021 = vmatmul.bf16.gmra.mxu0 %v936
        %v1022 = vpop.f32.mrf.mxu0
        %v1023 = vadd.f32 0.0, %v1022
        %v1024 = vpop.f32.mrf.mxu0
        %v1025 = vadd.f32 0.0, %v1024
        %1026 = vdwg.mxu0
        %v1027 = vadd.f32 %v731, %v948
        %v1028 = vadd.f32 %v733, %v950
        %v1029 = vadd.f32 %v736, %v953
        %v1030 = vadd.f32 %v738, %v955
        %v1031 = vadd.f32 %v741, %v958
        %v1032 = vadd.f32 %v743, %v960
        %v1033 = vadd.f32 %v746, %v963
        %v1034 = vadd.f32 %v748, %v965
        %v1035 = vadd.f32 %v751, %v968
        %v1036 = vadd.f32 %v753, %v970
        %v1037 = vadd.f32 %v756, %v973
        %v1038 = vadd.f32 %v758, %v975
        %v1039 = vadd.f32 %v761, %v978
        %v1040 = vadd.f32 %v763, %v980
        %v1041 = vadd.f32 %v766, %v983
        %v1042 = vadd.f32 %v768, %v985
        %v1043 = vadd.f32 %v771, %v988
        %v1044 = vadd.f32 %v773, %v990
        %v1045 = vadd.f32 %v776, %v993
        %v1046 = vadd.f32 %v778, %v995
        %v1047 = vadd.f32 %v781, %v998
        %v1048 = vadd.f32 %v783, %v1000
        %v1049 = vadd.f32 %v786, %v1003
        %v1050 = vadd.f32 %v788, %v1005
        %v1051 = vadd.f32 %v791, %v1008
        %v1052 = vadd.f32 %v793, %v1010
        %v1053 = vadd.f32 %v796, %v1013
        %v1054 = vadd.f32 %v798, %v1015
        %v1055 = vadd.f32 %v801, %v1018
        %v1056 = vadd.f32 %v803, %v1020
        %v1057 = vadd.f32 %v806, %v1023
        %v1058 = vadd.f32 %v808, %v1025
        %v1059 = vld [vmem:[%s342 + $0x7] sm:$0xff]
        %v1060 = vld [vmem:[%s342 + $0xf] sm:$0xff]
        %v1061 = vld [vmem:[%s342 + $0x27] sm:$0xff]
        %v1062 = vld [vmem:[%s342 + $0x2f] sm:$0xff]
        %v1063 = vld [vmem:[%s342 + $0x47] sm:$0xff]
        %v1064 = vld [vmem:[%s342 + $0x4f] sm:$0xff]
        %v1065 = vld [vmem:[%s342 + $0x67] sm:$0xff]
        %v1066 = vld [vmem:[%s342 + $0x6f] sm:$0xff]
        %v1067 = vld [vmem:[%s342 + $0x87] sm:$0xff]
        %v1068 = vld [vmem:[%s342 + $0x8f] sm:$0xff]
        %v1069 = vld [vmem:[%s342 + $0xa7] sm:$0xff]
        %v1070 = vld [vmem:[%s342 + $0xaf] sm:$0xff]
        %v1071 = vld [vmem:[%s342 + $0xc7] sm:$0xff]
        %v1072 = vld [vmem:[%s342 + $0xcf] sm:$0xff]
        %v1073 = vld [vmem:[%s342 + $0xe7] sm:$0xff]
        %v1074 = vld [vmem:[%s342 + $0xef] sm:$0xff]
        %v1075 = vld [vmem:[%s342 + $0x107] sm:$0xff]
        %v1076 = vld [vmem:[%s342 + $0x10f] sm:$0xff]
        %v1077 = vld [vmem:[%s342 + $0x127] sm:$0xff]
        %v1078 = vld [vmem:[%s342 + $0x12f] sm:$0xff]
        %v1079 = vld [vmem:[%s342 + $0x147] sm:$0xff]
        %v1080 = vld [vmem:[%s342 + $0x14f] sm:$0xff]
        %v1081 = vld [vmem:[%s342 + $0x167] sm:$0xff]
        %v1082 = vld [vmem:[%s342 + $0x16f] sm:$0xff]
        %v1083 = vld [vmem:[%s342 + $0x187] sm:$0xff]
        %v1084 = vld [vmem:[%s342 + $0x18f] sm:$0xff]
        %v1085 = vld [vmem:[%s342 + $0x1a7] sm:$0xff]
        %v1086 = vld [vmem:[%s342 + $0x1af] sm:$0xff]
        %v1087 = vld [vmem:[%s342 + $0x1c7] sm:$0xff]
        %v1088 = vld [vmem:[%s342 + $0x1cf] sm:$0xff]
        %v1089 = vld [vmem:[%s342 + $0x1e7] sm:$0xff]
        %v1090 = vld [vmem:[%s342 + $0x1ef] sm:$0xff]
        %v1091 = vpack.c.bf16 %v1060, %v1059
        %v1092 = vpack.c.bf16 %v1062, %v1061
        %v1093 = vpack.c.bf16 %v1064, %v1063
        %v1094 = vpack.c.bf16 %v1066, %v1065
        %v1095 = vpack.c.bf16 %v1068, %v1067
        %v1096 = vpack.c.bf16 %v1070, %v1069
        %v1097 = vpack.c.bf16 %v1072, %v1071
        %v1098 = vpack.c.bf16 %v1074, %v1073
        %v1099 = vpack.c.bf16 %v1076, %v1075
        %v1100 = vpack.c.bf16 %v1078, %v1077
        %v1101 = vpack.c.bf16 %v1080, %v1079
        %v1102 = vpack.c.bf16 %v1082, %v1081
        %v1103 = vpack.c.bf16 %v1084, %v1083
        %v1104 = vpack.c.bf16 %v1086, %v1085
        %v1105 = vpack.c.bf16 %v1088, %v1087
        %v1106 = vpack.c.bf16 %v1090, %v1089
        %v1107 = vld [vmem:[#allocation5 + $0xc0] sm:$0xf]
        %v1108 = vld [vmem:[#allocation5 + $0xc4] sm:$0xf]
        %v1109 = vld [vmem:[#allocation5 + $0xc8] sm:$0xf]
        %v1110 = vld [vmem:[#allocation5 + $0xcc] sm:$0xf]
        %v1111 = vld [vmem:[#allocation5 + $0xd0] sm:$0xf]
        %v1112 = vld [vmem:[#allocation5 + $0xd4] sm:$0xf]
        %v1113 = vld [vmem:[#allocation5 + $0xd8] sm:$0xf]
        %v1114 = vld [vmem:[#allocation5 + $0xdc] sm:$0xf]
        %v1123 = vunpack.c.l.b16 %v1107
        %v1124 = vunpack.c.l.b16 %v1108
        %v1125 = vunpack.c.l.b16 %v1109
        %v1126 = vunpack.c.l.b16 %v1110
        %v1127 = vunpack.c.l.b16 %v1111
        %v1128 = vunpack.c.l.b16 %v1112
        %v1129 = vunpack.c.l.b16 %v1113
        %v1130 = vunpack.c.l.b16 %v1114
        %v1131 = vpack.c.b16 %v1124, %v1123
        %v1132 = vpack.c.b16 %v1126, %v1125
        %v1133 = vpack.c.b16 %v1128, %v1127
        %v1134 = vpack.c.b16 %v1130, %v1129
        %v1140 = vsel %vm343, %v1091, 0
        %v1143 = vsel %vm343, %v1092, 0
        %v1146 = vsel %vm343, %v1093, 0
        %v1149 = vsel %vm343, %v1094, 0
        %v1152 = vsel %vm343, %v1095, 0
        %v1155 = vsel %vm343, %v1096, 0
        %v1158 = vsel %vm343, %v1097, 0
        %v1161 = vsel %vm343, %v1098, 0
        %v1164 = vsel %vm343, %v1099, 0
        %v1167 = vsel %vm343, %v1100, 0
        %v1170 = vsel %vm343, %v1101, 0
        %v1173 = vsel %vm343, %v1102, 0
        %v1176 = vsel %vm343, %v1103, 0
        %v1179 = vsel %vm343, %v1104, 0
        %v1182 = vsel %vm343, %v1105, 0
        %v1185 = vsel %vm343, %v1106, 0
        %1187 = vmatpush.bf16.msra.mxu0 0
        %1188 = vmatpush.bf16.msra.mxu0 0
        %1189 = vmatpush.bf16.msra.mxu0 0
        %1190 = vmatpush.bf16.msra.mxu0 0
        %1191 = vmatpush.bf16.msra.mxu0 %v1134
        %1192 = vmatpush.bf16.msra.mxu0 %v1133
        %1193 = vmatpush.bf16.msra.mxu0 %v1132
        %1194 = vmatpush.bf16.msra.mxu0 %v1131
        %1195 = vmatmul.bf16.gmra.mxu0 %v1140
        %v1196 = vpop.f32.mrf.mxu0
        %v1197 = vadd.f32 0.0, %v1196
        %v1198 = vpop.f32.mrf.mxu0
        %v1199 = vadd.f32 0.0, %v1198
        %1200 = vmatmul.bf16.gmra.mxu0 %v1143
        %v1201 = vpop.f32.mrf.mxu0
        %v1202 = vadd.f32 0.0, %v1201
        %v1203 = vpop.f32.mrf.mxu0
        %v1204 = vadd.f32 0.0, %v1203
        %1205 = vmatmul.bf16.gmra.mxu0 %v1146
        %v1206 = vpop.f32.mrf.mxu0
        %v1207 = vadd.f32 0.0, %v1206
        %v1208 = vpop.f32.mrf.mxu0
        %v1209 = vadd.f32 0.0, %v1208
        %1210 = vmatmul.bf16.gmra.mxu0 %v1149
        %v1211 = vpop.f32.mrf.mxu0
        %v1212 = vadd.f32 0.0, %v1211
        %v1213 = vpop.f32.mrf.mxu0
        %v1214 = vadd.f32 0.0, %v1213
        %1215 = vmatmul.bf16.gmra.mxu0 %v1152
        %v1216 = vpop.f32.mrf.mxu0
        %v1217 = vadd.f32 0.0, %v1216
        %v1218 = vpop.f32.mrf.mxu0
        %v1219 = vadd.f32 0.0, %v1218
        %1220 = vmatmul.bf16.gmra.mxu0 %v1155
        %v1221 = vpop.f32.mrf.mxu0
        %v1222 = vadd.f32 0.0, %v1221
        %v1223 = vpop.f32.mrf.mxu0
        %v1224 = vadd.f32 0.0, %v1223
        %1225 = vmatmul.bf16.gmra.mxu0 %v1158
        %v1226 = vpop.f32.mrf.mxu0
        %v1227 = vadd.f32 0.0, %v1226
        %v1228 = vpop.f32.mrf.mxu0
        %v1229 = vadd.f32 0.0, %v1228
        %1230 = vmatmul.bf16.gmra.mxu0 %v1161
        %v1231 = vpop.f32.mrf.mxu0
        %v1232 = vadd.f32 0.0, %v1231
        %v1233 = vpop.f32.mrf.mxu0
        %v1234 = vadd.f32 0.0, %v1233
        %1235 = vmatmul.bf16.gmra.mxu0 %v1164
        %v1236 = vpop.f32.mrf.mxu0
        %v1237 = vadd.f32 0.0, %v1236
        %v1238 = vpop.f32.mrf.mxu0
        %v1239 = vadd.f32 0.0, %v1238
        %1240 = vmatmul.bf16.gmra.mxu0 %v1167
        %v1241 = vpop.f32.mrf.mxu0
        %v1242 = vadd.f32 0.0, %v1241
        %v1243 = vpop.f32.mrf.mxu0
        %v1244 = vadd.f32 0.0, %v1243
        %1245 = vmatmul.bf16.gmra.mxu0 %v1170
        %v1246 = vpop.f32.mrf.mxu0
        %v1247 = vadd.f32 0.0, %v1246
        %v1248 = vpop.f32.mrf.mxu0
        %v1249 = vadd.f32 0.0, %v1248
        %1250 = vmatmul.bf16.gmra.mxu0 %v1173
        %v1251 = vpop.f32.mrf.mxu0
        %v1252 = vadd.f32 0.0, %v1251
        %v1253 = vpop.f32.mrf.mxu0
        %v1254 = vadd.f32 0.0, %v1253
        %1255 = vmatmul.bf16.gmra.mxu0 %v1176
        %v1256 = vpop.f32.mrf.mxu0
        %v1257 = vadd.f32 0.0, %v1256
        %v1258 = vpop.f32.mrf.mxu0
        %v1259 = vadd.f32 0.0, %v1258
        %1260 = vmatmul.bf16.gmra.mxu0 %v1179
        %v1261 = vpop.f32.mrf.mxu0
        %v1262 = vadd.f32 0.0, %v1261
        %v1263 = vpop.f32.mrf.mxu0
        %v1264 = vadd.f32 0.0, %v1263
        %1265 = vmatmul.bf16.gmra.mxu0 %v1182
        %v1266 = vpop.f32.mrf.mxu0
        %v1267 = vadd.f32 0.0, %v1266
        %v1268 = vpop.f32.mrf.mxu0
        %v1269 = vadd.f32 0.0, %v1268
        %1270 = vmatmul.bf16.gmra.mxu0 %v1185
        %v1271 = vpop.f32.mrf.mxu0
        %v1272 = vadd.f32 0.0, %v1271
        %v1273 = vpop.f32.mrf.mxu0
        %v1274 = vadd.f32 0.0, %v1273
        %1275 = vdwg.mxu0
        %v1276 = vadd.f32 %v1027, %v1197
        %v1277 = vadd.f32 %v1028, %v1199
        %v1278 = vadd.f32 %v1029, %v1202
        %v1279 = vadd.f32 %v1030, %v1204
        %v1280 = vadd.f32 %v1031, %v1207
        %v1281 = vadd.f32 %v1032, %v1209
        %v1282 = vadd.f32 %v1033, %v1212
        %v1283 = vadd.f32 %v1034, %v1214
        %v1284 = vadd.f32 %v1035, %v1217
        %v1285 = vadd.f32 %v1036, %v1219
        %v1286 = vadd.f32 %v1037, %v1222
        %v1287 = vadd.f32 %v1038, %v1224
        %v1288 = vadd.f32 %v1039, %v1227
        %v1289 = vadd.f32 %v1040, %v1229
        %v1290 = vadd.f32 %v1041, %v1232
        %v1291 = vadd.f32 %v1042, %v1234
        %v1292 = vadd.f32 %v1043, %v1237
        %v1293 = vadd.f32 %v1044, %v1239
        %v1294 = vadd.f32 %v1045, %v1242
        %v1295 = vadd.f32 %v1046, %v1244
        %v1296 = vadd.f32 %v1047, %v1247
        %v1297 = vadd.f32 %v1048, %v1249
        %v1298 = vadd.f32 %v1049, %v1252
        %v1299 = vadd.f32 %v1050, %v1254
        %v1300 = vadd.f32 %v1051, %v1257
        %v1301 = vadd.f32 %v1052, %v1259
        %v1302 = vadd.f32 %v1053, %v1262
        %v1303 = vadd.f32 %v1054, %v1264
        %v1304 = vadd.f32 %v1055, %v1267
        %v1305 = vadd.f32 %v1056, %v1269
        %v1306 = vadd.f32 %v1057, %v1272
        %v1307 = vadd.f32 %v1058, %v1274
        %v1308 = vld [vmem:[%s342 + $0x8] sm:$0xff]
        %v1309 = vld [vmem:[%s342 + $0x10] sm:$0xff]
        %v1310 = vld [vmem:[%s342 + $0x28] sm:$0xff]
        %v1311 = vld [vmem:[%s342 + $0x30] sm:$0xff]
        %v1312 = vld [vmem:[%s342 + $0x48] sm:$0xff]
        %v1313 = vld [vmem:[%s342 + $0x50] sm:$0xff]
        %v1314 = vld [vmem:[%s342 + $0x68] sm:$0xff]
        %v1315 = vld [vmem:[%s342 + $0x70] sm:$0xff]
        %v1316 = vld [vmem:[%s342 + $0x88] sm:$0xff]
        %v1317 = vld [vmem:[%s342 + $0x90] sm:$0xff]
        %v1318 = vld [vmem:[%s342 + $0xa8] sm:$0xff]
        %v1319 = vld [vmem:[%s342 + $0xb0] sm:$0xff]
        %v1320 = vld [vmem:[%s342 + $0xc8] sm:$0xff]
        %v1321 = vld [vmem:[%s342 + $0xd0] sm:$0xff]
        %v1322 = vld [vmem:[%s342 + $0xe8] sm:$0xff]
        %v1323 = vld [vmem:[%s342 + $0xf0] sm:$0xff]
        %v1324 = vld [vmem:[%s342 + $0x108] sm:$0xff]
        %v1325 = vld [vmem:[%s342 + $0x110] sm:$0xff]
        %v1326 = vld [vmem:[%s342 + $0x128] sm:$0xff]
        %v1327 = vld [vmem:[%s342 + $0x130] sm:$0xff]
        %v1328 = vld [vmem:[%s342 + $0x148] sm:$0xff]
        %v1329 = vld [vmem:[%s342 + $0x150] sm:$0xff]
        %v1330 = vld [vmem:[%s342 + $0x168] sm:$0xff]
        %v1331 = vld [vmem:[%s342 + $0x170] sm:$0xff]
        %v1332 = vld [vmem:[%s342 + $0x188] sm:$0xff]
        %v1333 = vld [vmem:[%s342 + $0x190] sm:$0xff]
        %v1334 = vld [vmem:[%s342 + $0x1a8] sm:$0xff]
        %v1335 = vld [vmem:[%s342 + $0x1b0] sm:$0xff]
        %v1336 = vld [vmem:[%s342 + $0x1c8] sm:$0xff]
        %v1337 = vld [vmem:[%s342 + $0x1d0] sm:$0xff]
        %v1338 = vld [vmem:[%s342 + $0x1e8] sm:$0xff]
        %v1339 = vld [vmem:[%s342 + $0x1f0] sm:$0xff]
        %v1340 = vpack.c.bf16 %v1309, %v1308
        %v1341 = vpack.c.bf16 %v1311, %v1310
        %v1342 = vpack.c.bf16 %v1313, %v1312
        %v1343 = vpack.c.bf16 %v1315, %v1314
        %v1344 = vpack.c.bf16 %v1317, %v1316
        %v1345 = vpack.c.bf16 %v1319, %v1318
        %v1346 = vpack.c.bf16 %v1321, %v1320
        %v1347 = vpack.c.bf16 %v1323, %v1322
        %v1348 = vpack.c.bf16 %v1325, %v1324
        %v1349 = vpack.c.bf16 %v1327, %v1326
        %v1350 = vpack.c.bf16 %v1329, %v1328
        %v1351 = vpack.c.bf16 %v1331, %v1330
        %v1352 = vpack.c.bf16 %v1333, %v1332
        %v1353 = vpack.c.bf16 %v1335, %v1334
        %v1354 = vpack.c.bf16 %v1337, %v1336
        %v1355 = vpack.c.bf16 %v1339, %v1338
        %v1356 = vld [vmem:[#allocation5 + $0x100] sm:$0xf]
        %v1357 = vld [vmem:[#allocation5 + $0x104] sm:$0xf]
        %v1358 = vld [vmem:[#allocation5 + $0x108] sm:$0xf]
        %v1359 = vld [vmem:[#allocation5 + $0x10c] sm:$0xf]
        %v1360 = vld [vmem:[#allocation5 + $0x110] sm:$0xf]
        %v1361 = vld [vmem:[#allocation5 + $0x114] sm:$0xf]
        %v1362 = vld [vmem:[#allocation5 + $0x118] sm:$0xf]
        %v1363 = vld [vmem:[#allocation5 + $0x11c] sm:$0xf]
        %v1372 = vunpack.c.l.b16 %v1356
        %v1373 = vunpack.c.l.b16 %v1357
        %v1374 = vunpack.c.l.b16 %v1358
        %v1375 = vunpack.c.l.b16 %v1359
        %v1376 = vunpack.c.l.b16 %v1360
        %v1377 = vunpack.c.l.b16 %v1361
        %v1378 = vunpack.c.l.b16 %v1362
        %v1379 = vunpack.c.l.b16 %v1363
        %v1380 = vpack.c.b16 %v1373, %v1372
        %v1381 = vpack.c.b16 %v1375, %v1374
        %v1382 = vpack.c.b16 %v1377, %v1376
        %v1383 = vpack.c.b16 %v1379, %v1378
        %v1389 = vsel %vm343, %v1340, 0
        %v1392 = vsel %vm343, %v1341, 0
        %v1395 = vsel %vm343, %v1342, 0
        %v1398 = vsel %vm343, %v1343, 0
        %v1401 = vsel %vm343, %v1344, 0
        %v1404 = vsel %vm343, %v1345, 0
        %v1407 = vsel %vm343, %v1346, 0
        %v1410 = vsel %vm343, %v1347, 0
        %v1413 = vsel %vm343, %v1348, 0
        %v1416 = vsel %vm343, %v1349, 0
        %v1419 = vsel %vm343, %v1350, 0
        %v1422 = vsel %vm343, %v1351, 0
        %v1425 = vsel %vm343, %v1352, 0
        %v1428 = vsel %vm343, %v1353, 0
        %v1431 = vsel %vm343, %v1354, 0
        %v1434 = vsel %vm343, %v1355, 0
        %1436 = vmatpush.bf16.msra.mxu0 0
        %1437 = vmatpush.bf16.msra.mxu0 0
        %1438 = vmatpush.bf16.msra.mxu0 0
        %1439 = vmatpush.bf16.msra.mxu0 0
        %1440 = vmatpush.bf16.msra.mxu0 %v1383
        %1441 = vmatpush.bf16.msra.mxu0 %v1382
        %1442 = vmatpush.bf16.msra.mxu0 %v1381
        %1443 = vmatpush.bf16.msra.mxu0 %v1380
        %1444 = vmatmul.bf16.gmra.mxu0 %v1389
        %v1445 = vpop.f32.mrf.mxu0
        %v1446 = vadd.f32 0.0, %v1445
        %v1447 = vpop.f32.mrf.mxu0
        %v1448 = vadd.f32 0.0, %v1447
        %1449 = vmatmul.bf16.gmra.mxu0 %v1392
        %v1450 = vpop.f32.mrf.mxu0
        %v1451 = vadd.f32 0.0, %v1450
        %v1452 = vpop.f32.mrf.mxu0
        %v1453 = vadd.f32 0.0, %v1452
        %1454 = vmatmul.bf16.gmra.mxu0 %v1395
        %v1455 = vpop.f32.mrf.mxu0
        %v1456 = vadd.f32 0.0, %v1455
        %v1457 = vpop.f32.mrf.mxu0
        %v1458 = vadd.f32 0.0, %v1457
        %1459 = vmatmul.bf16.gmra.mxu0 %v1398
        %v1460 = vpop.f32.mrf.mxu0
        %v1461 = vadd.f32 0.0, %v1460
        %v1462 = vpop.f32.mrf.mxu0
        %v1463 = vadd.f32 0.0, %v1462
        %1464 = vmatmul.bf16.gmra.mxu0 %v1401
        %v1465 = vpop.f32.mrf.mxu0
        %v1466 = vadd.f32 0.0, %v1465
        %v1467 = vpop.f32.mrf.mxu0
        %v1468 = vadd.f32 0.0, %v1467
        %1469 = vmatmul.bf16.gmra.mxu0 %v1404
        %v1470 = vpop.f32.mrf.mxu0
        %v1471 = vadd.f32 0.0, %v1470
        %v1472 = vpop.f32.mrf.mxu0
        %v1473 = vadd.f32 0.0, %v1472
        %1474 = vmatmul.bf16.gmra.mxu0 %v1407
        %v1475 = vpop.f32.mrf.mxu0
        %v1476 = vadd.f32 0.0, %v1475
        %v1477 = vpop.f32.mrf.mxu0
        %v1478 = vadd.f32 0.0, %v1477
        %1479 = vmatmul.bf16.gmra.mxu0 %v1410
        %v1480 = vpop.f32.mrf.mxu0
        %v1481 = vadd.f32 0.0, %v1480
        %v1482 = vpop.f32.mrf.mxu0
        %v1483 = vadd.f32 0.0, %v1482
        %1484 = vmatmul.bf16.gmra.mxu0 %v1413
        %v1485 = vpop.f32.mrf.mxu0
        %v1486 = vadd.f32 0.0, %v1485
        %v1487 = vpop.f32.mrf.mxu0
        %v1488 = vadd.f32 0.0, %v1487
        %1489 = vmatmul.bf16.gmra.mxu0 %v1416
        %v1490 = vpop.f32.mrf.mxu0
        %v1491 = vadd.f32 0.0, %v1490
        %v1492 = vpop.f32.mrf.mxu0
        %v1493 = vadd.f32 0.0, %v1492
        %1494 = vmatmul.bf16.gmra.mxu0 %v1419
        %v1495 = vpop.f32.mrf.mxu0
        %v1496 = vadd.f32 0.0, %v1495
        %v1497 = vpop.f32.mrf.mxu0
        %v1498 = vadd.f32 0.0, %v1497
        %1499 = vmatmul.bf16.gmra.mxu0 %v1422
        %v1500 = vpop.f32.mrf.mxu0
        %v1501 = vadd.f32 0.0, %v1500
        %v1502 = vpop.f32.mrf.mxu0
        %v1503 = vadd.f32 0.0, %v1502
        %1504 = vmatmul.bf16.gmra.mxu0 %v1425
        %v1505 = vpop.f32.mrf.mxu0
        %v1506 = vadd.f32 0.0, %v1505
        %v1507 = vpop.f32.mrf.mxu0
        %v1508 = vadd.f32 0.0, %v1507
        %1509 = vmatmul.bf16.gmra.mxu0 %v1428
        %v1510 = vpop.f32.mrf.mxu0
        %v1511 = vadd.f32 0.0, %v1510
        %v1512 = vpop.f32.mrf.mxu0
        %v1513 = vadd.f32 0.0, %v1512
        %1514 = vmatmul.bf16.gmra.mxu0 %v1431
        %v1515 = vpop.f32.mrf.mxu0
        %v1516 = vadd.f32 0.0, %v1515
        %v1517 = vpop.f32.mrf.mxu0
        %v1518 = vadd.f32 0.0, %v1517
        %1519 = vmatmul.bf16.gmra.mxu0 %v1434
        %v1520 = vpop.f32.mrf.mxu0
        %v1521 = vadd.f32 0.0, %v1520
        %v1522 = vpop.f32.mrf.mxu0
        %v1523 = vadd.f32 0.0, %v1522
        %1524 = vdwg.mxu0
        %v1525 = vadd.f32 %v1276, %v1446
        %v1526 = vadd.f32 %v1277, %v1448
        %v1527 = vadd.f32 %v1278, %v1451
        %v1528 = vadd.f32 %v1279, %v1453
        %v1529 = vadd.f32 %v1280, %v1456
        %v1530 = vadd.f32 %v1281, %v1458
        %v1531 = vadd.f32 %v1282, %v1461
        %v1532 = vadd.f32 %v1283, %v1463
        %v1533 = vadd.f32 %v1284, %v1466
        %v1534 = vadd.f32 %v1285, %v1468
        %v1535 = vadd.f32 %v1286, %v1471
        %v1536 = vadd.f32 %v1287, %v1473
        %v1537 = vadd.f32 %v1288, %v1476
        %v1538 = vadd.f32 %v1289, %v1478
        %v1539 = vadd.f32 %v1290, %v1481
        %v1540 = vadd.f32 %v1291, %v1483
        %v1541 = vadd.f32 %v1292, %v1486
        %v1542 = vadd.f32 %v1293, %v1488
        %v1543 = vadd.f32 %v1294, %v1491
        %v1544 = vadd.f32 %v1295, %v1493
        %v1545 = vadd.f32 %v1296, %v1496
        %v1546 = vadd.f32 %v1297, %v1498
        %v1547 = vadd.f32 %v1298, %v1501
        %v1548 = vadd.f32 %v1299, %v1503
        %v1549 = vadd.f32 %v1300, %v1506
        %v1550 = vadd.f32 %v1301, %v1508
        %v1551 = vadd.f32 %v1302, %v1511
        %v1552 = vadd.f32 %v1303, %v1513
        %v1553 = vadd.f32 %v1304, %v1516
        %v1554 = vadd.f32 %v1305, %v1518
        %v1555 = vadd.f32 %v1306, %v1521
        %v1556 = vadd.f32 %v1307, %v1523
        %v1557 = vld [vmem:[%s342 + $0x9] sm:$0xff]
        %v1558 = vld [vmem:[%s342 + $0x11] sm:$0xff]
        %v1559 = vld [vmem:[%s342 + $0x29] sm:$0xff]
        %v1560 = vld [vmem:[%s342 + $0x31] sm:$0xff]
        %v1561 = vld [vmem:[%s342 + $0x49] sm:$0xff]
        %v1562 = vld [vmem:[%s342 + $0x51] sm:$0xff]
        %v1563 = vld [vmem:[%s342 + $0x69] sm:$0xff]
        %v1564 = vld [vmem:[%s342 + $0x71] sm:$0xff]
        %v1565 = vld [vmem:[%s342 + $0x89] sm:$0xff]
        %v1566 = vld [vmem:[%s342 + $0x91] sm:$0xff]
        %v1567 = vld [vmem:[%s342 + $0xa9] sm:$0xff]
        %v1568 = vld [vmem:[%s342 + $0xb1] sm:$0xff]
        %v1569 = vld [vmem:[%s342 + $0xc9] sm:$0xff]
        %v1570 = vld [vmem:[%s342 + $0xd1] sm:$0xff]
        %v1571 = vld [vmem:[%s342 + $0xe9] sm:$0xff]
        %v1572 = vld [vmem:[%s342 + $0xf1] sm:$0xff]
        %v1573 = vld [vmem:[%s342 + $0x109] sm:$0xff]
        %v1574 = vld [vmem:[%s342 + $0x111] sm:$0xff]
        %v1575 = vld [vmem:[%s342 + $0x129] sm:$0xff]
        %v1576 = vld [vmem:[%s342 + $0x131] sm:$0xff]
        %v1577 = vld [vmem:[%s342 + $0x149] sm:$0xff]
        %v1578 = vld [vmem:[%s342 + $0x151] sm:$0xff]
        %v1579 = vld [vmem:[%s342 + $0x169] sm:$0xff]
        %v1580 = vld [vmem:[%s342 + $0x171] sm:$0xff]
        %v1581 = vld [vmem:[%s342 + $0x189] sm:$0xff]
        %v1582 = vld [vmem:[%s342 + $0x191] sm:$0xff]
        %v1583 = vld [vmem:[%s342 + $0x1a9] sm:$0xff]
        %v1584 = vld [vmem:[%s342 + $0x1b1] sm:$0xff]
        %v1585 = vld [vmem:[%s342 + $0x1c9] sm:$0xff]
        %v1586 = vld [vmem:[%s342 + $0x1d1] sm:$0xff]
        %v1587 = vld [vmem:[%s342 + $0x1e9] sm:$0xff]
        %v1588 = vld [vmem:[%s342 + $0x1f1] sm:$0xff]
        %v1589 = vpack.c.bf16 %v1558, %v1557
        %v1590 = vpack.c.bf16 %v1560, %v1559
        %v1591 = vpack.c.bf16 %v1562, %v1561
        %v1592 = vpack.c.bf16 %v1564, %v1563
        %v1593 = vpack.c.bf16 %v1566, %v1565
        %v1594 = vpack.c.bf16 %v1568, %v1567
        %v1595 = vpack.c.bf16 %v1570, %v1569
        %v1596 = vpack.c.bf16 %v1572, %v1571
        %v1597 = vpack.c.bf16 %v1574, %v1573
        %v1598 = vpack.c.bf16 %v1576, %v1575
        %v1599 = vpack.c.bf16 %v1578, %v1577
        %v1600 = vpack.c.bf16 %v1580, %v1579
        %v1601 = vpack.c.bf16 %v1582, %v1581
        %v1602 = vpack.c.bf16 %v1584, %v1583
        %v1603 = vpack.c.bf16 %v1586, %v1585
        %v1604 = vpack.c.bf16 %v1588, %v1587
        %v1605 = vld [vmem:[#allocation5 + $0x140] sm:$0xf]
        %v1606 = vld [vmem:[#allocation5 + $0x144] sm:$0xf]
        %v1607 = vld [vmem:[#allocation5 + $0x148] sm:$0xf]
        %v1608 = vld [vmem:[#allocation5 + $0x14c] sm:$0xf]
        %v1609 = vld [vmem:[#allocation5 + $0x150] sm:$0xf]
        %v1610 = vld [vmem:[#allocation5 + $0x154] sm:$0xf]
        %v1611 = vld [vmem:[#allocation5 + $0x158] sm:$0xf]
        %v1612 = vld [vmem:[#allocation5 + $0x15c] sm:$0xf]
        %v1621 = vunpack.c.l.b16 %v1605
        %v1622 = vunpack.c.l.b16 %v1606
        %v1623 = vunpack.c.l.b16 %v1607
        %v1624 = vunpack.c.l.b16 %v1608
        %v1625 = vunpack.c.l.b16 %v1609
        %v1626 = vunpack.c.l.b16 %v1610
        %v1627 = vunpack.c.l.b16 %v1611
        %v1628 = vunpack.c.l.b16 %v1612
        %v1629 = vpack.c.b16 %v1622, %v1621
        %v1630 = vpack.c.b16 %v1624, %v1623
        %v1631 = vpack.c.b16 %v1626, %v1625
        %v1632 = vpack.c.b16 %v1628, %v1627
        %v1638 = vsel %vm343, %v1589, 0
        %v1641 = vsel %vm343, %v1590, 0
        %v1644 = vsel %vm343, %v1591, 0
        %v1647 = vsel %vm343, %v1592, 0
        %v1650 = vsel %vm343, %v1593, 0
        %v1653 = vsel %vm343, %v1594, 0
        %v1656 = vsel %vm343, %v1595, 0
        %v1659 = vsel %vm343, %v1596, 0
        %v1662 = vsel %vm343, %v1597, 0
        %v1665 = vsel %vm343, %v1598, 0
        %v1668 = vsel %vm343, %v1599, 0
        %v1671 = vsel %vm343, %v1600, 0
        %v1674 = vsel %vm343, %v1601, 0
        %v1677 = vsel %vm343, %v1602, 0
        %v1680 = vsel %vm343, %v1603, 0
        %v1683 = vsel %vm343, %v1604, 0
        %1685 = vmatpush.bf16.msra.mxu0 0
        %1686 = vmatpush.bf16.msra.mxu0 0
        %1687 = vmatpush.bf16.msra.mxu0 0
        %1688 = vmatpush.bf16.msra.mxu0 0
        %1689 = vmatpush.bf16.msra.mxu0 %v1632
        %1690 = vmatpush.bf16.msra.mxu0 %v1631
        %1691 = vmatpush.bf16.msra.mxu0 %v1630
        %1692 = vmatpush.bf16.msra.mxu0 %v1629
        %1693 = vmatmul.bf16.gmra.mxu0 %v1638
        %v1694 = vpop.f32.mrf.mxu0
        %v1695 = vadd.f32 0.0, %v1694
        %v1696 = vpop.f32.mrf.mxu0
        %v1697 = vadd.f32 0.0, %v1696
        %1698 = vmatmul.bf16.gmra.mxu0 %v1641
        %v1699 = vpop.f32.mrf.mxu0
        %v1700 = vadd.f32 0.0, %v1699
        %v1701 = vpop.f32.mrf.mxu0
        %v1702 = vadd.f32 0.0, %v1701
        %1703 = vmatmul.bf16.gmra.mxu0 %v1644
        %v1704 = vpop.f32.mrf.mxu0
        %v1705 = vadd.f32 0.0, %v1704
        %v1706 = vpop.f32.mrf.mxu0
        %v1707 = vadd.f32 0.0, %v1706
        %1708 = vmatmul.bf16.gmra.mxu0 %v1647
        %v1709 = vpop.f32.mrf.mxu0
        %v1710 = vadd.f32 0.0, %v1709
        %v1711 = vpop.f32.mrf.mxu0
        %v1712 = vadd.f32 0.0, %v1711
        %1713 = vmatmul.bf16.gmra.mxu0 %v1650
        %v1714 = vpop.f32.mrf.mxu0
        %v1715 = vadd.f32 0.0, %v1714
        %v1716 = vpop.f32.mrf.mxu0
        %v1717 = vadd.f32 0.0, %v1716
        %1718 = vmatmul.bf16.gmra.mxu0 %v1653
        %v1719 = vpop.f32.mrf.mxu0
        %v1720 = vadd.f32 0.0, %v1719
        %v1721 = vpop.f32.mrf.mxu0
        %v1722 = vadd.f32 0.0, %v1721
        %1723 = vmatmul.bf16.gmra.mxu0 %v1656
        %v1724 = vpop.f32.mrf.mxu0
        %v1725 = vadd.f32 0.0, %v1724
        %v1726 = vpop.f32.mrf.mxu0
        %v1727 = vadd.f32 0.0, %v1726
        %1728 = vmatmul.bf16.gmra.mxu0 %v1659
        %v1729 = vpop.f32.mrf.mxu0
        %v1730 = vadd.f32 0.0, %v1729
        %v1731 = vpop.f32.mrf.mxu0
        %v1732 = vadd.f32 0.0, %v1731
        %1733 = vmatmul.bf16.gmra.mxu0 %v1662
        %v1734 = vpop.f32.mrf.mxu0
        %v1735 = vadd.f32 0.0, %v1734
        %v1736 = vpop.f32.mrf.mxu0
        %v1737 = vadd.f32 0.0, %v1736
        %1738 = vmatmul.bf16.gmra.mxu0 %v1665
        %v1739 = vpop.f32.mrf.mxu0
        %v1740 = vadd.f32 0.0, %v1739
        %v1741 = vpop.f32.mrf.mxu0
        %v1742 = vadd.f32 0.0, %v1741
        %1743 = vmatmul.bf16.gmra.mxu0 %v1668
        %v1744 = vpop.f32.mrf.mxu0
        %v1745 = vadd.f32 0.0, %v1744
        %v1746 = vpop.f32.mrf.mxu0
        %v1747 = vadd.f32 0.0, %v1746
        %1748 = vmatmul.bf16.gmra.mxu0 %v1671
        %v1749 = vpop.f32.mrf.mxu0
        %v1750 = vadd.f32 0.0, %v1749
        %v1751 = vpop.f32.mrf.mxu0
        %v1752 = vadd.f32 0.0, %v1751
        %1753 = vmatmul.bf16.gmra.mxu0 %v1674
        %v1754 = vpop.f32.mrf.mxu0
        %v1755 = vadd.f32 0.0, %v1754
        %v1756 = vpop.f32.mrf.mxu0
        %v1757 = vadd.f32 0.0, %v1756
        %1758 = vmatmul.bf16.gmra.mxu0 %v1677
        %v1759 = vpop.f32.mrf.mxu0
        %v1760 = vadd.f32 0.0, %v1759
        %v1761 = vpop.f32.mrf.mxu0
        %v1762 = vadd.f32 0.0, %v1761
        %1763 = vmatmul.bf16.gmra.mxu0 %v1680
        %v1764 = vpop.f32.mrf.mxu0
        %v1765 = vadd.f32 0.0, %v1764
        %v1766 = vpop.f32.mrf.mxu0
        %v1767 = vadd.f32 0.0, %v1766
        %1768 = vmatmul.bf16.gmra.mxu0 %v1683
        %v1769 = vpop.f32.mrf.mxu0
        %v1770 = vadd.f32 0.0, %v1769
        %v1771 = vpop.f32.mrf.mxu0
        %v1772 = vadd.f32 0.0, %v1771
        %1773 = vdwg.mxu0
        %v1774 = vadd.f32 %v1525, %v1695
        %v1775 = vadd.f32 %v1526, %v1697
        %v1776 = vadd.f32 %v1527, %v1700
        %v1777 = vadd.f32 %v1528, %v1702
        %v1778 = vadd.f32 %v1529, %v1705
        %v1779 = vadd.f32 %v1530, %v1707
        %v1780 = vadd.f32 %v1531, %v1710
        %v1781 = vadd.f32 %v1532, %v1712
        %v1782 = vadd.f32 %v1533, %v1715
        %v1783 = vadd.f32 %v1534, %v1717
        %v1784 = vadd.f32 %v1535, %v1720
        %v1785 = vadd.f32 %v1536, %v1722
        %v1786 = vadd.f32 %v1537, %v1725
        %v1787 = vadd.f32 %v1538, %v1727
        %v1788 = vadd.f32 %v1539, %v1730
        %v1789 = vadd.f32 %v1540, %v1732
        %v1790 = vadd.f32 %v1541, %v1735
        %v1791 = vadd.f32 %v1542, %v1737
        %v1792 = vadd.f32 %v1543, %v1740
        %v1793 = vadd.f32 %v1544, %v1742
        %v1794 = vadd.f32 %v1545, %v1745
        %v1795 = vadd.f32 %v1546, %v1747
        %v1796 = vadd.f32 %v1547, %v1750
        %v1797 = vadd.f32 %v1548, %v1752
        %v1798 = vadd.f32 %v1549, %v1755
        %v1799 = vadd.f32 %v1550, %v1757
        %v1800 = vadd.f32 %v1551, %v1760
        %v1801 = vadd.f32 %v1552, %v1762
        %v1802 = vadd.f32 %v1553, %v1765
        %v1803 = vadd.f32 %v1554, %v1767
        %v1804 = vadd.f32 %v1555, %v1770
        %v1805 = vadd.f32 %v1556, %v1772
        %s1806 = scalar_lea.vmem [#allocation2], 64
        %v1807 = vld [vmem:[%s1806 + $0x7] sm:$0xff]
        %v1808 = vld [vmem:[%s1806 + $0xf] sm:$0xff]
        %v1809 = vld [vmem:[%s1806 + $0x27] sm:$0xff]
        %v1810 = vld [vmem:[%s1806 + $0x2f] sm:$0xff]
        %v1811 = vld [vmem:[%s1806 + $0x47] sm:$0xff]
        %v1812 = vld [vmem:[%s1806 + $0x4f] sm:$0xff]
        %v1813 = vld [vmem:[%s1806 + $0x67] sm:$0xff]
        %v1814 = vld [vmem:[%s1806 + $0x6f] sm:$0xff]
        %v1815 = vld [vmem:[%s1806 + $0x87] sm:$0xff]
        %v1816 = vld [vmem:[%s1806 + $0x8f] sm:$0xff]
        %v1817 = vld [vmem:[%s1806 + $0xa7] sm:$0xff]
        %v1818 = vld [vmem:[%s1806 + $0xaf] sm:$0xff]
        %v1819 = vld [vmem:[%s1806 + $0xc7] sm:$0xff]
        %v1820 = vld [vmem:[%s1806 + $0xcf] sm:$0xff]
        %v1821 = vld [vmem:[%s1806 + $0xe7] sm:$0xff]
        %v1822 = vld [vmem:[%s1806 + $0xef] sm:$0xff]
        %v1823 = vld [vmem:[%s1806 + $0x107] sm:$0xff]
        %v1824 = vld [vmem:[%s1806 + $0x10f] sm:$0xff]
        %v1825 = vld [vmem:[%s1806 + $0x127] sm:$0xff]
        %v1826 = vld [vmem:[%s1806 + $0x12f] sm:$0xff]
        %v1827 = vld [vmem:[%s1806 + $0x147] sm:$0xff]
        %v1828 = vld [vmem:[%s1806 + $0x14f] sm:$0xff]
        %v1829 = vld [vmem:[%s1806 + $0x167] sm:$0xff]
        %v1830 = vld [vmem:[%s1806 + $0x16f] sm:$0xff]
        %v1831 = vld [vmem:[%s1806 + $0x187] sm:$0xff]
        %v1832 = vld [vmem:[%s1806 + $0x18f] sm:$0xff]
        %v1833 = vld [vmem:[%s1806 + $0x1a7] sm:$0xff]
        %v1834 = vld [vmem:[%s1806 + $0x1af] sm:$0xff]
        %v1835 = vld [vmem:[%s1806 + $0x1c7] sm:$0xff]
        %v1836 = vld [vmem:[%s1806 + $0x1cf] sm:$0xff]
        %v1837 = vld [vmem:[%s1806 + $0x1e7] sm:$0xff]
        %v1838 = vld [vmem:[%s1806 + $0x1ef] sm:$0xff]
        %v1839 = vpack.c.bf16 %v1808, %v1807
        %v1840 = vpack.c.bf16 %v1810, %v1809
        %v1841 = vpack.c.bf16 %v1812, %v1811
        %v1842 = vpack.c.bf16 %v1814, %v1813
        %v1843 = vpack.c.bf16 %v1816, %v1815
        %v1844 = vpack.c.bf16 %v1818, %v1817
        %v1845 = vpack.c.bf16 %v1820, %v1819
        %v1846 = vpack.c.bf16 %v1822, %v1821
        %v1847 = vpack.c.bf16 %v1824, %v1823
        %v1848 = vpack.c.bf16 %v1826, %v1825
        %v1849 = vpack.c.bf16 %v1828, %v1827
        %v1850 = vpack.c.bf16 %v1830, %v1829
        %v1851 = vpack.c.bf16 %v1832, %v1831
        %v1852 = vpack.c.bf16 %v1834, %v1833
        %v1853 = vpack.c.bf16 %v1836, %v1835
        %v1854 = vpack.c.bf16 %v1838, %v1837
        %v1855 = vld [vmem:[#allocation5 + $0x180] sm:$0xf]
        %v1856 = vld [vmem:[#allocation5 + $0x184] sm:$0xf]
        %v1857 = vld [vmem:[#allocation5 + $0x188] sm:$0xf]
        %v1858 = vld [vmem:[#allocation5 + $0x18c] sm:$0xf]
        %v1859 = vld [vmem:[#allocation5 + $0x190] sm:$0xf]
        %v1860 = vld [vmem:[#allocation5 + $0x194] sm:$0xf]
        %v1861 = vld [vmem:[#allocation5 + $0x198] sm:$0xf]
        %v1862 = vld [vmem:[#allocation5 + $0x19c] sm:$0xf]
        %v1871 = vunpack.c.l.b16 %v1855
        %v1872 = vunpack.c.l.b16 %v1856
        %v1873 = vunpack.c.l.b16 %v1857
        %v1874 = vunpack.c.l.b16 %v1858
        %v1875 = vunpack.c.l.b16 %v1859
        %v1876 = vunpack.c.l.b16 %v1860
        %v1877 = vunpack.c.l.b16 %v1861
        %v1878 = vunpack.c.l.b16 %v1862
        %v1879 = vpack.c.b16 %v1872, %v1871
        %v1880 = vpack.c.b16 %v1874, %v1873
        %v1881 = vpack.c.b16 %v1876, %v1875
        %v1882 = vpack.c.b16 %v1878, %v1877
        %v1888 = vsel %vm343, %v1839, 0
        %v1891 = vsel %vm343, %v1840, 0
        %v1894 = vsel %vm343, %v1841, 0
        %v1897 = vsel %vm343, %v1842, 0
        %v1900 = vsel %vm343, %v1843, 0
        %v1903 = vsel %vm343, %v1844, 0
        %v1906 = vsel %vm343, %v1845, 0
        %v1909 = vsel %vm343, %v1846, 0
        %v1912 = vsel %vm343, %v1847, 0
        %v1915 = vsel %vm343, %v1848, 0
        %v1918 = vsel %vm343, %v1849, 0
        %v1921 = vsel %vm343, %v1850, 0
        %v1924 = vsel %vm343, %v1851, 0
        %v1927 = vsel %vm343, %v1852, 0
        %v1930 = vsel %vm343, %v1853, 0
        %v1933 = vsel %vm343, %v1854, 0
        %1935 = vmatpush.bf16.msra.mxu0 0
        %1936 = vmatpush.bf16.msra.mxu0 0
        %1937 = vmatpush.bf16.msra.mxu0 0
        %1938 = vmatpush.bf16.msra.mxu0 0
        %1939 = vmatpush.bf16.msra.mxu0 %v1882
        %1940 = vmatpush.bf16.msra.mxu0 %v1881
        %1941 = vmatpush.bf16.msra.mxu0 %v1880
        %1942 = vmatpush.bf16.msra.mxu0 %v1879
        %1943 = vmatmul.bf16.gmra.mxu0 %v1888
        %v1944 = vpop.f32.mrf.mxu0
        %v1945 = vadd.f32 0.0, %v1944
        %v1946 = vpop.f32.mrf.mxu0
        %v1947 = vadd.f32 0.0, %v1946
        %1948 = vmatmul.bf16.gmra.mxu0 %v1891
        %v1949 = vpop.f32.mrf.mxu0
        %v1950 = vadd.f32 0.0, %v1949
        %v1951 = vpop.f32.mrf.mxu0
        %v1952 = vadd.f32 0.0, %v1951
        %1953 = vmatmul.bf16.gmra.mxu0 %v1894
        %v1954 = vpop.f32.mrf.mxu0
        %v1955 = vadd.f32 0.0, %v1954
        %v1956 = vpop.f32.mrf.mxu0
        %v1957 = vadd.f32 0.0, %v1956
        %1958 = vmatmul.bf16.gmra.mxu0 %v1897
        %v1959 = vpop.f32.mrf.mxu0
        %v1960 = vadd.f32 0.0, %v1959
        %v1961 = vpop.f32.mrf.mxu0
        %v1962 = vadd.f32 0.0, %v1961
        %1963 = vmatmul.bf16.gmra.mxu0 %v1900
        %v1964 = vpop.f32.mrf.mxu0
        %v1965 = vadd.f32 0.0, %v1964
        %v1966 = vpop.f32.mrf.mxu0
        %v1967 = vadd.f32 0.0, %v1966
        %1968 = vmatmul.bf16.gmra.mxu0 %v1903
        %v1969 = vpop.f32.mrf.mxu0
        %v1970 = vadd.f32 0.0, %v1969
        %v1971 = vpop.f32.mrf.mxu0
        %v1972 = vadd.f32 0.0, %v1971
        %1973 = vmatmul.bf16.gmra.mxu0 %v1906
        %v1974 = vpop.f32.mrf.mxu0
        %v1975 = vadd.f32 0.0, %v1974
        %v1976 = vpop.f32.mrf.mxu0
        %v1977 = vadd.f32 0.0, %v1976
        %1978 = vmatmul.bf16.gmra.mxu0 %v1909
        %v1979 = vpop.f32.mrf.mxu0
        %v1980 = vadd.f32 0.0, %v1979
        %v1981 = vpop.f32.mrf.mxu0
        %v1982 = vadd.f32 0.0, %v1981
        %1983 = vmatmul.bf16.gmra.mxu0 %v1912
        %v1984 = vpop.f32.mrf.mxu0
        %v1985 = vadd.f32 0.0, %v1984
        %v1986 = vpop.f32.mrf.mxu0
        %v1987 = vadd.f32 0.0, %v1986
        %1988 = vmatmul.bf16.gmra.mxu0 %v1915
        %v1989 = vpop.f32.mrf.mxu0
        %v1990 = vadd.f32 0.0, %v1989
        %v1991 = vpop.f32.mrf.mxu0
        %v1992 = vadd.f32 0.0, %v1991
        %1993 = vmatmul.bf16.gmra.mxu0 %v1918
        %v1994 = vpop.f32.mrf.mxu0
        %v1995 = vadd.f32 0.0, %v1994
        %v1996 = vpop.f32.mrf.mxu0
        %v1997 = vadd.f32 0.0, %v1996
        %1998 = vmatmul.bf16.gmra.mxu0 %v1921
        %v1999 = vpop.f32.mrf.mxu0
        %v2000 = vadd.f32 0.0, %v1999
        %v2001 = vpop.f32.mrf.mxu0
        %v2002 = vadd.f32 0.0, %v2001
        %2003 = vmatmul.bf16.gmra.mxu0 %v1924
        %v2004 = vpop.f32.mrf.mxu0
        %v2005 = vadd.f32 0.0, %v2004
        %v2006 = vpop.f32.mrf.mxu0
        %v2007 = vadd.f32 0.0, %v2006
        %2008 = vmatmul.bf16.gmra.mxu0 %v1927
        %v2009 = vpop.f32.mrf.mxu0
        %v2010 = vadd.f32 0.0, %v2009
        %v2011 = vpop.f32.mrf.mxu0
        %v2012 = vadd.f32 0.0, %v2011
        %2013 = vmatmul.bf16.gmra.mxu0 %v1930
        %v2014 = vpop.f32.mrf.mxu0
        %v2015 = vadd.f32 0.0, %v2014
        %v2016 = vpop.f32.mrf.mxu0
        %v2017 = vadd.f32 0.0, %v2016
        %2018 = vmatmul.bf16.gmra.mxu0 %v1933
        %v2019 = vpop.f32.mrf.mxu0
        %v2020 = vadd.f32 0.0, %v2019
        %v2021 = vpop.f32.mrf.mxu0
        %v2022 = vadd.f32 0.0, %v2021
        %2023 = vdwg.mxu0
        %v2024 = vadd.f32 %v1774, %v1945
        %v2025 = vadd.f32 %v1775, %v1947
        %v2026 = vadd.f32 %v1776, %v1950
        %v2027 = vadd.f32 %v1777, %v1952
        %v2028 = vadd.f32 %v1778, %v1955
        %v2029 = vadd.f32 %v1779, %v1957
        %v2030 = vadd.f32 %v1780, %v1960
        %v2031 = vadd.f32 %v1781, %v1962
        %v2032 = vadd.f32 %v1782, %v1965
        %v2033 = vadd.f32 %v1783, %v1967
        %v2034 = vadd.f32 %v1784, %v1970
        %v2035 = vadd.f32 %v1785, %v1972
        %v2036 = vadd.f32 %v1786, %v1975
        %v2037 = vadd.f32 %v1787, %v1977
        %v2038 = vadd.f32 %v1788, %v1980
        %v2039 = vadd.f32 %v1789, %v1982
        %v2040 = vadd.f32 %v1790, %v1985
        %v2041 = vadd.f32 %v1791, %v1987
        %v2042 = vadd.f32 %v1792, %v1990
        %v2043 = vadd.f32 %v1793, %v1992
        %v2044 = vadd.f32 %v1794, %v1995
        %v2045 = vadd.f32 %v1795, %v1997
        %v2046 = vadd.f32 %v1796, %v2000
        %v2047 = vadd.f32 %v1797, %v2002
        %v2048 = vadd.f32 %v1798, %v2005
        %v2049 = vadd.f32 %v1799, %v2007
        %v2050 = vadd.f32 %v1800, %v2010
        %v2051 = vadd.f32 %v1801, %v2012
        %v2052 = vadd.f32 %v1802, %v2015
        %v2053 = vadd.f32 %v1803, %v2017
        %v2054 = vadd.f32 %v1804, %v2020
        %v2055 = vadd.f32 %v1805, %v2022
        %v2056 = vld [vmem:[%s1806 + $0x8] sm:$0xff]
        %v2057 = vld [vmem:[%s1806 + $0x10] sm:$0xff]
        %v2058 = vld [vmem:[%s1806 + $0x28] sm:$0xff]
        %v2059 = vld [vmem:[%s1806 + $0x30] sm:$0xff]
        %v2060 = vld [vmem:[%s1806 + $0x48] sm:$0xff]
        %v2061 = vld [vmem:[%s1806 + $0x50] sm:$0xff]
        %v2062 = vld [vmem:[%s1806 + $0x68] sm:$0xff]
        %v2063 = vld [vmem:[%s1806 + $0x70] sm:$0xff]
        %v2064 = vld [vmem:[%s1806 + $0x88] sm:$0xff]
        %v2065 = vld [vmem:[%s1806 + $0x90] sm:$0xff]
        %v2066 = vld [vmem:[%s1806 + $0xa8] sm:$0xff]
        %v2067 = vld [vmem:[%s1806 + $0xb0] sm:$0xff]
        %v2068 = vld [vmem:[%s1806 + $0xc8] sm:$0xff]
        %v2069 = vld [vmem:[%s1806 + $0xd0] sm:$0xff]
        %v2070 = vld [vmem:[%s1806 + $0xe8] sm:$0xff]
        %v2071 = vld [vmem:[%s1806 + $0xf0] sm:$0xff]
        %v2072 = vld [vmem:[%s1806 + $0x108] sm:$0xff]
        %v2073 = vld [vmem:[%s1806 + $0x110] sm:$0xff]
        %v2074 = vld [vmem:[%s1806 + $0x128] sm:$0xff]
        %v2075 = vld [vmem:[%s1806 + $0x130] sm:$0xff]
        %v2076 = vld [vmem:[%s1806 + $0x148] sm:$0xff]
        %v2077 = vld [vmem:[%s1806 + $0x150] sm:$0xff]
        %v2078 = vld [vmem:[%s1806 + $0x168] sm:$0xff]
        %v2079 = vld [vmem:[%s1806 + $0x170] sm:$0xff]
        %v2080 = vld [vmem:[%s1806 + $0x188] sm:$0xff]
        %v2081 = vld [vmem:[%s1806 + $0x190] sm:$0xff]
        %v2082 = vld [vmem:[%s1806 + $0x1a8] sm:$0xff]
        %v2083 = vld [vmem:[%s1806 + $0x1b0] sm:$0xff]
        %v2084 = vld [vmem:[%s1806 + $0x1c8] sm:$0xff]
        %v2085 = vld [vmem:[%s1806 + $0x1d0] sm:$0xff]
        %v2086 = vld [vmem:[%s1806 + $0x1e8] sm:$0xff]
        %v2087 = vld [vmem:[%s1806 + $0x1f0] sm:$0xff]
        %v2088 = vpack.c.bf16 %v2057, %v2056
        %v2089 = vpack.c.bf16 %v2059, %v2058
        %v2090 = vpack.c.bf16 %v2061, %v2060
        %v2091 = vpack.c.bf16 %v2063, %v2062
        %v2092 = vpack.c.bf16 %v2065, %v2064
        %v2093 = vpack.c.bf16 %v2067, %v2066
        %v2094 = vpack.c.bf16 %v2069, %v2068
        %v2095 = vpack.c.bf16 %v2071, %v2070
        %v2096 = vpack.c.bf16 %v2073, %v2072
        %v2097 = vpack.c.bf16 %v2075, %v2074
        %v2098 = vpack.c.bf16 %v2077, %v2076
        %v2099 = vpack.c.bf16 %v2079, %v2078
        %v2100 = vpack.c.bf16 %v2081, %v2080
        %v2101 = vpack.c.bf16 %v2083, %v2082
        %v2102 = vpack.c.bf16 %v2085, %v2084
        %v2103 = vpack.c.bf16 %v2087, %v2086
        %v2104 = vld [vmem:[#allocation5 + $0x1c0] sm:$0xf]
        %v2105 = vld [vmem:[#allocation5 + $0x1c4] sm:$0xf]
        %v2106 = vld [vmem:[#allocation5 + $0x1c8] sm:$0xf]
        %v2107 = vld [vmem:[#allocation5 + $0x1cc] sm:$0xf]
        %v2108 = vld [vmem:[#allocation5 + $0x1d0] sm:$0xf]
        %v2109 = vld [vmem:[#allocation5 + $0x1d4] sm:$0xf]
        %v2110 = vld [vmem:[#allocation5 + $0x1d8] sm:$0xf]
        %v2111 = vld [vmem:[#allocation5 + $0x1dc] sm:$0xf]
        %v2120 = vunpack.c.l.b16 %v2104
        %v2121 = vunpack.c.l.b16 %v2105
        %v2122 = vunpack.c.l.b16 %v2106
        %v2123 = vunpack.c.l.b16 %v2107
        %v2124 = vunpack.c.l.b16 %v2108
        %v2125 = vunpack.c.l.b16 %v2109
        %v2126 = vunpack.c.l.b16 %v2110
        %v2127 = vunpack.c.l.b16 %v2111
        %v2128 = vpack.c.b16 %v2121, %v2120
        %v2129 = vpack.c.b16 %v2123, %v2122
        %v2130 = vpack.c.b16 %v2125, %v2124
        %v2131 = vpack.c.b16 %v2127, %v2126
        %v2137 = vsel %vm343, %v2088, 0
        %v2140 = vsel %vm343, %v2089, 0
        %v2143 = vsel %vm343, %v2090, 0
        %v2146 = vsel %vm343, %v2091, 0
        %v2149 = vsel %vm343, %v2092, 0
        %v2152 = vsel %vm343, %v2093, 0
        %v2155 = vsel %vm343, %v2094, 0
        %v2158 = vsel %vm343, %v2095, 0
        %v2161 = vsel %vm343, %v2096, 0
        %v2164 = vsel %vm343, %v2097, 0
        %v2167 = vsel %vm343, %v2098, 0
        %v2170 = vsel %vm343, %v2099, 0
        %v2173 = vsel %vm343, %v2100, 0
        %v2176 = vsel %vm343, %v2101, 0
        %v2179 = vsel %vm343, %v2102, 0
        %v2182 = vsel %vm343, %v2103, 0
        %2184 = vmatpush.bf16.msra.mxu0 0
        %2185 = vmatpush.bf16.msra.mxu0 0
        %2186 = vmatpush.bf16.msra.mxu0 0
        %2187 = vmatpush.bf16.msra.mxu0 0
        %2188 = vmatpush.bf16.msra.mxu0 %v2131
        %2189 = vmatpush.bf16.msra.mxu0 %v2130
        %2190 = vmatpush.bf16.msra.mxu0 %v2129
        %2191 = vmatpush.bf16.msra.mxu0 %v2128
        %2192 = vmatmul.bf16.gmra.mxu0 %v2137
        %v2193 = vpop.f32.mrf.mxu0
        %v2194 = vadd.f32 0.0, %v2193
        %v2195 = vpop.f32.mrf.mxu0
        %v2196 = vadd.f32 0.0, %v2195
        %2197 = vmatmul.bf16.gmra.mxu0 %v2140
        %v2198 = vpop.f32.mrf.mxu0
        %v2199 = vadd.f32 0.0, %v2198
        %v2200 = vpop.f32.mrf.mxu0
        %v2201 = vadd.f32 0.0, %v2200
        %2202 = vmatmul.bf16.gmra.mxu0 %v2143
        %v2203 = vpop.f32.mrf.mxu0
        %v2204 = vadd.f32 0.0, %v2203
        %v2205 = vpop.f32.mrf.mxu0
        %v2206 = vadd.f32 0.0, %v2205
        %2207 = vmatmul.bf16.gmra.mxu0 %v2146
        %v2208 = vpop.f32.mrf.mxu0
        %v2209 = vadd.f32 0.0, %v2208
        %v2210 = vpop.f32.mrf.mxu0
        %v2211 = vadd.f32 0.0, %v2210
        %2212 = vmatmul.bf16.gmra.mxu0 %v2149
        %v2213 = vpop.f32.mrf.mxu0
        %v2214 = vadd.f32 0.0, %v2213
        %v2215 = vpop.f32.mrf.mxu0
        %v2216 = vadd.f32 0.0, %v2215
        %2217 = vmatmul.bf16.gmra.mxu0 %v2152
        %v2218 = vpop.f32.mrf.mxu0
        %v2219 = vadd.f32 0.0, %v2218
        %v2220 = vpop.f32.mrf.mxu0
        %v2221 = vadd.f32 0.0, %v2220
        %2222 = vmatmul.bf16.gmra.mxu0 %v2155
        %v2223 = vpop.f32.mrf.mxu0
        %v2224 = vadd.f32 0.0, %v2223
        %v2225 = vpop.f32.mrf.mxu0
        %v2226 = vadd.f32 0.0, %v2225
        %2227 = vmatmul.bf16.gmra.mxu0 %v2158
        %v2228 = vpop.f32.mrf.mxu0
        %v2229 = vadd.f32 0.0, %v2228
        %v2230 = vpop.f32.mrf.mxu0
        %v2231 = vadd.f32 0.0, %v2230
        %2232 = vmatmul.bf16.gmra.mxu0 %v2161
        %v2233 = vpop.f32.mrf.mxu0
        %v2234 = vadd.f32 0.0, %v2233
        %v2235 = vpop.f32.mrf.mxu0
        %v2236 = vadd.f32 0.0, %v2235
        %2237 = vmatmul.bf16.gmra.mxu0 %v2164
        %v2238 = vpop.f32.mrf.mxu0
        %v2239 = vadd.f32 0.0, %v2238
        %v2240 = vpop.f32.mrf.mxu0
        %v2241 = vadd.f32 0.0, %v2240
        %2242 = vmatmul.bf16.gmra.mxu0 %v2167
        %v2243 = vpop.f32.mrf.mxu0
        %v2244 = vadd.f32 0.0, %v2243
        %v2245 = vpop.f32.mrf.mxu0
        %v2246 = vadd.f32 0.0, %v2245
        %2247 = vmatmul.bf16.gmra.mxu0 %v2170
        %v2248 = vpop.f32.mrf.mxu0
        %v2249 = vadd.f32 0.0, %v2248
        %v2250 = vpop.f32.mrf.mxu0
        %v2251 = vadd.f32 0.0, %v2250
        %2252 = vmatmul.bf16.gmra.mxu0 %v2173
        %v2253 = vpop.f32.mrf.mxu0
        %v2254 = vadd.f32 0.0, %v2253
        %v2255 = vpop.f32.mrf.mxu0
        %v2256 = vadd.f32 0.0, %v2255
        %2257 = vmatmul.bf16.gmra.mxu0 %v2176
        %v2258 = vpop.f32.mrf.mxu0
        %v2259 = vadd.f32 0.0, %v2258
        %v2260 = vpop.f32.mrf.mxu0
        %v2261 = vadd.f32 0.0, %v2260
        %2262 = vmatmul.bf16.gmra.mxu0 %v2179
        %v2263 = vpop.f32.mrf.mxu0
        %v2264 = vadd.f32 0.0, %v2263
        %v2265 = vpop.f32.mrf.mxu0
        %v2266 = vadd.f32 0.0, %v2265
        %2267 = vmatmul.bf16.gmra.mxu0 %v2182
        %v2268 = vpop.f32.mrf.mxu0
        %v2269 = vadd.f32 0.0, %v2268
        %v2270 = vpop.f32.mrf.mxu0
        %v2271 = vadd.f32 0.0, %v2270
        %2272 = vdwg.mxu0
        %v2273 = vadd.f32 %v2024, %v2194
        %v2274 = vadd.f32 %v2025, %v2196
        %v2275 = vadd.f32 %v2026, %v2199
        %v2276 = vadd.f32 %v2027, %v2201
        %v2277 = vadd.f32 %v2028, %v2204
        %v2278 = vadd.f32 %v2029, %v2206
        %v2279 = vadd.f32 %v2030, %v2209
        %v2280 = vadd.f32 %v2031, %v2211
        %v2281 = vadd.f32 %v2032, %v2214
        %v2282 = vadd.f32 %v2033, %v2216
        %v2283 = vadd.f32 %v2034, %v2219
        %v2284 = vadd.f32 %v2035, %v2221
        %v2285 = vadd.f32 %v2036, %v2224
        %v2286 = vadd.f32 %v2037, %v2226
        %v2287 = vadd.f32 %v2038, %v2229
        %v2288 = vadd.f32 %v2039, %v2231
        %v2289 = vadd.f32 %v2040, %v2234
        %v2290 = vadd.f32 %v2041, %v2236
        %v2291 = vadd.f32 %v2042, %v2239
        %v2292 = vadd.f32 %v2043, %v2241
        %v2293 = vadd.f32 %v2044, %v2244
        %v2294 = vadd.f32 %v2045, %v2246
        %v2295 = vadd.f32 %v2046, %v2249
        %v2296 = vadd.f32 %v2047, %v2251
        %v2297 = vadd.f32 %v2048, %v2254
        %v2298 = vadd.f32 %v2049, %v2256
        %v2299 = vadd.f32 %v2050, %v2259
        %v2300 = vadd.f32 %v2051, %v2261
        %v2301 = vadd.f32 %v2052, %v2264
        %v2302 = vadd.f32 %v2053, %v2266
        %v2303 = vadd.f32 %v2054, %v2269
        %v2304 = vadd.f32 %v2055, %v2271
        %v2305 = vld [vmem:[%s1806 + $0x9] sm:$0xff]
        %v2306 = vld [vmem:[%s1806 + $0x11] sm:$0xff]
        %v2307 = vld [vmem:[%s1806 + $0x29] sm:$0xff]
        %v2308 = vld [vmem:[%s1806 + $0x31] sm:$0xff]
        %v2309 = vld [vmem:[%s1806 + $0x49] sm:$0xff]
        %v2310 = vld [vmem:[%s1806 + $0x51] sm:$0xff]
        %v2311 = vld [vmem:[%s1806 + $0x69] sm:$0xff]
        %v2312 = vld [vmem:[%s1806 + $0x71] sm:$0xff]
        %v2313 = vld [vmem:[%s1806 + $0x89] sm:$0xff]
        %v2314 = vld [vmem:[%s1806 + $0x91] sm:$0xff]
        %v2315 = vld [vmem:[%s1806 + $0xa9] sm:$0xff]
        %v2316 = vld [vmem:[%s1806 + $0xb1] sm:$0xff]
        %v2317 = vld [vmem:[%s1806 + $0xc9] sm:$0xff]
        %v2318 = vld [vmem:[%s1806 + $0xd1] sm:$0xff]
        %v2319 = vld [vmem:[%s1806 + $0xe9] sm:$0xff]
        %v2320 = vld [vmem:[%s1806 + $0xf1] sm:$0xff]
        %v2321 = vld [vmem:[%s1806 + $0x109] sm:$0xff]
        %v2322 = vld [vmem:[%s1806 + $0x111] sm:$0xff]
        %v2323 = vld [vmem:[%s1806 + $0x129] sm:$0xff]
        %v2324 = vld [vmem:[%s1806 + $0x131] sm:$0xff]
        %v2325 = vld [vmem:[%s1806 + $0x149] sm:$0xff]
        %v2326 = vld [vmem:[%s1806 + $0x151] sm:$0xff]
        %v2327 = vld [vmem:[%s1806 + $0x169] sm:$0xff]
        %v2328 = vld [vmem:[%s1806 + $0x171] sm:$0xff]
        %v2329 = vld [vmem:[%s1806 + $0x189] sm:$0xff]
        %v2330 = vld [vmem:[%s1806 + $0x191] sm:$0xff]
        %v2331 = vld [vmem:[%s1806 + $0x1a9] sm:$0xff]
        %v2332 = vld [vmem:[%s1806 + $0x1b1] sm:$0xff]
        %v2333 = vld [vmem:[%s1806 + $0x1c9] sm:$0xff]
        %v2334 = vld [vmem:[%s1806 + $0x1d1] sm:$0xff]
        %v2335 = vld [vmem:[%s1806 + $0x1e9] sm:$0xff]
        %v2336 = vld [vmem:[%s1806 + $0x1f1] sm:$0xff]
        %v2337 = vpack.c.bf16 %v2306, %v2305
        %v2338 = vpack.c.bf16 %v2308, %v2307
        %v2339 = vpack.c.bf16 %v2310, %v2309
        %v2340 = vpack.c.bf16 %v2312, %v2311
        %v2341 = vpack.c.bf16 %v2314, %v2313
        %v2342 = vpack.c.bf16 %v2316, %v2315
        %v2343 = vpack.c.bf16 %v2318, %v2317
        %v2344 = vpack.c.bf16 %v2320, %v2319
        %v2345 = vpack.c.bf16 %v2322, %v2321
        %v2346 = vpack.c.bf16 %v2324, %v2323
        %v2347 = vpack.c.bf16 %v2326, %v2325
        %v2348 = vpack.c.bf16 %v2328, %v2327
        %v2349 = vpack.c.bf16 %v2330, %v2329
        %v2350 = vpack.c.bf16 %v2332, %v2331
        %v2351 = vpack.c.bf16 %v2334, %v2333
        %v2352 = vpack.c.bf16 %v2336, %v2335
        %v2353 = vld [vmem:[#allocation5 + $0x200] sm:$0xf]
        %v2354 = vld [vmem:[#allocation5 + $0x204] sm:$0xf]
        %v2355 = vld [vmem:[#allocation5 + $0x208] sm:$0xf]
        %v2356 = vld [vmem:[#allocation5 + $0x20c] sm:$0xf]
        %v2357 = vld [vmem:[#allocation5 + $0x210] sm:$0xf]
        %v2358 = vld [vmem:[#allocation5 + $0x214] sm:$0xf]
        %v2359 = vld [vmem:[#allocation5 + $0x218] sm:$0xf]
        %v2360 = vld [vmem:[#allocation5 + $0x21c] sm:$0xf]
        %v2369 = vunpack.c.l.b16 %v2353
        %v2370 = vunpack.c.l.b16 %v2354
        %v2371 = vunpack.c.l.b16 %v2355
        %v2372 = vunpack.c.l.b16 %v2356
        %v2373 = vunpack.c.l.b16 %v2357
        %v2374 = vunpack.c.l.b16 %v2358
        %v2375 = vunpack.c.l.b16 %v2359
        %v2376 = vunpack.c.l.b16 %v2360
        %v2377 = vpack.c.b16 %v2370, %v2369
        %v2378 = vpack.c.b16 %v2372, %v2371
        %v2379 = vpack.c.b16 %v2374, %v2373
        %v2380 = vpack.c.b16 %v2376, %v2375
        %v2386 = vsel %vm343, %v2337, 0
        %v2389 = vsel %vm343, %v2338, 0
        %v2392 = vsel %vm343, %v2339, 0
        %v2395 = vsel %vm343, %v2340, 0
        %v2398 = vsel %vm343, %v2341, 0
        %v2401 = vsel %vm343, %v2342, 0
        %v2404 = vsel %vm343, %v2343, 0
        %v2407 = vsel %vm343, %v2344, 0
        %v2410 = vsel %vm343, %v2345, 0
        %v2413 = vsel %vm343, %v2346, 0
        %v2416 = vsel %vm343, %v2347, 0
        %v2419 = vsel %vm343, %v2348, 0
        %v2422 = vsel %vm343, %v2349, 0
        %v2425 = vsel %vm343, %v2350, 0
        %v2428 = vsel %vm343, %v2351, 0
        %v2431 = vsel %vm343, %v2352, 0
        %2433 = vmatpush.bf16.msra.mxu0 0
        %2434 = vmatpush.bf16.msra.mxu0 0
        %2435 = vmatpush.bf16.msra.mxu0 0
        %2436 = vmatpush.bf16.msra.mxu0 0
        %2437 = vmatpush.bf16.msra.mxu0 %v2380
        %2438 = vmatpush.bf16.msra.mxu0 %v2379
        %2439 = vmatpush.bf16.msra.mxu0 %v2378
        %2440 = vmatpush.bf16.msra.mxu0 %v2377
        %2441 = vmatmul.bf16.gmra.mxu0 %v2386
        %v2442 = vpop.f32.mrf.mxu0
        %v2443 = vadd.f32 0.0, %v2442
        %v2444 = vpop.f32.mrf.mxu0
        %v2445 = vadd.f32 0.0, %v2444
        %2446 = vmatmul.bf16.gmra.mxu0 %v2389
        %v2447 = vpop.f32.mrf.mxu0
        %v2448 = vadd.f32 0.0, %v2447
        %v2449 = vpop.f32.mrf.mxu0
        %v2450 = vadd.f32 0.0, %v2449
        %2451 = vmatmul.bf16.gmra.mxu0 %v2392
        %v2452 = vpop.f32.mrf.mxu0
        %v2453 = vadd.f32 0.0, %v2452
        %v2454 = vpop.f32.mrf.mxu0
        %v2455 = vadd.f32 0.0, %v2454
        %2456 = vmatmul.bf16.gmra.mxu0 %v2395
        %v2457 = vpop.f32.mrf.mxu0
        %v2458 = vadd.f32 0.0, %v2457
        %v2459 = vpop.f32.mrf.mxu0
        %v2460 = vadd.f32 0.0, %v2459
        %2461 = vmatmul.bf16.gmra.mxu0 %v2398
        %v2462 = vpop.f32.mrf.mxu0
        %v2463 = vadd.f32 0.0, %v2462
        %v2464 = vpop.f32.mrf.mxu0
        %v2465 = vadd.f32 0.0, %v2464
        %2466 = vmatmul.bf16.gmra.mxu0 %v2401
        %v2467 = vpop.f32.mrf.mxu0
        %v2468 = vadd.f32 0.0, %v2467
        %v2469 = vpop.f32.mrf.mxu0
        %v2470 = vadd.f32 0.0, %v2469
        %2471 = vmatmul.bf16.gmra.mxu0 %v2404
        %v2472 = vpop.f32.mrf.mxu0
        %v2473 = vadd.f32 0.0, %v2472
        %v2474 = vpop.f32.mrf.mxu0
        %v2475 = vadd.f32 0.0, %v2474
        %2476 = vmatmul.bf16.gmra.mxu0 %v2407
        %v2477 = vpop.f32.mrf.mxu0
        %v2478 = vadd.f32 0.0, %v2477
        %v2479 = vpop.f32.mrf.mxu0
        %v2480 = vadd.f32 0.0, %v2479
        %2481 = vmatmul.bf16.gmra.mxu0 %v2410
        %v2482 = vpop.f32.mrf.mxu0
        %v2483 = vadd.f32 0.0, %v2482
        %v2484 = vpop.f32.mrf.mxu0
        %v2485 = vadd.f32 0.0, %v2484
        %2486 = vmatmul.bf16.gmra.mxu0 %v2413
        %v2487 = vpop.f32.mrf.mxu0
        %v2488 = vadd.f32 0.0, %v2487
        %v2489 = vpop.f32.mrf.mxu0
        %v2490 = vadd.f32 0.0, %v2489
        %2491 = vmatmul.bf16.gmra.mxu0 %v2416
        %v2492 = vpop.f32.mrf.mxu0
        %v2493 = vadd.f32 0.0, %v2492
        %v2494 = vpop.f32.mrf.mxu0
        %v2495 = vadd.f32 0.0, %v2494
        %2496 = vmatmul.bf16.gmra.mxu0 %v2419
        %v2497 = vpop.f32.mrf.mxu0
        %v2498 = vadd.f32 0.0, %v2497
        %v2499 = vpop.f32.mrf.mxu0
        %v2500 = vadd.f32 0.0, %v2499
        %2501 = vmatmul.bf16.gmra.mxu0 %v2422
        %v2502 = vpop.f32.mrf.mxu0
        %v2503 = vadd.f32 0.0, %v2502
        %v2504 = vpop.f32.mrf.mxu0
        %v2505 = vadd.f32 0.0, %v2504
        %2506 = vmatmul.bf16.gmra.mxu0 %v2425
        %v2507 = vpop.f32.mrf.mxu0
        %v2508 = vadd.f32 0.0, %v2507
        %v2509 = vpop.f32.mrf.mxu0
        %v2510 = vadd.f32 0.0, %v2509
        %2511 = vmatmul.bf16.gmra.mxu0 %v2428
        %v2512 = vpop.f32.mrf.mxu0
        %v2513 = vadd.f32 0.0, %v2512
        %v2514 = vpop.f32.mrf.mxu0
        %v2515 = vadd.f32 0.0, %v2514
        %2516 = vmatmul.bf16.gmra.mxu0 %v2431
        %v2517 = vpop.f32.mrf.mxu0
        %v2518 = vadd.f32 0.0, %v2517
        %v2519 = vpop.f32.mrf.mxu0
        %v2520 = vadd.f32 0.0, %v2519
        %2521 = vdwg.mxu0
        %v2522 = vadd.f32 %v2273, %v2443
        %v2523 = vadd.f32 %v2274, %v2445
        %v2524 = vadd.f32 %v2275, %v2448
        %v2525 = vadd.f32 %v2276, %v2450
        %v2526 = vadd.f32 %v2277, %v2453
        %v2527 = vadd.f32 %v2278, %v2455
        %v2528 = vadd.f32 %v2279, %v2458
        %v2529 = vadd.f32 %v2280, %v2460
        %v2530 = vadd.f32 %v2281, %v2463
        %v2531 = vadd.f32 %v2282, %v2465
        %v2532 = vadd.f32 %v2283, %v2468
        %v2533 = vadd.f32 %v2284, %v2470
        %v2534 = vadd.f32 %v2285, %v2473
        %v2535 = vadd.f32 %v2286, %v2475
        %v2536 = vadd.f32 %v2287, %v2478
        %v2537 = vadd.f32 %v2288, %v2480
        %v2538 = vadd.f32 %v2289, %v2483
        %v2539 = vadd.f32 %v2290, %v2485
        %v2540 = vadd.f32 %v2291, %v2488
        %v2541 = vadd.f32 %v2292, %v2490
        %v2542 = vadd.f32 %v2293, %v2493
        %v2543 = vadd.f32 %v2294, %v2495
        %v2544 = vadd.f32 %v2295, %v2498
        %v2545 = vadd.f32 %v2296, %v2500
        %v2546 = vadd.f32 %v2297, %v2503
        %v2547 = vadd.f32 %v2298, %v2505
        %v2548 = vadd.f32 %v2299, %v2508
        %v2549 = vadd.f32 %v2300, %v2510
        %v2550 = vadd.f32 %v2301, %v2513
        %v2551 = vadd.f32 %v2302, %v2515
        %v2552 = vadd.f32 %v2303, %v2518
        %v2553 = vadd.f32 %v2304, %v2520
        %v2554 = vld [vmem:[%s2] sm:$0x1]
        %v2556 = vperm.slane %v2554, 0
        %v2558 = vadd.f32 %v2522, %v2556
        %v2559 = vadd.f32 %v2523, %v2556
        %v2560 = vadd.f32 %v2524, %v2556
        %v2561 = vadd.f32 %v2525, %v2556
        %v2562 = vadd.f32 %v2526, %v2556
        %v2563 = vadd.f32 %v2527, %v2556
        %v2564 = vadd.f32 %v2528, %v2556
        %v2565 = vadd.f32 %v2529, %v2556
        %v2566 = vadd.f32 %v2530, %v2556
        %v2567 = vadd.f32 %v2531, %v2556
        %v2568 = vadd.f32 %v2532, %v2556
        %v2569 = vadd.f32 %v2533, %v2556
        %v2570 = vadd.f32 %v2534, %v2556
        %v2571 = vadd.f32 %v2535, %v2556
        %v2572 = vadd.f32 %v2536, %v2556
        %v2573 = vadd.f32 %v2537, %v2556
        %v2574 = vadd.f32 %v2538, %v2556
        %v2575 = vadd.f32 %v2539, %v2556
        %v2576 = vadd.f32 %v2540, %v2556
        %v2577 = vadd.f32 %v2541, %v2556
        %v2578 = vadd.f32 %v2542, %v2556
        %v2579 = vadd.f32 %v2543, %v2556
        %v2580 = vadd.f32 %v2544, %v2556
        %v2581 = vadd.f32 %v2545, %v2556
        %v2582 = vadd.f32 %v2546, %v2556
        %v2583 = vadd.f32 %v2547, %v2556
        %v2584 = vadd.f32 %v2548, %v2556
        %v2585 = vadd.f32 %v2549, %v2556
        %v2586 = vadd.f32 %v2550, %v2556
        %v2587 = vadd.f32 %v2551, %v2556
        %v2588 = vadd.f32 %v2552, %v2556
        %v2589 = vadd.f32 %v2553, %v2556
        %v2590 = vmax.f32 %v2558, 0.0
        %v2591 = vmax.f32 %v2559, 0.0
        %v2592 = vmax.f32 %v2560, 0.0
        %v2593 = vmax.f32 %v2561, 0.0
        %v2594 = vmax.f32 %v2562, 0.0
        %v2595 = vmax.f32 %v2563, 0.0
        %v2596 = vmax.f32 %v2564, 0.0
        %v2597 = vmax.f32 %v2565, 0.0
        %v2598 = vmax.f32 %v2566, 0.0
        %v2599 = vmax.f32 %v2567, 0.0
        %v2600 = vmax.f32 %v2568, 0.0
        %v2601 = vmax.f32 %v2569, 0.0
        %v2602 = vmax.f32 %v2570, 0.0
        %v2603 = vmax.f32 %v2571, 0.0
        %v2604 = vmax.f32 %v2572, 0.0
        %v2605 = vmax.f32 %v2573, 0.0
        %v2606 = vmax.f32 %v2574, 0.0
        %v2607 = vmax.f32 %v2575, 0.0
        %v2608 = vmax.f32 %v2576, 0.0
        %v2609 = vmax.f32 %v2577, 0.0
        %v2610 = vmax.f32 %v2578, 0.0
        %v2611 = vmax.f32 %v2579, 0.0
        %v2612 = vmax.f32 %v2580, 0.0
        %v2613 = vmax.f32 %v2581, 0.0
        %v2614 = vmax.f32 %v2582, 0.0
        %v2615 = vmax.f32 %v2583, 0.0
        %v2616 = vmax.f32 %v2584, 0.0
        %v2617 = vmax.f32 %v2585, 0.0
        %v2618 = vmax.f32 %v2586, 0.0
        %v2619 = vmax.f32 %v2587, 0.0
        %v2620 = vmax.f32 %v2588, 0.0
        %v2621 = vmax.f32 %v2589, 0.0
        %2622 = vst [vmem:[%s342 + $0x8] sm:$0xff] %v2590
        %2623 = vst [vmem:[%s342 + $0x10] sm:$0xff] %v2591
        %2624 = vst [vmem:[%s342 + $0x28] sm:$0xff] %v2592
        %2625 = vst [vmem:[%s342 + $0x30] sm:$0xff] %v2593
        %2626 = vst [vmem:[%s342 + $0x48] sm:$0xff] %v2594
        %2627 = vst [vmem:[%s342 + $0x50] sm:$0xff] %v2595
        %2628 = vst [vmem:[%s342 + $0x68] sm:$0xff] %v2596
        %2629 = vst [vmem:[%s342 + $0x70] sm:$0xff] %v2597
        %2630 = vst [vmem:[%s342 + $0x88] sm:$0xff] %v2598
        %2631 = vst [vmem:[%s342 + $0x90] sm:$0xff] %v2599
        %2632 = vst [vmem:[%s342 + $0xa8] sm:$0xff] %v2600
        %2633 = vst [vmem:[%s342 + $0xb0] sm:$0xff] %v2601
        %2634 = vst [vmem:[%s342 + $0xc8] sm:$0xff] %v2602
        %2635 = vst [vmem:[%s342 + $0xd0] sm:$0xff] %v2603
        %2636 = vst [vmem:[%s342 + $0xe8] sm:$0xff] %v2604
        %2637 = vst [vmem:[%s342 + $0xf0] sm:$0xff] %v2605
        %2638 = vst [vmem:[%s342 + $0x108] sm:$0xff] %v2606
        %2639 = vst [vmem:[%s342 + $0x110] sm:$0xff] %v2607
        %2640 = vst [vmem:[%s342 + $0x128] sm:$0xff] %v2608
        %2641 = vst [vmem:[%s342 + $0x130] sm:$0xff] %v2609
        %2642 = vst [vmem:[%s342 + $0x148] sm:$0xff] %v2610
        %2643 = vst [vmem:[%s342 + $0x150] sm:$0xff] %v2611
        %2644 = vst [vmem:[%s342 + $0x168] sm:$0xff] %v2612
        %2645 = vst [vmem:[%s342 + $0x170] sm:$0xff] %v2613
        %2646 = vst [vmem:[%s342 + $0x188] sm:$0xff] %v2614
        %2647 = vst [vmem:[%s342 + $0x190] sm:$0xff] %v2615
        %2648 = vst [vmem:[%s342 + $0x1a8] sm:$0xff] %v2616
        %2649 = vst [vmem:[%s342 + $0x1b0] sm:$0xff] %v2617
        %2650 = vst [vmem:[%s342 + $0x1c8] sm:$0xff] %v2618
        %2651 = vst [vmem:[%s342 + $0x1d0] sm:$0xff] %v2619
        %2652 = vst [vmem:[%s342 + $0x1e8] sm:$0xff] %v2620
        %2653 = vst [vmem:[%s342 + $0x1f0] sm:$0xff] %v2621
        %v2654 = vld [vmem:[#allocation2 + $0x7] sm:$0xff]
        %v2655 = vld [vmem:[#allocation2 + $0xf] sm:$0xff]
        %v2656 = vld [vmem:[#allocation2 + $0x27] sm:$0xff]
        %v2657 = vld [vmem:[#allocation2 + $0x2f] sm:$0xff]
        %v2658 = vld [vmem:[#allocation2 + $0x47] sm:$0xff]
        %v2659 = vld [vmem:[#allocation2 + $0x4f] sm:$0xff]
        %v2660 = vld [vmem:[#allocation2 + $0x67] sm:$0xff]
        %v2661 = vld [vmem:[#allocation2 + $0x6f] sm:$0xff]
        %v2662 = vld [vmem:[#allocation2 + $0x87] sm:$0xff]
        %v2663 = vld [vmem:[#allocation2 + $0x8f] sm:$0xff]
        %v2664 = vld [vmem:[#allocation2 + $0xa7] sm:$0xff]
        %v2665 = vld [vmem:[#allocation2 + $0xaf] sm:$0xff]
        %v2666 = vld [vmem:[#allocation2 + $0xc7] sm:$0xff]
        %v2667 = vld [vmem:[#allocation2 + $0xcf] sm:$0xff]
        %v2668 = vld [vmem:[#allocation2 + $0xe7] sm:$0xff]
        %v2669 = vld [vmem:[#allocation2 + $0xef] sm:$0xff]
        %v2670 = vld [vmem:[#allocation2 + $0x107] sm:$0xff]
        %v2671 = vld [vmem:[#allocation2 + $0x10f] sm:$0xff]
        %v2672 = vld [vmem:[#allocation2 + $0x127] sm:$0xff]
        %v2673 = vld [vmem:[#allocation2 + $0x12f] sm:$0xff]
        %v2674 = vld [vmem:[#allocation2 + $0x147] sm:$0xff]
        %v2675 = vld [vmem:[#allocation2 + $0x14f] sm:$0xff]
        %v2676 = vld [vmem:[#allocation2 + $0x167] sm:$0xff]
        %v2677 = vld [vmem:[#allocation2 + $0x16f] sm:$0xff]
        %v2678 = vld [vmem:[#allocation2 + $0x187] sm:$0xff]
        %v2679 = vld [vmem:[#allocation2 + $0x18f] sm:$0xff]
        %v2680 = vld [vmem:[#allocation2 + $0x1a7] sm:$0xff]
        %v2681 = vld [vmem:[#allocation2 + $0x1af] sm:$0xff]
        %v2682 = vld [vmem:[#allocation2 + $0x1c7] sm:$0xff]
        %v2683 = vld [vmem:[#allocation2 + $0x1cf] sm:$0xff]
        %v2684 = vld [vmem:[#allocation2 + $0x1e7] sm:$0xff]
        %v2685 = vld [vmem:[#allocation2 + $0x1ef] sm:$0xff]
        %v2686 = vpack.c.bf16 %v2655, %v2654
        %v2687 = vpack.c.bf16 %v2657, %v2656
        %v2688 = vpack.c.bf16 %v2659, %v2658
        %v2689 = vpack.c.bf16 %v2661, %v2660
        %v2690 = vpack.c.bf16 %v2663, %v2662
        %v2691 = vpack.c.bf16 %v2665, %v2664
        %v2692 = vpack.c.bf16 %v2667, %v2666
        %v2693 = vpack.c.bf16 %v2669, %v2668
        %v2694 = vpack.c.bf16 %v2671, %v2670
        %v2695 = vpack.c.bf16 %v2673, %v2672
        %v2696 = vpack.c.bf16 %v2675, %v2674
        %v2697 = vpack.c.bf16 %v2677, %v2676
        %v2698 = vpack.c.bf16 %v2679, %v2678
        %v2699 = vpack.c.bf16 %v2681, %v2680
        %v2700 = vpack.c.bf16 %v2683, %v2682
        %v2701 = vpack.c.bf16 %v2685, %v2684
        %v2702 = vld [vmem:[#allocation5 + $0x240] sm:$0xf]
        %v2703 = vld [vmem:[#allocation5 + $0x244] sm:$0xf]
        %v2704 = vld [vmem:[#allocation5 + $0x248] sm:$0xf]
        %v2705 = vld [vmem:[#allocation5 + $0x24c] sm:$0xf]
        %v2706 = vld [vmem:[#allocation5 + $0x250] sm:$0xf]
        %v2707 = vld [vmem:[#allocation5 + $0x254] sm:$0xf]
        %v2708 = vld [vmem:[#allocation5 + $0x258] sm:$0xf]
        %v2709 = vld [vmem:[#allocation5 + $0x25c] sm:$0xf]
        %v2710 = vld [vmem:[#allocation5 + $0x260] sm:$0xf]
        %v2711 = vld [vmem:[#allocation5 + $0x264] sm:$0xf]
        %v2712 = vld [vmem:[#allocation5 + $0x268] sm:$0xf]
        %v2713 = vld [vmem:[#allocation5 + $0x26c] sm:$0xf]
        %v2714 = vld [vmem:[#allocation5 + $0x270] sm:$0xf]
        %v2715 = vld [vmem:[#allocation5 + $0x274] sm:$0xf]
        %v2716 = vld [vmem:[#allocation5 + $0x278] sm:$0xf]
        %v2717 = vld [vmem:[#allocation5 + $0x27c] sm:$0xf]
        %v2718 = vld [vmem:[#allocation2 + $0x8] sm:$0xff]
        %v2719 = vld [vmem:[#allocation2 + $0x10] sm:$0xff]
        %v2720 = vld [vmem:[#allocation2 + $0x28] sm:$0xff]
        %v2721 = vld [vmem:[#allocation2 + $0x30] sm:$0xff]
        %v2722 = vld [vmem:[#allocation2 + $0x48] sm:$0xff]
        %v2723 = vld [vmem:[#allocation2 + $0x50] sm:$0xff]
        %v2724 = vld [vmem:[#allocation2 + $0x68] sm:$0xff]
        %v2725 = vld [vmem:[#allocation2 + $0x70] sm:$0xff]
        %v2726 = vld [vmem:[#allocation2 + $0x88] sm:$0xff]
        %v2727 = vld [vmem:[#allocation2 + $0x90] sm:$0xff]
        %v2728 = vld [vmem:[#allocation2 + $0xa8] sm:$0xff]
        %v2729 = vld [vmem:[#allocation2 + $0xb0] sm:$0xff]
        %v2730 = vld [vmem:[#allocation2 + $0xc8] sm:$0xff]
        %v2731 = vld [vmem:[#allocation2 + $0xd0] sm:$0xff]
        %v2732 = vld [vmem:[#allocation2 + $0xe8] sm:$0xff]
        %v2733 = vld [vmem:[#allocation2 + $0xf0] sm:$0xff]
        %v2734 = vld [vmem:[#allocation2 + $0x108] sm:$0xff]
        %v2735 = vld [vmem:[#allocation2 + $0x110] sm:$0xff]
        %v2736 = vld [vmem:[#allocation2 + $0x128] sm:$0xff]
        %v2737 = vld [vmem:[#allocation2 + $0x130] sm:$0xff]
        %v2738 = vld [vmem:[#allocation2 + $0x148] sm:$0xff]
        %v2739 = vld [vmem:[#allocation2 + $0x150] sm:$0xff]
        %v2740 = vld [vmem:[#allocation2 + $0x168] sm:$0xff]
        %v2741 = vld [vmem:[#allocation2 + $0x170] sm:$0xff]
        %v2742 = vld [vmem:[#allocation2 + $0x188] sm:$0xff]
        %v2743 = vld [vmem:[#allocation2 + $0x190] sm:$0xff]
        %v2744 = vld [vmem:[#allocation2 + $0x1a8] sm:$0xff]
        %v2745 = vld [vmem:[#allocation2 + $0x1b0] sm:$0xff]
        %v2746 = vld [vmem:[#allocation2 + $0x1c8] sm:$0xff]
        %v2747 = vld [vmem:[#allocation2 + $0x1d0] sm:$0xff]
        %v2748 = vld [vmem:[#allocation2 + $0x1e8] sm:$0xff]
        %v2749 = vld [vmem:[#allocation2 + $0x1f0] sm:$0xff]
        %v2750 = vpack.c.bf16 %v2719, %v2718
        %v2751 = vpack.c.bf16 %v2721, %v2720
        %v2752 = vpack.c.bf16 %v2723, %v2722
        %v2753 = vpack.c.bf16 %v2725, %v2724
        %v2754 = vpack.c.bf16 %v2727, %v2726
        %v2755 = vpack.c.bf16 %v2729, %v2728
        %v2756 = vpack.c.bf16 %v2731, %v2730
        %v2757 = vpack.c.bf16 %v2733, %v2732
        %v2758 = vpack.c.bf16 %v2735, %v2734
        %v2759 = vpack.c.bf16 %v2737, %v2736
        %v2760 = vpack.c.bf16 %v2739, %v2738
        %v2761 = vpack.c.bf16 %v2741, %v2740
        %v2762 = vpack.c.bf16 %v2743, %v2742
        %v2763 = vpack.c.bf16 %v2745, %v2744
        %v2764 = vpack.c.bf16 %v2747, %v2746
        %v2765 = vpack.c.bf16 %v2749, %v2748
        %v2766 = vld [vmem:[#allocation5 + $0x280] sm:$0xf]
        %v2767 = vld [vmem:[#allocation5 + $0x284] sm:$0xf]
        %v2768 = vld [vmem:[#allocation5 + $0x288] sm:$0xf]
        %v2769 = vld [vmem:[#allocation5 + $0x28c] sm:$0xf]
        %v2770 = vld [vmem:[#allocation5 + $0x290] sm:$0xf]
        %v2771 = vld [vmem:[#allocation5 + $0x294] sm:$0xf]
        %v2772 = vld [vmem:[#allocation5 + $0x298] sm:$0xf]
        %v2773 = vld [vmem:[#allocation5 + $0x29c] sm:$0xf]
        %v2774 = vld [vmem:[#allocation5 + $0x2a0] sm:$0xf]
        %v2775 = vld [vmem:[#allocation5 + $0x2a4] sm:$0xf]
        %v2776 = vld [vmem:[#allocation5 + $0x2a8] sm:$0xf]
        %v2777 = vld [vmem:[#allocation5 + $0x2ac] sm:$0xf]
        %v2778 = vld [vmem:[#allocation5 + $0x2b0] sm:$0xf]
        %v2779 = vld [vmem:[#allocation5 + $0x2b4] sm:$0xf]
        %v2780 = vld [vmem:[#allocation5 + $0x2b8] sm:$0xf]
        %v2781 = vld [vmem:[#allocation5 + $0x2bc] sm:$0xf]
        %v2798 = vunpack.c.l.b16 %v2766
        %v2799 = vunpack.c.l.b16 %v2767
        %v2800 = vunpack.c.l.b16 %v2768
        %v2801 = vunpack.c.l.b16 %v2769
        %v2802 = vunpack.c.l.b16 %v2770
        %v2803 = vunpack.c.l.b16 %v2771
        %v2804 = vunpack.c.l.b16 %v2772
        %v2805 = vunpack.c.l.b16 %v2773
        %v2806 = vunpack.c.l.b16 %v2774
        %v2807 = vunpack.c.l.b16 %v2775
        %v2808 = vunpack.c.l.b16 %v2776
        %v2809 = vunpack.c.l.b16 %v2777
        %v2810 = vunpack.c.l.b16 %v2778
        %v2811 = vunpack.c.l.b16 %v2779
        %v2812 = vunpack.c.l.b16 %v2780
        %v2813 = vunpack.c.l.b16 %v2781
        %v2814 = vpack.c.b16 %v2799, %v2798
        %v2815 = vpack.c.b16 %v2801, %v2800
        %v2816 = vpack.c.b16 %v2803, %v2802
        %v2817 = vpack.c.b16 %v2805, %v2804
        %v2818 = vpack.c.b16 %v2807, %v2806
        %v2819 = vpack.c.b16 %v2809, %v2808
        %v2820 = vpack.c.b16 %v2811, %v2810
        %v2821 = vpack.c.b16 %v2813, %v2812
        %2830 = vmatpush.bf16.msra.mxu0 %v2821
        %2831 = vmatpush.bf16.msra.mxu0 %v2820
        %2832 = vmatpush.bf16.msra.mxu0 %v2819
        %2833 = vmatpush.bf16.msra.mxu0 %v2818
        %2834 = vmatpush.bf16.msra.mxu0 %v2817
        %2835 = vmatpush.bf16.msra.mxu0 %v2816
        %2836 = vmatpush.bf16.msra.mxu0 %v2815
        %2837 = vmatpush.bf16.msra.mxu0 %v2814
        %2838 = vmatmul.bf16.gmra.mxu0 %v2750
        %v2839 = vpop.f32.mrf.mxu0
        %v2840 = vadd.f32 0.0, %v2839
        %v2841 = vpop.f32.mrf.mxu0
        %v2842 = vadd.f32 0.0, %v2841
        %2843 = vmatmul.bf16.gmra.mxu0 %v2751
        %v2844 = vpop.f32.mrf.mxu0
        %v2845 = vadd.f32 0.0, %v2844
        %v2846 = vpop.f32.mrf.mxu0
        %v2847 = vadd.f32 0.0, %v2846
        %2848 = vmatmul.bf16.gmra.mxu0 %v2752
        %v2849 = vpop.f32.mrf.mxu0
        %v2850 = vadd.f32 0.0, %v2849
        %v2851 = vpop.f32.mrf.mxu0
        %v2852 = vadd.f32 0.0, %v2851
        %2853 = vmatmul.bf16.gmra.mxu0 %v2753
        %v2854 = vpop.f32.mrf.mxu0
        %v2855 = vadd.f32 0.0, %v2854
        %v2856 = vpop.f32.mrf.mxu0
        %v2857 = vadd.f32 0.0, %v2856
        %2858 = vmatmul.bf16.gmra.mxu0 %v2754
        %v2859 = vpop.f32.mrf.mxu0
        %v2860 = vadd.f32 0.0, %v2859
        %v2861 = vpop.f32.mrf.mxu0
        %v2862 = vadd.f32 0.0, %v2861
        %2863 = vmatmul.bf16.gmra.mxu0 %v2755
        %v2864 = vpop.f32.mrf.mxu0
        %v2865 = vadd.f32 0.0, %v2864
        %v2866 = vpop.f32.mrf.mxu0
        %v2867 = vadd.f32 0.0, %v2866
        %2868 = vmatmul.bf16.gmra.mxu0 %v2756
        %v2869 = vpop.f32.mrf.mxu0
        %v2870 = vadd.f32 0.0, %v2869
        %v2871 = vpop.f32.mrf.mxu0
        %v2872 = vadd.f32 0.0, %v2871
        %2873 = vmatmul.bf16.gmra.mxu0 %v2757
        %v2874 = vpop.f32.mrf.mxu0
        %v2875 = vadd.f32 0.0, %v2874
        %v2876 = vpop.f32.mrf.mxu0
        %v2877 = vadd.f32 0.0, %v2876
        %2878 = vmatmul.bf16.gmra.mxu0 %v2758
        %v2879 = vpop.f32.mrf.mxu0
        %v2880 = vadd.f32 0.0, %v2879
        %v2881 = vpop.f32.mrf.mxu0
        %v2882 = vadd.f32 0.0, %v2881
        %2883 = vmatmul.bf16.gmra.mxu0 %v2759
        %v2884 = vpop.f32.mrf.mxu0
        %v2885 = vadd.f32 0.0, %v2884
        %v2886 = vpop.f32.mrf.mxu0
        %v2887 = vadd.f32 0.0, %v2886
        %2888 = vmatmul.bf16.gmra.mxu0 %v2760
        %v2889 = vpop.f32.mrf.mxu0
        %v2890 = vadd.f32 0.0, %v2889
        %v2891 = vpop.f32.mrf.mxu0
        %v2892 = vadd.f32 0.0, %v2891
        %2893 = vmatmul.bf16.gmra.mxu0 %v2761
        %v2894 = vpop.f32.mrf.mxu0
        %v2895 = vadd.f32 0.0, %v2894
        %v2896 = vpop.f32.mrf.mxu0
        %v2897 = vadd.f32 0.0, %v2896
        %2898 = vmatmul.bf16.gmra.mxu0 %v2762
        %v2899 = vpop.f32.mrf.mxu0
        %v2900 = vadd.f32 0.0, %v2899
        %v2901 = vpop.f32.mrf.mxu0
        %v2902 = vadd.f32 0.0, %v2901
        %2903 = vmatmul.bf16.gmra.mxu0 %v2763
        %v2904 = vpop.f32.mrf.mxu0
        %v2905 = vadd.f32 0.0, %v2904
        %v2906 = vpop.f32.mrf.mxu0
        %v2907 = vadd.f32 0.0, %v2906
        %2908 = vmatmul.bf16.gmra.mxu0 %v2764
        %v2909 = vpop.f32.mrf.mxu0
        %v2910 = vadd.f32 0.0, %v2909
        %v2911 = vpop.f32.mrf.mxu0
        %v2912 = vadd.f32 0.0, %v2911
        %2913 = vmatmul.bf16.gmra.mxu0 %v2765
        %v2914 = vpop.f32.mrf.mxu0
        %v2915 = vadd.f32 0.0, %v2914
        %v2916 = vpop.f32.mrf.mxu0
        %v2917 = vadd.f32 0.0, %v2916
        %2918 = vdwg.mxu0
        %v2935 = vunpack.c.l.b16 %v2702
        %v2936 = vunpack.c.l.b16 %v2703
        %v2937 = vunpack.c.l.b16 %v2704
        %v2938 = vunpack.c.l.b16 %v2705
        %v2939 = vunpack.c.l.b16 %v2706
        %v2940 = vunpack.c.l.b16 %v2707
        %v2941 = vunpack.c.l.b16 %v2708
        %v2942 = vunpack.c.l.b16 %v2709
        %v2943 = vunpack.c.l.b16 %v2710
        %v2944 = vunpack.c.l.b16 %v2711
        %v2945 = vunpack.c.l.b16 %v2712
        %v2946 = vunpack.c.l.b16 %v2713
        %v2947 = vunpack.c.l.b16 %v2714
        %v2948 = vunpack.c.l.b16 %v2715
        %v2949 = vunpack.c.l.b16 %v2716
        %v2950 = vunpack.c.l.b16 %v2717
        %v2951 = vpack.c.b16 %v2936, %v2935
        %v2952 = vpack.c.b16 %v2938, %v2937
        %v2953 = vpack.c.b16 %v2940, %v2939
        %v2954 = vpack.c.b16 %v2942, %v2941
        %v2955 = vpack.c.b16 %v2944, %v2943
        %v2956 = vpack.c.b16 %v2946, %v2945
        %v2957 = vpack.c.b16 %v2948, %v2947
        %v2958 = vpack.c.b16 %v2950, %v2949
        %2967 = vmatpush.bf16.msra.mxu0 %v2958
        %2968 = vmatpush.bf16.msra.mxu0 %v2957
        %2969 = vmatpush.bf16.msra.mxu0 %v2956
        %2970 = vmatpush.bf16.msra.mxu0 %v2955
        %2971 = vmatpush.bf16.msra.mxu0 %v2954
        %2972 = vmatpush.bf16.msra.mxu0 %v2953
        %2973 = vmatpush.bf16.msra.mxu0 %v2952
        %2974 = vmatpush.bf16.msra.mxu0 %v2951
        %2975 = vmatmul.bf16.gmra.mxu0 %v2686
        %v2976 = vpop.f32.mrf.mxu0
        %v2977 = vadd.f32 %v2840, %v2976
        %v2978 = vpop.f32.mrf.mxu0
        %v2979 = vadd.f32 %v2842, %v2978
        %2980 = vmatmul.bf16.gmra.mxu0 %v2687
        %v2981 = vpop.f32.mrf.mxu0
        %v2982 = vadd.f32 %v2845, %v2981
        %v2983 = vpop.f32.mrf.mxu0
        %v2984 = vadd.f32 %v2847, %v2983
        %2985 = vmatmul.bf16.gmra.mxu0 %v2688
        %v2986 = vpop.f32.mrf.mxu0
        %v2987 = vadd.f32 %v2850, %v2986
        %v2988 = vpop.f32.mrf.mxu0
        %v2989 = vadd.f32 %v2852, %v2988
        %2990 = vmatmul.bf16.gmra.mxu0 %v2689
        %v2991 = vpop.f32.mrf.mxu0
        %v2992 = vadd.f32 %v2855, %v2991
        %v2993 = vpop.f32.mrf.mxu0
        %v2994 = vadd.f32 %v2857, %v2993
        %2995 = vmatmul.bf16.gmra.mxu0 %v2690
        %v2996 = vpop.f32.mrf.mxu0
        %v2997 = vadd.f32 %v2860, %v2996
        %v2998 = vpop.f32.mrf.mxu0
        %v2999 = vadd.f32 %v2862, %v2998
        %3000 = vmatmul.bf16.gmra.mxu0 %v2691
        %v3001 = vpop.f32.mrf.mxu0
        %v3002 = vadd.f32 %v2865, %v3001
        %v3003 = vpop.f32.mrf.mxu0
        %v3004 = vadd.f32 %v2867, %v3003
        %3005 = vmatmul.bf16.gmra.mxu0 %v2692
        %v3006 = vpop.f32.mrf.mxu0
        %v3007 = vadd.f32 %v2870, %v3006
        %v3008 = vpop.f32.mrf.mxu0
        %v3009 = vadd.f32 %v2872, %v3008
        %3010 = vmatmul.bf16.gmra.mxu0 %v2693
        %v3011 = vpop.f32.mrf.mxu0
        %v3012 = vadd.f32 %v2875, %v3011
        %v3013 = vpop.f32.mrf.mxu0
        %v3014 = vadd.f32 %v2877, %v3013
        %3015 = vmatmul.bf16.gmra.mxu0 %v2694
        %v3016 = vpop.f32.mrf.mxu0
        %v3017 = vadd.f32 %v2880, %v3016
        %v3018 = vpop.f32.mrf.mxu0
        %v3019 = vadd.f32 %v2882, %v3018
        %3020 = vmatmul.bf16.gmra.mxu0 %v2695
        %v3021 = vpop.f32.mrf.mxu0
        %v3022 = vadd.f32 %v2885, %v3021
        %v3023 = vpop.f32.mrf.mxu0
        %v3024 = vadd.f32 %v2887, %v3023
        %3025 = vmatmul.bf16.gmra.mxu0 %v2696
        %v3026 = vpop.f32.mrf.mxu0
        %v3027 = vadd.f32 %v2890, %v3026
        %v3028 = vpop.f32.mrf.mxu0
        %v3029 = vadd.f32 %v2892, %v3028
        %3030 = vmatmul.bf16.gmra.mxu0 %v2697
        %v3031 = vpop.f32.mrf.mxu0
        %v3032 = vadd.f32 %v2895, %v3031
        %v3033 = vpop.f32.mrf.mxu0
        %v3034 = vadd.f32 %v2897, %v3033
        %3035 = vmatmul.bf16.gmra.mxu0 %v2698
        %v3036 = vpop.f32.mrf.mxu0
        %v3037 = vadd.f32 %v2900, %v3036
        %v3038 = vpop.f32.mrf.mxu0
        %v3039 = vadd.f32 %v2902, %v3038
        %3040 = vmatmul.bf16.gmra.mxu0 %v2699
        %v3041 = vpop.f32.mrf.mxu0
        %v3042 = vadd.f32 %v2905, %v3041
        %v3043 = vpop.f32.mrf.mxu0
        %v3044 = vadd.f32 %v2907, %v3043
        %3045 = vmatmul.bf16.gmra.mxu0 %v2700
        %v3046 = vpop.f32.mrf.mxu0
        %v3047 = vadd.f32 %v2910, %v3046
        %v3048 = vpop.f32.mrf.mxu0
        %v3049 = vadd.f32 %v2912, %v3048
        %3050 = vmatmul.bf16.gmra.mxu0 %v2701
        %v3051 = vpop.f32.mrf.mxu0
        %v3052 = vadd.f32 %v2915, %v3051
        %v3053 = vpop.f32.mrf.mxu0
        %v3054 = vadd.f32 %v2917, %v3053
        %3055 = vdwg.mxu0
        %v3056 = vld [vmem:[#allocation2 + $0x9] sm:$0xff]
        %v3057 = vld [vmem:[#allocation2 + $0x11] sm:$0xff]
        %v3058 = vld [vmem:[#allocation2 + $0x29] sm:$0xff]
        %v3059 = vld [vmem:[#allocation2 + $0x31] sm:$0xff]
        %v3060 = vld [vmem:[#allocation2 + $0x49] sm:$0xff]
        %v3061 = vld [vmem:[#allocation2 + $0x51] sm:$0xff]
        %v3062 = vld [vmem:[#allocation2 + $0x69] sm:$0xff]
        %v3063 = vld [vmem:[#allocation2 + $0x71] sm:$0xff]
        %v3064 = vld [vmem:[#allocation2 + $0x89] sm:$0xff]
        %v3065 = vld [vmem:[#allocation2 + $0x91] sm:$0xff]
        %v3066 = vld [vmem:[#allocation2 + $0xa9] sm:$0xff]
        %v3067 = vld [vmem:[#allocation2 + $0xb1] sm:$0xff]
        %v3068 = vld [vmem:[#allocation2 + $0xc9] sm:$0xff]
        %v3069 = vld [vmem:[#allocation2 + $0xd1] sm:$0xff]
        %v3070 = vld [vmem:[#allocation2 + $0xe9] sm:$0xff]
        %v3071 = vld [vmem:[#allocation2 + $0xf1] sm:$0xff]
        %v3072 = vld [vmem:[#allocation2 + $0x109] sm:$0xff]
        %v3073 = vld [vmem:[#allocation2 + $0x111] sm:$0xff]
        %v3074 = vld [vmem:[#allocation2 + $0x129] sm:$0xff]
        %v3075 = vld [vmem:[#allocation2 + $0x131] sm:$0xff]
        %v3076 = vld [vmem:[#allocation2 + $0x149] sm:$0xff]
        %v3077 = vld [vmem:[#allocation2 + $0x151] sm:$0xff]
        %v3078 = vld [vmem:[#allocation2 + $0x169] sm:$0xff]
        %v3079 = vld [vmem:[#allocation2 + $0x171] sm:$0xff]
        %v3080 = vld [vmem:[#allocation2 + $0x189] sm:$0xff]
        %v3081 = vld [vmem:[#allocation2 + $0x191] sm:$0xff]
        %v3082 = vld [vmem:[#allocation2 + $0x1a9] sm:$0xff]
        %v3083 = vld [vmem:[#allocation2 + $0x1b1] sm:$0xff]
        %v3084 = vld [vmem:[#allocation2 + $0x1c9] sm:$0xff]
        %v3085 = vld [vmem:[#allocation2 + $0x1d1] sm:$0xff]
        %v3086 = vld [vmem:[#allocation2 + $0x1e9] sm:$0xff]
        %v3087 = vld [vmem:[#allocation2 + $0x1f1] sm:$0xff]
        %v3088 = vpack.c.bf16 %v3057, %v3056
        %v3089 = vpack.c.bf16 %v3059, %v3058
        %v3090 = vpack.c.bf16 %v3061, %v3060
        %v3091 = vpack.c.bf16 %v3063, %v3062
        %v3092 = vpack.c.bf16 %v3065, %v3064
        %v3093 = vpack.c.bf16 %v3067, %v3066
        %v3094 = vpack.c.bf16 %v3069, %v3068
        %v3095 = vpack.c.bf16 %v3071, %v3070
        %v3096 = vpack.c.bf16 %v3073, %v3072
        %v3097 = vpack.c.bf16 %v3075, %v3074
        %v3098 = vpack.c.bf16 %v3077, %v3076
        %v3099 = vpack.c.bf16 %v3079, %v3078
        %v3100 = vpack.c.bf16 %v3081, %v3080
        %v3101 = vpack.c.bf16 %v3083, %v3082
        %v3102 = vpack.c.bf16 %v3085, %v3084
        %v3103 = vpack.c.bf16 %v3087, %v3086
        %v3104 = vld [vmem:[#allocation5 + $0x2c0] sm:$0xf]
        %v3105 = vld [vmem:[#allocation5 + $0x2c4] sm:$0xf]
        %v3106 = vld [vmem:[#allocation5 + $0x2c8] sm:$0xf]
        %v3107 = vld [vmem:[#allocation5 + $0x2cc] sm:$0xf]
        %v3108 = vld [vmem:[#allocation5 + $0x2d0] sm:$0xf]
        %v3109 = vld [vmem:[#allocation5 + $0x2d4] sm:$0xf]
        %v3110 = vld [vmem:[#allocation5 + $0x2d8] sm:$0xf]
        %v3111 = vld [vmem:[#allocation5 + $0x2dc] sm:$0xf]
        %v3112 = vld [vmem:[#allocation5 + $0x2e0] sm:$0xf]
        %v3113 = vld [vmem:[#allocation5 + $0x2e4] sm:$0xf]
        %v3114 = vld [vmem:[#allocation5 + $0x2e8] sm:$0xf]
        %v3115 = vld [vmem:[#allocation5 + $0x2ec] sm:$0xf]
        %v3116 = vld [vmem:[#allocation5 + $0x2f0] sm:$0xf]
        %v3117 = vld [vmem:[#allocation5 + $0x2f4] sm:$0xf]
        %v3118 = vld [vmem:[#allocation5 + $0x2f8] sm:$0xf]
        %v3119 = vld [vmem:[#allocation5 + $0x2fc] sm:$0xf]
        %v3136 = vunpack.c.l.b16 %v3104
        %v3137 = vunpack.c.l.b16 %v3105
        %v3138 = vunpack.c.l.b16 %v3106
        %v3139 = vunpack.c.l.b16 %v3107
        %v3140 = vunpack.c.l.b16 %v3108
        %v3141 = vunpack.c.l.b16 %v3109
        %v3142 = vunpack.c.l.b16 %v3110
        %v3143 = vunpack.c.l.b16 %v3111
        %v3144 = vunpack.c.l.b16 %v3112
        %v3145 = vunpack.c.l.b16 %v3113
        %v3146 = vunpack.c.l.b16 %v3114
        %v3147 = vunpack.c.l.b16 %v3115
        %v3148 = vunpack.c.l.b16 %v3116
        %v3149 = vunpack.c.l.b16 %v3117
        %v3150 = vunpack.c.l.b16 %v3118
        %v3151 = vunpack.c.l.b16 %v3119
        %v3152 = vpack.c.b16 %v3137, %v3136
        %v3153 = vpack.c.b16 %v3139, %v3138
        %v3154 = vpack.c.b16 %v3141, %v3140
        %v3155 = vpack.c.b16 %v3143, %v3142
        %v3156 = vpack.c.b16 %v3145, %v3144
        %v3157 = vpack.c.b16 %v3147, %v3146
        %v3158 = vpack.c.b16 %v3149, %v3148
        %v3159 = vpack.c.b16 %v3151, %v3150
        %3168 = vmatpush.bf16.msra.mxu0 %v3159
        %3169 = vmatpush.bf16.msra.mxu0 %v3158
        %3170 = vmatpush.bf16.msra.mxu0 %v3157
        %3171 = vmatpush.bf16.msra.mxu0 %v3156
        %3172 = vmatpush.bf16.msra.mxu0 %v3155
        %3173 = vmatpush.bf16.msra.mxu0 %v3154
        %3174 = vmatpush.bf16.msra.mxu0 %v3153
        %3175 = vmatpush.bf16.msra.mxu0 %v3152
        %3176 = vmatmul.bf16.gmra.mxu0 %v3088
        %v3177 = vpop.f32.mrf.mxu0
        %v3178 = vadd.f32 0.0, %v3177
        %v3179 = vpop.f32.mrf.mxu0
        %v3180 = vadd.f32 0.0, %v3179
        %3181 = vmatmul.bf16.gmra.mxu0 %v3089
        %v3182 = vpop.f32.mrf.mxu0
        %v3183 = vadd.f32 0.0, %v3182
        %v3184 = vpop.f32.mrf.mxu0
        %v3185 = vadd.f32 0.0, %v3184
        %3186 = vmatmul.bf16.gmra.mxu0 %v3090
        %v3187 = vpop.f32.mrf.mxu0
        %v3188 = vadd.f32 0.0, %v3187
        %v3189 = vpop.f32.mrf.mxu0
        %v3190 = vadd.f32 0.0, %v3189
        %3191 = vmatmul.bf16.gmra.mxu0 %v3091
        %v3192 = vpop.f32.mrf.mxu0
        %v3193 = vadd.f32 0.0, %v3192
        %v3194 = vpop.f32.mrf.mxu0
        %v3195 = vadd.f32 0.0, %v3194
        %3196 = vmatmul.bf16.gmra.mxu0 %v3092
        %v3197 = vpop.f32.mrf.mxu0
        %v3198 = vadd.f32 0.0, %v3197
        %v3199 = vpop.f32.mrf.mxu0
        %v3200 = vadd.f32 0.0, %v3199
        %3201 = vmatmul.bf16.gmra.mxu0 %v3093
        %v3202 = vpop.f32.mrf.mxu0
        %v3203 = vadd.f32 0.0, %v3202
        %v3204 = vpop.f32.mrf.mxu0
        %v3205 = vadd.f32 0.0, %v3204
        %3206 = vmatmul.bf16.gmra.mxu0 %v3094
        %v3207 = vpop.f32.mrf.mxu0
        %v3208 = vadd.f32 0.0, %v3207
        %v3209 = vpop.f32.mrf.mxu0
        %v3210 = vadd.f32 0.0, %v3209
        %3211 = vmatmul.bf16.gmra.mxu0 %v3095
        %v3212 = vpop.f32.mrf.mxu0
        %v3213 = vadd.f32 0.0, %v3212
        %v3214 = vpop.f32.mrf.mxu0
        %v3215 = vadd.f32 0.0, %v3214
        %3216 = vmatmul.bf16.gmra.mxu0 %v3096
        %v3217 = vpop.f32.mrf.mxu0
        %v3218 = vadd.f32 0.0, %v3217
        %v3219 = vpop.f32.mrf.mxu0
        %v3220 = vadd.f32 0.0, %v3219
        %3221 = vmatmul.bf16.gmra.mxu0 %v3097
        %v3222 = vpop.f32.mrf.mxu0
        %v3223 = vadd.f32 0.0, %v3222
        %v3224 = vpop.f32.mrf.mxu0
        %v3225 = vadd.f32 0.0, %v3224
        %3226 = vmatmul.bf16.gmra.mxu0 %v3098
        %v3227 = vpop.f32.mrf.mxu0
        %v3228 = vadd.f32 0.0, %v3227
        %v3229 = vpop.f32.mrf.mxu0
        %v3230 = vadd.f32 0.0, %v3229
        %3231 = vmatmul.bf16.gmra.mxu0 %v3099
        %v3232 = vpop.f32.mrf.mxu0
        %v3233 = vadd.f32 0.0, %v3232
        %v3234 = vpop.f32.mrf.mxu0
        %v3235 = vadd.f32 0.0, %v3234
        %3236 = vmatmul.bf16.gmra.mxu0 %v3100
        %v3237 = vpop.f32.mrf.mxu0
        %v3238 = vadd.f32 0.0, %v3237
        %v3239 = vpop.f32.mrf.mxu0
        %v3240 = vadd.f32 0.0, %v3239
        %3241 = vmatmul.bf16.gmra.mxu0 %v3101
        %v3242 = vpop.f32.mrf.mxu0
        %v3243 = vadd.f32 0.0, %v3242
        %v3244 = vpop.f32.mrf.mxu0
        %v3245 = vadd.f32 0.0, %v3244
        %3246 = vmatmul.bf16.gmra.mxu0 %v3102
        %v3247 = vpop.f32.mrf.mxu0
        %v3248 = vadd.f32 0.0, %v3247
        %v3249 = vpop.f32.mrf.mxu0
        %v3250 = vadd.f32 0.0, %v3249
        %3251 = vmatmul.bf16.gmra.mxu0 %v3103
        %v3252 = vpop.f32.mrf.mxu0
        %v3253 = vadd.f32 0.0, %v3252
        %v3254 = vpop.f32.mrf.mxu0
        %v3255 = vadd.f32 0.0, %v3254
        %3256 = vdwg.mxu0
        %v3257 = vadd.f32 %v2977, %v3178
        %v3258 = vadd.f32 %v2979, %v3180
        %v3259 = vadd.f32 %v2982, %v3183
        %v3260 = vadd.f32 %v2984, %v3185
        %v3261 = vadd.f32 %v2987, %v3188
        %v3262 = vadd.f32 %v2989, %v3190
        %v3263 = vadd.f32 %v2992, %v3193
        %v3264 = vadd.f32 %v2994, %v3195
        %v3265 = vadd.f32 %v2997, %v3198
        %v3266 = vadd.f32 %v2999, %v3200
        %v3267 = vadd.f32 %v3002, %v3203
        %v3268 = vadd.f32 %v3004, %v3205
        %v3269 = vadd.f32 %v3007, %v3208
        %v3270 = vadd.f32 %v3009, %v3210
        %v3271 = vadd.f32 %v3012, %v3213
        %v3272 = vadd.f32 %v3014, %v3215
        %v3273 = vadd.f32 %v3017, %v3218
        %v3274 = vadd.f32 %v3019, %v3220
        %v3275 = vadd.f32 %v3022, %v3223
        %v3276 = vadd.f32 %v3024, %v3225
        %v3277 = vadd.f32 %v3027, %v3228
        %v3278 = vadd.f32 %v3029, %v3230
        %v3279 = vadd.f32 %v3032, %v3233
        %v3280 = vadd.f32 %v3034, %v3235
        %v3281 = vadd.f32 %v3037, %v3238
        %v3282 = vadd.f32 %v3039, %v3240
        %v3283 = vadd.f32 %v3042, %v3243
        %v3284 = vadd.f32 %v3044, %v3245
        %v3285 = vadd.f32 %v3047, %v3248
        %v3286 = vadd.f32 %v3049, %v3250
        %v3287 = vadd.f32 %v3052, %v3253
        %v3288 = vadd.f32 %v3054, %v3255
        %v3289 = vld [vmem:[%s342 + $0x7] sm:$0xff]
        %v3290 = vld [vmem:[%s342 + $0xf] sm:$0xff]
        %v3291 = vld [vmem:[%s342 + $0x27] sm:$0xff]
        %v3292 = vld [vmem:[%s342 + $0x2f] sm:$0xff]
        %v3293 = vld [vmem:[%s342 + $0x47] sm:$0xff]
        %v3294 = vld [vmem:[%s342 + $0x4f] sm:$0xff]
        %v3295 = vld [vmem:[%s342 + $0x67] sm:$0xff]
        %v3296 = vld [vmem:[%s342 + $0x6f] sm:$0xff]
        %v3297 = vld [vmem:[%s342 + $0x87] sm:$0xff]
        %v3298 = vld [vmem:[%s342 + $0x8f] sm:$0xff]
        %v3299 = vld [vmem:[%s342 + $0xa7] sm:$0xff]
        %v3300 = vld [vmem:[%s342 + $0xaf] sm:$0xff]
        %v3301 = vld [vmem:[%s342 + $0xc7] sm:$0xff]
        %v3302 = vld [vmem:[%s342 + $0xcf] sm:$0xff]
        %v3303 = vld [vmem:[%s342 + $0xe7] sm:$0xff]
        %v3304 = vld [vmem:[%s342 + $0xef] sm:$0xff]
        %v3305 = vld [vmem:[%s342 + $0x107] sm:$0xff]
        %v3306 = vld [vmem:[%s342 + $0x10f] sm:$0xff]
        %v3307 = vld [vmem:[%s342 + $0x127] sm:$0xff]
        %v3308 = vld [vmem:[%s342 + $0x12f] sm:$0xff]
        %v3309 = vld [vmem:[%s342 + $0x147] sm:$0xff]
        %v3310 = vld [vmem:[%s342 + $0x14f] sm:$0xff]
        %v3311 = vld [vmem:[%s342 + $0x167] sm:$0xff]
        %v3312 = vld [vmem:[%s342 + $0x16f] sm:$0xff]
        %v3313 = vld [vmem:[%s342 + $0x187] sm:$0xff]
        %v3314 = vld [vmem:[%s342 + $0x18f] sm:$0xff]
        %v3315 = vld [vmem:[%s342 + $0x1a7] sm:$0xff]
        %v3316 = vld [vmem:[%s342 + $0x1af] sm:$0xff]
        %v3317 = vld [vmem:[%s342 + $0x1c7] sm:$0xff]
        %v3318 = vld [vmem:[%s342 + $0x1cf] sm:$0xff]
        %v3319 = vld [vmem:[%s342 + $0x1e7] sm:$0xff]
        %v3320 = vld [vmem:[%s342 + $0x1ef] sm:$0xff]
        %v3321 = vpack.c.bf16 %v3290, %v3289
        %v3322 = vpack.c.bf16 %v3292, %v3291
        %v3323 = vpack.c.bf16 %v3294, %v3293
        %v3324 = vpack.c.bf16 %v3296, %v3295
        %v3325 = vpack.c.bf16 %v3298, %v3297
        %v3326 = vpack.c.bf16 %v3300, %v3299
        %v3327 = vpack.c.bf16 %v3302, %v3301
        %v3328 = vpack.c.bf16 %v3304, %v3303
        %v3329 = vpack.c.bf16 %v3306, %v3305
        %v3330 = vpack.c.bf16 %v3308, %v3307
        %v3331 = vpack.c.bf16 %v3310, %v3309
        %v3332 = vpack.c.bf16 %v3312, %v3311
        %v3333 = vpack.c.bf16 %v3314, %v3313
        %v3334 = vpack.c.bf16 %v3316, %v3315
        %v3335 = vpack.c.bf16 %v3318, %v3317
        %v3336 = vpack.c.bf16 %v3320, %v3319
        %v3337 = vld [vmem:[#allocation5 + $0x300] sm:$0xf]
        %v3338 = vld [vmem:[#allocation5 + $0x304] sm:$0xf]
        %v3339 = vld [vmem:[#allocation5 + $0x308] sm:$0xf]
        %v3340 = vld [vmem:[#allocation5 + $0x30c] sm:$0xf]
        %v3341 = vld [vmem:[#allocation5 + $0x310] sm:$0xf]
        %v3342 = vld [vmem:[#allocation5 + $0x314] sm:$0xf]
        %v3343 = vld [vmem:[#allocation5 + $0x318] sm:$0xf]
        %v3344 = vld [vmem:[#allocation5 + $0x31c] sm:$0xf]
        %v3345 = vld [vmem:[#allocation5 + $0x320] sm:$0xf]
        %v3346 = vld [vmem:[#allocation5 + $0x324] sm:$0xf]
        %v3347 = vld [vmem:[#allocation5 + $0x328] sm:$0xf]
        %v3348 = vld [vmem:[#allocation5 + $0x32c] sm:$0xf]
        %v3349 = vld [vmem:[#allocation5 + $0x330] sm:$0xf]
        %v3350 = vld [vmem:[#allocation5 + $0x334] sm:$0xf]
        %v3351 = vld [vmem:[#allocation5 + $0x338] sm:$0xf]
        %v3352 = vld [vmem:[#allocation5 + $0x33c] sm:$0xf]
        %v3369 = vunpack.c.l.b16 %v3337
        %v3370 = vunpack.c.l.b16 %v3338
        %v3371 = vunpack.c.l.b16 %v3339
        %v3372 = vunpack.c.l.b16 %v3340
        %v3373 = vunpack.c.l.b16 %v3341
        %v3374 = vunpack.c.l.b16 %v3342
        %v3375 = vunpack.c.l.b16 %v3343
        %v3376 = vunpack.c.l.b16 %v3344
        %v3377 = vunpack.c.l.b16 %v3345
        %v3378 = vunpack.c.l.b16 %v3346
        %v3379 = vunpack.c.l.b16 %v3347
        %v3380 = vunpack.c.l.b16 %v3348
        %v3381 = vunpack.c.l.b16 %v3349
        %v3382 = vunpack.c.l.b16 %v3350
        %v3383 = vunpack.c.l.b16 %v3351
        %v3384 = vunpack.c.l.b16 %v3352
        %v3385 = vpack.c.b16 %v3370, %v3369
        %v3386 = vpack.c.b16 %v3372, %v3371
        %v3387 = vpack.c.b16 %v3374, %v3373
        %v3388 = vpack.c.b16 %v3376, %v3375
        %v3389 = vpack.c.b16 %v3378, %v3377
        %v3390 = vpack.c.b16 %v3380, %v3379
        %v3391 = vpack.c.b16 %v3382, %v3381
        %v3392 = vpack.c.b16 %v3384, %v3383
        %3401 = vmatpush.bf16.msra.mxu0 %v3392
        %3402 = vmatpush.bf16.msra.mxu0 %v3391
        %3403 = vmatpush.bf16.msra.mxu0 %v3390
        %3404 = vmatpush.bf16.msra.mxu0 %v3389
        %3405 = vmatpush.bf16.msra.mxu0 %v3388
        %3406 = vmatpush.bf16.msra.mxu0 %v3387
        %3407 = vmatpush.bf16.msra.mxu0 %v3386
        %3408 = vmatpush.bf16.msra.mxu0 %v3385
        %3409 = vmatmul.bf16.gmra.mxu0 %v3321
        %v3410 = vpop.f32.mrf.mxu0
        %v3411 = vadd.f32 0.0, %v3410
        %v3412 = vpop.f32.mrf.mxu0
        %v3413 = vadd.f32 0.0, %v3412
        %3414 = vmatmul.bf16.gmra.mxu0 %v3322
        %v3415 = vpop.f32.mrf.mxu0
        %v3416 = vadd.f32 0.0, %v3415
        %v3417 = vpop.f32.mrf.mxu0
        %v3418 = vadd.f32 0.0, %v3417
        %3419 = vmatmul.bf16.gmra.mxu0 %v3323
        %v3420 = vpop.f32.mrf.mxu0
        %v3421 = vadd.f32 0.0, %v3420
        %v3422 = vpop.f32.mrf.mxu0
        %v3423 = vadd.f32 0.0, %v3422
        %3424 = vmatmul.bf16.gmra.mxu0 %v3324
        %v3425 = vpop.f32.mrf.mxu0
        %v3426 = vadd.f32 0.0, %v3425
        %v3427 = vpop.f32.mrf.mxu0
        %v3428 = vadd.f32 0.0, %v3427
        %3429 = vmatmul.bf16.gmra.mxu0 %v3325
        %v3430 = vpop.f32.mrf.mxu0
        %v3431 = vadd.f32 0.0, %v3430
        %v3432 = vpop.f32.mrf.mxu0
        %v3433 = vadd.f32 0.0, %v3432
        %3434 = vmatmul.bf16.gmra.mxu0 %v3326
        %v3435 = vpop.f32.mrf.mxu0
        %v3436 = vadd.f32 0.0, %v3435
        %v3437 = vpop.f32.mrf.mxu0
        %v3438 = vadd.f32 0.0, %v3437
        %3439 = vmatmul.bf16.gmra.mxu0 %v3327
        %v3440 = vpop.f32.mrf.mxu0
        %v3441 = vadd.f32 0.0, %v3440
        %v3442 = vpop.f32.mrf.mxu0
        %v3443 = vadd.f32 0.0, %v3442
        %3444 = vmatmul.bf16.gmra.mxu0 %v3328
        %v3445 = vpop.f32.mrf.mxu0
        %v3446 = vadd.f32 0.0, %v3445
        %v3447 = vpop.f32.mrf.mxu0
        %v3448 = vadd.f32 0.0, %v3447
        %3449 = vmatmul.bf16.gmra.mxu0 %v3329
        %v3450 = vpop.f32.mrf.mxu0
        %v3451 = vadd.f32 0.0, %v3450
        %v3452 = vpop.f32.mrf.mxu0
        %v3453 = vadd.f32 0.0, %v3452
        %3454 = vmatmul.bf16.gmra.mxu0 %v3330
        %v3455 = vpop.f32.mrf.mxu0
        %v3456 = vadd.f32 0.0, %v3455
        %v3457 = vpop.f32.mrf.mxu0
        %v3458 = vadd.f32 0.0, %v3457
        %3459 = vmatmul.bf16.gmra.mxu0 %v3331
        %v3460 = vpop.f32.mrf.mxu0
        %v3461 = vadd.f32 0.0, %v3460
        %v3462 = vpop.f32.mrf.mxu0
        %v3463 = vadd.f32 0.0, %v3462
        %3464 = vmatmul.bf16.gmra.mxu0 %v3332
        %v3465 = vpop.f32.mrf.mxu0
        %v3466 = vadd.f32 0.0, %v3465
        %v3467 = vpop.f32.mrf.mxu0
        %v3468 = vadd.f32 0.0, %v3467
        %3469 = vmatmul.bf16.gmra.mxu0 %v3333
        %v3470 = vpop.f32.mrf.mxu0
        %v3471 = vadd.f32 0.0, %v3470
        %v3472 = vpop.f32.mrf.mxu0
        %v3473 = vadd.f32 0.0, %v3472
        %3474 = vmatmul.bf16.gmra.mxu0 %v3334
        %v3475 = vpop.f32.mrf.mxu0
        %v3476 = vadd.f32 0.0, %v3475
        %v3477 = vpop.f32.mrf.mxu0
        %v3478 = vadd.f32 0.0, %v3477
        %3479 = vmatmul.bf16.gmra.mxu0 %v3335
        %v3480 = vpop.f32.mrf.mxu0
        %v3481 = vadd.f32 0.0, %v3480
        %v3482 = vpop.f32.mrf.mxu0
        %v3483 = vadd.f32 0.0, %v3482
        %3484 = vmatmul.bf16.gmra.mxu0 %v3336
        %v3485 = vpop.f32.mrf.mxu0
        %v3486 = vadd.f32 0.0, %v3485
        %v3487 = vpop.f32.mrf.mxu0
        %v3488 = vadd.f32 0.0, %v3487
        %3489 = vdwg.mxu0
        %v3490 = vadd.f32 %v3257, %v3411
        %v3491 = vadd.f32 %v3258, %v3413
        %v3492 = vadd.f32 %v3259, %v3416
        %v3493 = vadd.f32 %v3260, %v3418
        %v3494 = vadd.f32 %v3261, %v3421
        %v3495 = vadd.f32 %v3262, %v3423
        %v3496 = vadd.f32 %v3263, %v3426
        %v3497 = vadd.f32 %v3264, %v3428
        %v3498 = vadd.f32 %v3265, %v3431
        %v3499 = vadd.f32 %v3266, %v3433
        %v3500 = vadd.f32 %v3267, %v3436
        %v3501 = vadd.f32 %v3268, %v3438
        %v3502 = vadd.f32 %v3269, %v3441
        %v3503 = vadd.f32 %v3270, %v3443
        %v3504 = vadd.f32 %v3271, %v3446
        %v3505 = vadd.f32 %v3272, %v3448
        %v3506 = vadd.f32 %v3273, %v3451
        %v3507 = vadd.f32 %v3274, %v3453
        %v3508 = vadd.f32 %v3275, %v3456
        %v3509 = vadd.f32 %v3276, %v3458
        %v3510 = vadd.f32 %v3277, %v3461
        %v3511 = vadd.f32 %v3278, %v3463
        %v3512 = vadd.f32 %v3279, %v3466
        %v3513 = vadd.f32 %v3280, %v3468
        %v3514 = vadd.f32 %v3281, %v3471
        %v3515 = vadd.f32 %v3282, %v3473
        %v3516 = vadd.f32 %v3283, %v3476
        %v3517 = vadd.f32 %v3284, %v3478
        %v3518 = vadd.f32 %v3285, %v3481
        %v3519 = vadd.f32 %v3286, %v3483
        %v3520 = vadd.f32 %v3287, %v3486
        %v3521 = vadd.f32 %v3288, %v3488
        %v3522 = vld [vmem:[%s342 + $0x8] sm:$0xff]
        %v3523 = vld [vmem:[%s342 + $0x10] sm:$0xff]
        %v3524 = vld [vmem:[%s342 + $0x28] sm:$0xff]
        %v3525 = vld [vmem:[%s342 + $0x30] sm:$0xff]
        %v3526 = vld [vmem:[%s342 + $0x48] sm:$0xff]
        %v3527 = vld [vmem:[%s342 + $0x50] sm:$0xff]
        %v3528 = vld [vmem:[%s342 + $0x68] sm:$0xff]
        %v3529 = vld [vmem:[%s342 + $0x70] sm:$0xff]
        %v3530 = vld [vmem:[%s342 + $0x88] sm:$0xff]
        %v3531 = vld [vmem:[%s342 + $0x90] sm:$0xff]
        %v3532 = vld [vmem:[%s342 + $0xa8] sm:$0xff]
        %v3533 = vld [vmem:[%s342 + $0xb0] sm:$0xff]
        %v3534 = vld [vmem:[%s342 + $0xc8] sm:$0xff]
        %v3535 = vld [vmem:[%s342 + $0xd0] sm:$0xff]
        %v3536 = vld [vmem:[%s342 + $0xe8] sm:$0xff]
        %v3537 = vld [vmem:[%s342 + $0xf0] sm:$0xff]
        %v3538 = vld [vmem:[%s342 + $0x108] sm:$0xff]
        %v3539 = vld [vmem:[%s342 + $0x110] sm:$0xff]
        %v3540 = vld [vmem:[%s342 + $0x128] sm:$0xff]
        %v3541 = vld [vmem:[%s342 + $0x130] sm:$0xff]
        %v3542 = vld [vmem:[%s342 + $0x148] sm:$0xff]
        %v3543 = vld [vmem:[%s342 + $0x150] sm:$0xff]
        %v3544 = vld [vmem:[%s342 + $0x168] sm:$0xff]
        %v3545 = vld [vmem:[%s342 + $0x170] sm:$0xff]
        %v3546 = vld [vmem:[%s342 + $0x188] sm:$0xff]
        %v3547 = vld [vmem:[%s342 + $0x190] sm:$0xff]
        %v3548 = vld [vmem:[%s342 + $0x1a8] sm:$0xff]
        %v3549 = vld [vmem:[%s342 + $0x1b0] sm:$0xff]
        %v3550 = vld [vmem:[%s342 + $0x1c8] sm:$0xff]
        %v3551 = vld [vmem:[%s342 + $0x1d0] sm:$0xff]
        %v3552 = vld [vmem:[%s342 + $0x1e8] sm:$0xff]
        %v3553 = vld [vmem:[%s342 + $0x1f0] sm:$0xff]
        %v3554 = vpack.c.bf16 %v3523, %v3522
        %v3555 = vpack.c.bf16 %v3525, %v3524
        %v3556 = vpack.c.bf16 %v3527, %v3526
        %v3557 = vpack.c.bf16 %v3529, %v3528
        %v3558 = vpack.c.bf16 %v3531, %v3530
        %v3559 = vpack.c.bf16 %v3533, %v3532
        %v3560 = vpack.c.bf16 %v3535, %v3534
        %v3561 = vpack.c.bf16 %v3537, %v3536
        %v3562 = vpack.c.bf16 %v3539, %v3538
        %v3563 = vpack.c.bf16 %v3541, %v3540
        %v3564 = vpack.c.bf16 %v3543, %v3542
        %v3565 = vpack.c.bf16 %v3545, %v3544
        %v3566 = vpack.c.bf16 %v3547, %v3546
        %v3567 = vpack.c.bf16 %v3549, %v3548
        %v3568 = vpack.c.bf16 %v3551, %v3550
        %v3569 = vpack.c.bf16 %v3553, %v3552
        %v3570 = vld [vmem:[#allocation5 + $0x340] sm:$0xf]
        %v3571 = vld [vmem:[#allocation5 + $0x344] sm:$0xf]
        %v3572 = vld [vmem:[#allocation5 + $0x348] sm:$0xf]
        %v3573 = vld [vmem:[#allocation5 + $0x34c] sm:$0xf]
        %v3574 = vld [vmem:[#allocation5 + $0x350] sm:$0xf]
        %v3575 = vld [vmem:[#allocation5 + $0x354] sm:$0xf]
        %v3576 = vld [vmem:[#allocation5 + $0x358] sm:$0xf]
        %v3577 = vld [vmem:[#allocation5 + $0x35c] sm:$0xf]
        %v3578 = vld [vmem:[#allocation5 + $0x360] sm:$0xf]
        %v3579 = vld [vmem:[#allocation5 + $0x364] sm:$0xf]
        %v3580 = vld [vmem:[#allocation5 + $0x368] sm:$0xf]
        %v3581 = vld [vmem:[#allocation5 + $0x36c] sm:$0xf]
        %v3582 = vld [vmem:[#allocation5 + $0x370] sm:$0xf]
        %v3583 = vld [vmem:[#allocation5 + $0x374] sm:$0xf]
        %v3584 = vld [vmem:[#allocation5 + $0x378] sm:$0xf]
        %v3585 = vld [vmem:[#allocation5 + $0x37c] sm:$0xf]
        %v3602 = vunpack.c.l.b16 %v3570
        %v3603 = vunpack.c.l.b16 %v3571
        %v3604 = vunpack.c.l.b16 %v3572
        %v3605 = vunpack.c.l.b16 %v3573
        %v3606 = vunpack.c.l.b16 %v3574
        %v3607 = vunpack.c.l.b16 %v3575
        %v3608 = vunpack.c.l.b16 %v3576
        %v3609 = vunpack.c.l.b16 %v3577
        %v3610 = vunpack.c.l.b16 %v3578
        %v3611 = vunpack.c.l.b16 %v3579
        %v3612 = vunpack.c.l.b16 %v3580
        %v3613 = vunpack.c.l.b16 %v3581
        %v3614 = vunpack.c.l.b16 %v3582
        %v3615 = vunpack.c.l.b16 %v3583
        %v3616 = vunpack.c.l.b16 %v3584
        %v3617 = vunpack.c.l.b16 %v3585
        %v3618 = vpack.c.b16 %v3603, %v3602
        %v3619 = vpack.c.b16 %v3605, %v3604
        %v3620 = vpack.c.b16 %v3607, %v3606
        %v3621 = vpack.c.b16 %v3609, %v3608
        %v3622 = vpack.c.b16 %v3611, %v3610
        %v3623 = vpack.c.b16 %v3613, %v3612
        %v3624 = vpack.c.b16 %v3615, %v3614
        %v3625 = vpack.c.b16 %v3617, %v3616
        %3634 = vmatpush.bf16.msra.mxu0 %v3625
        %3635 = vmatpush.bf16.msra.mxu0 %v3624
        %3636 = vmatpush.bf16.msra.mxu0 %v3623
        %3637 = vmatpush.bf16.msra.mxu0 %v3622
        %3638 = vmatpush.bf16.msra.mxu0 %v3621
        %3639 = vmatpush.bf16.msra.mxu0 %v3620
        %3640 = vmatpush.bf16.msra.mxu0 %v3619
        %3641 = vmatpush.bf16.msra.mxu0 %v3618
        %3642 = vmatmul.bf16.gmra.mxu0 %v3554
        %v3643 = vpop.f32.mrf.mxu0
        %v3644 = vadd.f32 0.0, %v3643
        %v3645 = vpop.f32.mrf.mxu0
        %v3646 = vadd.f32 0.0, %v3645
        %3647 = vmatmul.bf16.gmra.mxu0 %v3555
        %v3648 = vpop.f32.mrf.mxu0
        %v3649 = vadd.f32 0.0, %v3648
        %v3650 = vpop.f32.mrf.mxu0
        %v3651 = vadd.f32 0.0, %v3650
        %3652 = vmatmul.bf16.gmra.mxu0 %v3556
        %v3653 = vpop.f32.mrf.mxu0
        %v3654 = vadd.f32 0.0, %v3653
        %v3655 = vpop.f32.mrf.mxu0
        %v3656 = vadd.f32 0.0, %v3655
        %3657 = vmatmul.bf16.gmra.mxu0 %v3557
        %v3658 = vpop.f32.mrf.mxu0
        %v3659 = vadd.f32 0.0, %v3658
        %v3660 = vpop.f32.mrf.mxu0
        %v3661 = vadd.f32 0.0, %v3660
        %3662 = vmatmul.bf16.gmra.mxu0 %v3558
        %v3663 = vpop.f32.mrf.mxu0
        %v3664 = vadd.f32 0.0, %v3663
        %v3665 = vpop.f32.mrf.mxu0
        %v3666 = vadd.f32 0.0, %v3665
        %3667 = vmatmul.bf16.gmra.mxu0 %v3559
        %v3668 = vpop.f32.mrf.mxu0
        %v3669 = vadd.f32 0.0, %v3668
        %v3670 = vpop.f32.mrf.mxu0
        %v3671 = vadd.f32 0.0, %v3670
        %3672 = vmatmul.bf16.gmra.mxu0 %v3560
        %v3673 = vpop.f32.mrf.mxu0
        %v3674 = vadd.f32 0.0, %v3673
        %v3675 = vpop.f32.mrf.mxu0
        %v3676 = vadd.f32 0.0, %v3675
        %3677 = vmatmul.bf16.gmra.mxu0 %v3561
        %v3678 = vpop.f32.mrf.mxu0
        %v3679 = vadd.f32 0.0, %v3678
        %v3680 = vpop.f32.mrf.mxu0
        %v3681 = vadd.f32 0.0, %v3680
        %3682 = vmatmul.bf16.gmra.mxu0 %v3562
        %v3683 = vpop.f32.mrf.mxu0
        %v3684 = vadd.f32 0.0, %v3683
        %v3685 = vpop.f32.mrf.mxu0
        %v3686 = vadd.f32 0.0, %v3685
        %3687 = vmatmul.bf16.gmra.mxu0 %v3563
        %v3688 = vpop.f32.mrf.mxu0
        %v3689 = vadd.f32 0.0, %v3688
        %v3690 = vpop.f32.mrf.mxu0
        %v3691 = vadd.f32 0.0, %v3690
        %3692 = vmatmul.bf16.gmra.mxu0 %v3564
        %v3693 = vpop.f32.mrf.mxu0
        %v3694 = vadd.f32 0.0, %v3693
        %v3695 = vpop.f32.mrf.mxu0
        %v3696 = vadd.f32 0.0, %v3695
        %3697 = vmatmul.bf16.gmra.mxu0 %v3565
        %v3698 = vpop.f32.mrf.mxu0
        %v3699 = vadd.f32 0.0, %v3698
        %v3700 = vpop.f32.mrf.mxu0
        %v3701 = vadd.f32 0.0, %v3700
        %3702 = vmatmul.bf16.gmra.mxu0 %v3566
        %v3703 = vpop.f32.mrf.mxu0
        %v3704 = vadd.f32 0.0, %v3703
        %v3705 = vpop.f32.mrf.mxu0
        %v3706 = vadd.f32 0.0, %v3705
        %3707 = vmatmul.bf16.gmra.mxu0 %v3567
        %v3708 = vpop.f32.mrf.mxu0
        %v3709 = vadd.f32 0.0, %v3708
        %v3710 = vpop.f32.mrf.mxu0
        %v3711 = vadd.f32 0.0, %v3710
        %3712 = vmatmul.bf16.gmra.mxu0 %v3568
        %v3713 = vpop.f32.mrf.mxu0
        %v3714 = vadd.f32 0.0, %v3713
        %v3715 = vpop.f32.mrf.mxu0
        %v3716 = vadd.f32 0.0, %v3715
        %3717 = vmatmul.bf16.gmra.mxu0 %v3569
        %v3718 = vpop.f32.mrf.mxu0
        %v3719 = vadd.f32 0.0, %v3718
        %v3720 = vpop.f32.mrf.mxu0
        %v3721 = vadd.f32 0.0, %v3720
        %3722 = vdwg.mxu0
        %v3723 = vadd.f32 %v3490, %v3644
        %v3724 = vadd.f32 %v3491, %v3646
        %v3725 = vadd.f32 %v3492, %v3649
        %v3726 = vadd.f32 %v3493, %v3651
        %v3727 = vadd.f32 %v3494, %v3654
        %v3728 = vadd.f32 %v3495, %v3656
        %v3729 = vadd.f32 %v3496, %v3659
        %v3730 = vadd.f32 %v3497, %v3661
        %v3731 = vadd.f32 %v3498, %v3664
        %v3732 = vadd.f32 %v3499, %v3666
        %v3733 = vadd.f32 %v3500, %v3669
        %v3734 = vadd.f32 %v3501, %v3671
        %v3735 = vadd.f32 %v3502, %v3674
        %v3736 = vadd.f32 %v3503, %v3676
        %v3737 = vadd.f32 %v3504, %v3679
        %v3738 = vadd.f32 %v3505, %v3681
        %v3739 = vadd.f32 %v3506, %v3684
        %v3740 = vadd.f32 %v3507, %v3686
        %v3741 = vadd.f32 %v3508, %v3689
        %v3742 = vadd.f32 %v3509, %v3691
        %v3743 = vadd.f32 %v3510, %v3694
        %v3744 = vadd.f32 %v3511, %v3696
        %v3745 = vadd.f32 %v3512, %v3699
        %v3746 = vadd.f32 %v3513, %v3701
        %v3747 = vadd.f32 %v3514, %v3704
        %v3748 = vadd.f32 %v3515, %v3706
        %v3749 = vadd.f32 %v3516, %v3709
        %v3750 = vadd.f32 %v3517, %v3711
        %v3751 = vadd.f32 %v3518, %v3714
        %v3752 = vadd.f32 %v3519, %v3716
        %v3753 = vadd.f32 %v3520, %v3719
        %v3754 = vadd.f32 %v3521, %v3721
        %v3755 = vld [vmem:[%s342 + $0x9] sm:$0xff]
        %v3756 = vld [vmem:[%s342 + $0x11] sm:$0xff]
        %v3757 = vld [vmem:[%s342 + $0x29] sm:$0xff]
        %v3758 = vld [vmem:[%s342 + $0x31] sm:$0xff]
        %v3759 = vld [vmem:[%s342 + $0x49] sm:$0xff]
        %v3760 = vld [vmem:[%s342 + $0x51] sm:$0xff]
        %v3761 = vld [vmem:[%s342 + $0x69] sm:$0xff]
        %v3762 = vld [vmem:[%s342 + $0x71] sm:$0xff]
        %v3763 = vld [vmem:[%s342 + $0x89] sm:$0xff]
        %v3764 = vld [vmem:[%s342 + $0x91] sm:$0xff]
        %v3765 = vld [vmem:[%s342 + $0xa9] sm:$0xff]
        %v3766 = vld [vmem:[%s342 + $0xb1] sm:$0xff]
        %v3767 = vld [vmem:[%s342 + $0xc9] sm:$0xff]
        %v3768 = vld [vmem:[%s342 + $0xd1] sm:$0xff]
        %v3769 = vld [vmem:[%s342 + $0xe9] sm:$0xff]
        %v3770 = vld [vmem:[%s342 + $0xf1] sm:$0xff]
        %v3771 = vld [vmem:[%s342 + $0x109] sm:$0xff]
        %v3772 = vld [vmem:[%s342 + $0x111] sm:$0xff]
        %v3773 = vld [vmem:[%s342 + $0x129] sm:$0xff]
        %v3774 = vld [vmem:[%s342 + $0x131] sm:$0xff]
        %v3775 = vld [vmem:[%s342 + $0x149] sm:$0xff]
        %v3776 = vld [vmem:[%s342 + $0x151] sm:$0xff]
        %v3777 = vld [vmem:[%s342 + $0x169] sm:$0xff]
        %v3778 = vld [vmem:[%s342 + $0x171] sm:$0xff]
        %v3779 = vld [vmem:[%s342 + $0x189] sm:$0xff]
        %v3780 = vld [vmem:[%s342 + $0x191] sm:$0xff]
        %v3781 = vld [vmem:[%s342 + $0x1a9] sm:$0xff]
        %v3782 = vld [vmem:[%s342 + $0x1b1] sm:$0xff]
        %v3783 = vld [vmem:[%s342 + $0x1c9] sm:$0xff]
        %v3784 = vld [vmem:[%s342 + $0x1d1] sm:$0xff]
        %v3785 = vld [vmem:[%s342 + $0x1e9] sm:$0xff]
        %v3786 = vld [vmem:[%s342 + $0x1f1] sm:$0xff]
        %v3787 = vpack.c.bf16 %v3756, %v3755
        %v3788 = vpack.c.bf16 %v3758, %v3757
        %v3789 = vpack.c.bf16 %v3760, %v3759
        %v3790 = vpack.c.bf16 %v3762, %v3761
        %v3791 = vpack.c.bf16 %v3764, %v3763
        %v3792 = vpack.c.bf16 %v3766, %v3765
        %v3793 = vpack.c.bf16 %v3768, %v3767
        %v3794 = vpack.c.bf16 %v3770, %v3769
        %v3795 = vpack.c.bf16 %v3772, %v3771
        %v3796 = vpack.c.bf16 %v3774, %v3773
        %v3797 = vpack.c.bf16 %v3776, %v3775
        %v3798 = vpack.c.bf16 %v3778, %v3777
        %v3799 = vpack.c.bf16 %v3780, %v3779
        %v3800 = vpack.c.bf16 %v3782, %v3781
        %v3801 = vpack.c.bf16 %v3784, %v3783
        %v3802 = vpack.c.bf16 %v3786, %v3785
        %v3803 = vld [vmem:[#allocation5 + $0x380] sm:$0xf]
        %v3804 = vld [vmem:[#allocation5 + $0x384] sm:$0xf]
        %v3805 = vld [vmem:[#allocation5 + $0x388] sm:$0xf]
        %v3806 = vld [vmem:[#allocation5 + $0x38c] sm:$0xf]
        %v3807 = vld [vmem:[#allocation5 + $0x390] sm:$0xf]
        %v3808 = vld [vmem:[#allocation5 + $0x394] sm:$0xf]
        %v3809 = vld [vmem:[#allocation5 + $0x398] sm:$0xf]
        %v3810 = vld [vmem:[#allocation5 + $0x39c] sm:$0xf]
        %v3811 = vld [vmem:[#allocation5 + $0x3a0] sm:$0xf]
        %v3812 = vld [vmem:[#allocation5 + $0x3a4] sm:$0xf]
        %v3813 = vld [vmem:[#allocation5 + $0x3a8] sm:$0xf]
        %v3814 = vld [vmem:[#allocation5 + $0x3ac] sm:$0xf]
        %v3815 = vld [vmem:[#allocation5 + $0x3b0] sm:$0xf]
        %v3816 = vld [vmem:[#allocation5 + $0x3b4] sm:$0xf]
        %v3817 = vld [vmem:[#allocation5 + $0x3b8] sm:$0xf]
        %v3818 = vld [vmem:[#allocation5 + $0x3bc] sm:$0xf]
        %v3835 = vunpack.c.l.b16 %v3803
        %v3836 = vunpack.c.l.b16 %v3804
        %v3837 = vunpack.c.l.b16 %v3805
        %v3838 = vunpack.c.l.b16 %v3806
        %v3839 = vunpack.c.l.b16 %v3807
        %v3840 = vunpack.c.l.b16 %v3808
        %v3841 = vunpack.c.l.b16 %v3809
        %v3842 = vunpack.c.l.b16 %v3810
        %v3843 = vunpack.c.l.b16 %v3811
        %v3844 = vunpack.c.l.b16 %v3812
        %v3845 = vunpack.c.l.b16 %v3813
        %v3846 = vunpack.c.l.b16 %v3814
        %v3847 = vunpack.c.l.b16 %v3815
        %v3848 = vunpack.c.l.b16 %v3816
        %v3849 = vunpack.c.l.b16 %v3817
        %v3850 = vunpack.c.l.b16 %v3818
        %v3851 = vpack.c.b16 %v3836, %v3835
        %v3852 = vpack.c.b16 %v3838, %v3837
        %v3853 = vpack.c.b16 %v3840, %v3839
        %v3854 = vpack.c.b16 %v3842, %v3841
        %v3855 = vpack.c.b16 %v3844, %v3843
        %v3856 = vpack.c.b16 %v3846, %v3845
        %v3857 = vpack.c.b16 %v3848, %v3847
        %v3858 = vpack.c.b16 %v3850, %v3849
        %3867 = vmatpush.bf16.msra.mxu0 %v3858
        %3868 = vmatpush.bf16.msra.mxu0 %v3857
        %3869 = vmatpush.bf16.msra.mxu0 %v3856
        %3870 = vmatpush.bf16.msra.mxu0 %v3855
        %3871 = vmatpush.bf16.msra.mxu0 %v3854
        %3872 = vmatpush.bf16.msra.mxu0 %v3853
        %3873 = vmatpush.bf16.msra.mxu0 %v3852
        %3874 = vmatpush.bf16.msra.mxu0 %v3851
        %3875 = vmatmul.bf16.gmra.mxu0 %v3787
        %v3876 = vpop.f32.mrf.mxu0
        %v3877 = vadd.f32 0.0, %v3876
        %v3878 = vpop.f32.mrf.mxu0
        %v3879 = vadd.f32 0.0, %v3878
        %3880 = vmatmul.bf16.gmra.mxu0 %v3788
        %v3881 = vpop.f32.mrf.mxu0
        %v3882 = vadd.f32 0.0, %v3881
        %v3883 = vpop.f32.mrf.mxu0
        %v3884 = vadd.f32 0.0, %v3883
        %3885 = vmatmul.bf16.gmra.mxu0 %v3789
        %v3886 = vpop.f32.mrf.mxu0
        %v3887 = vadd.f32 0.0, %v3886
        %v3888 = vpop.f32.mrf.mxu0
        %v3889 = vadd.f32 0.0, %v3888
        %3890 = vmatmul.bf16.gmra.mxu0 %v3790
        %v3891 = vpop.f32.mrf.mxu0
        %v3892 = vadd.f32 0.0, %v3891
        %v3893 = vpop.f32.mrf.mxu0
        %v3894 = vadd.f32 0.0, %v3893
        %3895 = vmatmul.bf16.gmra.mxu0 %v3791
        %v3896 = vpop.f32.mrf.mxu0
        %v3897 = vadd.f32 0.0, %v3896
        %v3898 = vpop.f32.mrf.mxu0
        %v3899 = vadd.f32 0.0, %v3898
        %3900 = vmatmul.bf16.gmra.mxu0 %v3792
        %v3901 = vpop.f32.mrf.mxu0
        %v3902 = vadd.f32 0.0, %v3901
        %v3903 = vpop.f32.mrf.mxu0
        %v3904 = vadd.f32 0.0, %v3903
        %3905 = vmatmul.bf16.gmra.mxu0 %v3793
        %v3906 = vpop.f32.mrf.mxu0
        %v3907 = vadd.f32 0.0, %v3906
        %v3908 = vpop.f32.mrf.mxu0
        %v3909 = vadd.f32 0.0, %v3908
        %3910 = vmatmul.bf16.gmra.mxu0 %v3794
        %v3911 = vpop.f32.mrf.mxu0
        %v3912 = vadd.f32 0.0, %v3911
        %v3913 = vpop.f32.mrf.mxu0
        %v3914 = vadd.f32 0.0, %v3913
        %3915 = vmatmul.bf16.gmra.mxu0 %v3795
        %v3916 = vpop.f32.mrf.mxu0
        %v3917 = vadd.f32 0.0, %v3916
        %v3918 = vpop.f32.mrf.mxu0
        %v3919 = vadd.f32 0.0, %v3918
        %3920 = vmatmul.bf16.gmra.mxu0 %v3796
        %v3921 = vpop.f32.mrf.mxu0
        %v3922 = vadd.f32 0.0, %v3921
        %v3923 = vpop.f32.mrf.mxu0
        %v3924 = vadd.f32 0.0, %v3923
        %3925 = vmatmul.bf16.gmra.mxu0 %v3797
        %v3926 = vpop.f32.mrf.mxu0
        %v3927 = vadd.f32 0.0, %v3926
        %v3928 = vpop.f32.mrf.mxu0
        %v3929 = vadd.f32 0.0, %v3928
        %3930 = vmatmul.bf16.gmra.mxu0 %v3798
        %v3931 = vpop.f32.mrf.mxu0
        %v3932 = vadd.f32 0.0, %v3931
        %v3933 = vpop.f32.mrf.mxu0
        %v3934 = vadd.f32 0.0, %v3933
        %3935 = vmatmul.bf16.gmra.mxu0 %v3799
        %v3936 = vpop.f32.mrf.mxu0
        %v3937 = vadd.f32 0.0, %v3936
        %v3938 = vpop.f32.mrf.mxu0
        %v3939 = vadd.f32 0.0, %v3938
        %3940 = vmatmul.bf16.gmra.mxu0 %v3800
        %v3941 = vpop.f32.mrf.mxu0
        %v3942 = vadd.f32 0.0, %v3941
        %v3943 = vpop.f32.mrf.mxu0
        %v3944 = vadd.f32 0.0, %v3943
        %3945 = vmatmul.bf16.gmra.mxu0 %v3801
        %v3946 = vpop.f32.mrf.mxu0
        %v3947 = vadd.f32 0.0, %v3946
        %v3948 = vpop.f32.mrf.mxu0
        %v3949 = vadd.f32 0.0, %v3948
        %3950 = vmatmul.bf16.gmra.mxu0 %v3802
        %v3951 = vpop.f32.mrf.mxu0
        %v3952 = vadd.f32 0.0, %v3951
        %v3953 = vpop.f32.mrf.mxu0
        %v3954 = vadd.f32 0.0, %v3953
        %3955 = vdwg.mxu0
        %v3956 = vadd.f32 %v3723, %v3877
        %v3957 = vadd.f32 %v3724, %v3879
        %v3958 = vadd.f32 %v3725, %v3882
        %v3959 = vadd.f32 %v3726, %v3884
        %v3960 = vadd.f32 %v3727, %v3887
        %v3961 = vadd.f32 %v3728, %v3889
        %v3962 = vadd.f32 %v3729, %v3892
        %v3963 = vadd.f32 %v3730, %v3894
        %v3964 = vadd.f32 %v3731, %v3897
        %v3965 = vadd.f32 %v3732, %v3899
        %v3966 = vadd.f32 %v3733, %v3902
        %v3967 = vadd.f32 %v3734, %v3904
        %v3968 = vadd.f32 %v3735, %v3907
        %v3969 = vadd.f32 %v3736, %v3909
        %v3970 = vadd.f32 %v3737, %v3912
        %v3971 = vadd.f32 %v3738, %v3914
        %v3972 = vadd.f32 %v3739, %v3917
        %v3973 = vadd.f32 %v3740, %v3919
        %v3974 = vadd.f32 %v3741, %v3922
        %v3975 = vadd.f32 %v3742, %v3924
        %v3976 = vadd.f32 %v3743, %v3927
        %v3977 = vadd.f32 %v3744, %v3929
        %v3978 = vadd.f32 %v3745, %v3932
        %v3979 = vadd.f32 %v3746, %v3934
        %v3980 = vadd.f32 %v3747, %v3937
        %v3981 = vadd.f32 %v3748, %v3939
        %v3982 = vadd.f32 %v3749, %v3942
        %v3983 = vadd.f32 %v3750, %v3944
        %v3984 = vadd.f32 %v3751, %v3947
        %v3985 = vadd.f32 %v3752, %v3949
        %v3986 = vadd.f32 %v3753, %v3952
        %v3987 = vadd.f32 %v3754, %v3954
        %v3988 = vld [vmem:[%s1806 + $0x7] sm:$0xff]
        %v3989 = vld [vmem:[%s1806 + $0xf] sm:$0xff]
        %v3990 = vld [vmem:[%s1806 + $0x27] sm:$0xff]
        %v3991 = vld [vmem:[%s1806 + $0x2f] sm:$0xff]
        %v3992 = vld [vmem:[%s1806 + $0x47] sm:$0xff]
        %v3993 = vld [vmem:[%s1806 + $0x4f] sm:$0xff]
        %v3994 = vld [vmem:[%s1806 + $0x67] sm:$0xff]
        %v3995 = vld [vmem:[%s1806 + $0x6f] sm:$0xff]
        %v3996 = vld [vmem:[%s1806 + $0x87] sm:$0xff]
        %v3997 = vld [vmem:[%s1806 + $0x8f] sm:$0xff]
        %v3998 = vld [vmem:[%s1806 + $0xa7] sm:$0xff]
        %v3999 = vld [vmem:[%s1806 + $0xaf] sm:$0xff]
        %v4000 = vld [vmem:[%s1806 + $0xc7] sm:$0xff]
        %v4001 = vld [vmem:[%s1806 + $0xcf] sm:$0xff]
        %v4002 = vld [vmem:[%s1806 + $0xe7] sm:$0xff]
        %v4003 = vld [vmem:[%s1806 + $0xef] sm:$0xff]
        %v4004 = vld [vmem:[%s1806 + $0x107] sm:$0xff]
        %v4005 = vld [vmem:[%s1806 + $0x10f] sm:$0xff]
        %v4006 = vld [vmem:[%s1806 + $0x127] sm:$0xff]
        %v4007 = vld [vmem:[%s1806 + $0x12f] sm:$0xff]
        %v4008 = vld [vmem:[%s1806 + $0x147] sm:$0xff]
        %v4009 = vld [vmem:[%s1806 + $0x14f] sm:$0xff]
        %v4010 = vld [vmem:[%s1806 + $0x167] sm:$0xff]
        %v4011 = vld [vmem:[%s1806 + $0x16f] sm:$0xff]
        %v4012 = vld [vmem:[%s1806 + $0x187] sm:$0xff]
        %v4013 = vld [vmem:[%s1806 + $0x18f] sm:$0xff]
        %v4014 = vld [vmem:[%s1806 + $0x1a7] sm:$0xff]
        %v4015 = vld [vmem:[%s1806 + $0x1af] sm:$0xff]
        %v4016 = vld [vmem:[%s1806 + $0x1c7] sm:$0xff]
        %v4017 = vld [vmem:[%s1806 + $0x1cf] sm:$0xff]
        %v4018 = vld [vmem:[%s1806 + $0x1e7] sm:$0xff]
        %v4019 = vld [vmem:[%s1806 + $0x1ef] sm:$0xff]
        %v4020 = vpack.c.bf16 %v3989, %v3988
        %v4021 = vpack.c.bf16 %v3991, %v3990
        %v4022 = vpack.c.bf16 %v3993, %v3992
        %v4023 = vpack.c.bf16 %v3995, %v3994
        %v4024 = vpack.c.bf16 %v3997, %v3996
        %v4025 = vpack.c.bf16 %v3999, %v3998
        %v4026 = vpack.c.bf16 %v4001, %v4000
        %v4027 = vpack.c.bf16 %v4003, %v4002
        %v4028 = vpack.c.bf16 %v4005, %v4004
        %v4029 = vpack.c.bf16 %v4007, %v4006
        %v4030 = vpack.c.bf16 %v4009, %v4008
        %v4031 = vpack.c.bf16 %v4011, %v4010
        %v4032 = vpack.c.bf16 %v4013, %v4012
        %v4033 = vpack.c.bf16 %v4015, %v4014
        %v4034 = vpack.c.bf16 %v4017, %v4016
        %v4035 = vpack.c.bf16 %v4019, %v4018
        %v4036 = vld [vmem:[#allocation5 + $0x3c0] sm:$0xf]
        %v4037 = vld [vmem:[#allocation5 + $0x3c4] sm:$0xf]
        %v4038 = vld [vmem:[#allocation5 + $0x3c8] sm:$0xf]
        %v4039 = vld [vmem:[#allocation5 + $0x3cc] sm:$0xf]
        %v4040 = vld [vmem:[#allocation5 + $0x3d0] sm:$0xf]
        %v4041 = vld [vmem:[#allocation5 + $0x3d4] sm:$0xf]
        %v4042 = vld [vmem:[#allocation5 + $0x3d8] sm:$0xf]
        %v4043 = vld [vmem:[#allocation5 + $0x3dc] sm:$0xf]
        %v4044 = vld [vmem:[#allocation5 + $0x3e0] sm:$0xf]
        %v4045 = vld [vmem:[#allocation5 + $0x3e4] sm:$0xf]
        %v4046 = vld [vmem:[#allocation5 + $0x3e8] sm:$0xf]
        %v4047 = vld [vmem:[#allocation5 + $0x3ec] sm:$0xf]
        %v4048 = vld [vmem:[#allocation5 + $0x3f0] sm:$0xf]
        %v4049 = vld [vmem:[#allocation5 + $0x3f4] sm:$0xf]
        %v4050 = vld [vmem:[#allocation5 + $0x3f8] sm:$0xf]
        %v4051 = vld [vmem:[#allocation5 + $0x3fc] sm:$0xf]
        %v4068 = vunpack.c.l.b16 %v4036
        %v4069 = vunpack.c.l.b16 %v4037
        %v4070 = vunpack.c.l.b16 %v4038
        %v4071 = vunpack.c.l.b16 %v4039
        %v4072 = vunpack.c.l.b16 %v4040
        %v4073 = vunpack.c.l.b16 %v4041
        %v4074 = vunpack.c.l.b16 %v4042
        %v4075 = vunpack.c.l.b16 %v4043
        %v4076 = vunpack.c.l.b16 %v4044
        %v4077 = vunpack.c.l.b16 %v4045
        %v4078 = vunpack.c.l.b16 %v4046
        %v4079 = vunpack.c.l.b16 %v4047
        %v4080 = vunpack.c.l.b16 %v4048
        %v4081 = vunpack.c.l.b16 %v4049
        %v4082 = vunpack.c.l.b16 %v4050
        %v4083 = vunpack.c.l.b16 %v4051
        %v4084 = vpack.c.b16 %v4069, %v4068
        %v4085 = vpack.c.b16 %v4071, %v4070
        %v4086 = vpack.c.b16 %v4073, %v4072
        %v4087 = vpack.c.b16 %v4075, %v4074
        %v4088 = vpack.c.b16 %v4077, %v4076
        %v4089 = vpack.c.b16 %v4079, %v4078
        %v4090 = vpack.c.b16 %v4081, %v4080
        %v4091 = vpack.c.b16 %v4083, %v4082
        %4100 = vmatpush.bf16.msra.mxu0 %v4091
        %4101 = vmatpush.bf16.msra.mxu0 %v4090
        %4102 = vmatpush.bf16.msra.mxu0 %v4089
        %4103 = vmatpush.bf16.msra.mxu0 %v4088
        %4104 = vmatpush.bf16.msra.mxu0 %v4087
        %4105 = vmatpush.bf16.msra.mxu0 %v4086
        %4106 = vmatpush.bf16.msra.mxu0 %v4085
        %4107 = vmatpush.bf16.msra.mxu0 %v4084
        %4108 = vmatmul.bf16.gmra.mxu0 %v4020
        %v4109 = vpop.f32.mrf.mxu0
        %v4110 = vadd.f32 0.0, %v4109
        %v4111 = vpop.f32.mrf.mxu0
        %v4112 = vadd.f32 0.0, %v4111
        %4113 = vmatmul.bf16.gmra.mxu0 %v4021
        %v4114 = vpop.f32.mrf.mxu0
        %v4115 = vadd.f32 0.0, %v4114
        %v4116 = vpop.f32.mrf.mxu0
        %v4117 = vadd.f32 0.0, %v4116
        %4118 = vmatmul.bf16.gmra.mxu0 %v4022
        %v4119 = vpop.f32.mrf.mxu0
        %v4120 = vadd.f32 0.0, %v4119
        %v4121 = vpop.f32.mrf.mxu0
        %v4122 = vadd.f32 0.0, %v4121
        %4123 = vmatmul.bf16.gmra.mxu0 %v4023
        %v4124 = vpop.f32.mrf.mxu0
        %v4125 = vadd.f32 0.0, %v4124
        %v4126 = vpop.f32.mrf.mxu0
        %v4127 = vadd.f32 0.0, %v4126
        %4128 = vmatmul.bf16.gmra.mxu0 %v4024
        %v4129 = vpop.f32.mrf.mxu0
        %v4130 = vadd.f32 0.0, %v4129
        %v4131 = vpop.f32.mrf.mxu0
        %v4132 = vadd.f32 0.0, %v4131
        %4133 = vmatmul.bf16.gmra.mxu0 %v4025
        %v4134 = vpop.f32.mrf.mxu0
        %v4135 = vadd.f32 0.0, %v4134
        %v4136 = vpop.f32.mrf.mxu0
        %v4137 = vadd.f32 0.0, %v4136
        %4138 = vmatmul.bf16.gmra.mxu0 %v4026
        %v4139 = vpop.f32.mrf.mxu0
        %v4140 = vadd.f32 0.0, %v4139
        %v4141 = vpop.f32.mrf.mxu0
        %v4142 = vadd.f32 0.0, %v4141
        %4143 = vmatmul.bf16.gmra.mxu0 %v4027
        %v4144 = vpop.f32.mrf.mxu0
        %v4145 = vadd.f32 0.0, %v4144
        %v4146 = vpop.f32.mrf.mxu0
        %v4147 = vadd.f32 0.0, %v4146
        %4148 = vmatmul.bf16.gmra.mxu0 %v4028
        %v4149 = vpop.f32.mrf.mxu0
        %v4150 = vadd.f32 0.0, %v4149
        %v4151 = vpop.f32.mrf.mxu0
        %v4152 = vadd.f32 0.0, %v4151
        %4153 = vmatmul.bf16.gmra.mxu0 %v4029
        %v4154 = vpop.f32.mrf.mxu0
        %v4155 = vadd.f32 0.0, %v4154
        %v4156 = vpop.f32.mrf.mxu0
        %v4157 = vadd.f32 0.0, %v4156
        %4158 = vmatmul.bf16.gmra.mxu0 %v4030
        %v4159 = vpop.f32.mrf.mxu0
        %v4160 = vadd.f32 0.0, %v4159
        %v4161 = vpop.f32.mrf.mxu0
        %v4162 = vadd.f32 0.0, %v4161
        %4163 = vmatmul.bf16.gmra.mxu0 %v4031
        %v4164 = vpop.f32.mrf.mxu0
        %v4165 = vadd.f32 0.0, %v4164
        %v4166 = vpop.f32.mrf.mxu0
        %v4167 = vadd.f32 0.0, %v4166
        %4168 = vmatmul.bf16.gmra.mxu0 %v4032
        %v4169 = vpop.f32.mrf.mxu0
        %v4170 = vadd.f32 0.0, %v4169
        %v4171 = vpop.f32.mrf.mxu0
        %v4172 = vadd.f32 0.0, %v4171
        %4173 = vmatmul.bf16.gmra.mxu0 %v4033
        %v4174 = vpop.f32.mrf.mxu0
        %v4175 = vadd.f32 0.0, %v4174
        %v4176 = vpop.f32.mrf.mxu0
        %v4177 = vadd.f32 0.0, %v4176
        %4178 = vmatmul.bf16.gmra.mxu0 %v4034
        %v4179 = vpop.f32.mrf.mxu0
        %v4180 = vadd.f32 0.0, %v4179
        %v4181 = vpop.f32.mrf.mxu0
        %v4182 = vadd.f32 0.0, %v4181
        %4183 = vmatmul.bf16.gmra.mxu0 %v4035
        %v4184 = vpop.f32.mrf.mxu0
        %v4185 = vadd.f32 0.0, %v4184
        %v4186 = vpop.f32.mrf.mxu0
        %v4187 = vadd.f32 0.0, %v4186
        %4188 = vdwg.mxu0
        %v4189 = vadd.f32 %v3956, %v4110
        %v4190 = vadd.f32 %v3957, %v4112
        %v4191 = vadd.f32 %v3958, %v4115
        %v4192 = vadd.f32 %v3959, %v4117
        %v4193 = vadd.f32 %v3960, %v4120
        %v4194 = vadd.f32 %v3961, %v4122
        %v4195 = vadd.f32 %v3962, %v4125
        %v4196 = vadd.f32 %v3963, %v4127
        %v4197 = vadd.f32 %v3964, %v4130
        %v4198 = vadd.f32 %v3965, %v4132
        %v4199 = vadd.f32 %v3966, %v4135
        %v4200 = vadd.f32 %v3967, %v4137
        %v4201 = vadd.f32 %v3968, %v4140
        %v4202 = vadd.f32 %v3969, %v4142
        %v4203 = vadd.f32 %v3970, %v4145
        %v4204 = vadd.f32 %v3971, %v4147
        %v4205 = vadd.f32 %v3972, %v4150
        %v4206 = vadd.f32 %v3973, %v4152
        %v4207 = vadd.f32 %v3974, %v4155
        %v4208 = vadd.f32 %v3975, %v4157
        %v4209 = vadd.f32 %v3976, %v4160
        %v4210 = vadd.f32 %v3977, %v4162
        %v4211 = vadd.f32 %v3978, %v4165
        %v4212 = vadd.f32 %v3979, %v4167
        %v4213 = vadd.f32 %v3980, %v4170
        %v4214 = vadd.f32 %v3981, %v4172
        %v4215 = vadd.f32 %v3982, %v4175
        %v4216 = vadd.f32 %v3983, %v4177
        %v4217 = vadd.f32 %v3984, %v4180
        %v4218 = vadd.f32 %v3985, %v4182
        %v4219 = vadd.f32 %v3986, %v4185
        %v4220 = vadd.f32 %v3987, %v4187
        %v4221 = vld [vmem:[%s1806 + $0x8] sm:$0xff]
        %v4222 = vld [vmem:[%s1806 + $0x10] sm:$0xff]
        %v4223 = vld [vmem:[%s1806 + $0x28] sm:$0xff]
        %v4224 = vld [vmem:[%s1806 + $0x30] sm:$0xff]
        %v4225 = vld [vmem:[%s1806 + $0x48] sm:$0xff]
        %v4226 = vld [vmem:[%s1806 + $0x50] sm:$0xff]
        %v4227 = vld [vmem:[%s1806 + $0x68] sm:$0xff]
        %v4228 = vld [vmem:[%s1806 + $0x70] sm:$0xff]
        %v4229 = vld [vmem:[%s1806 + $0x88] sm:$0xff]
        %v4230 = vld [vmem:[%s1806 + $0x90] sm:$0xff]
        %v4231 = vld [vmem:[%s1806 + $0xa8] sm:$0xff]
        %v4232 = vld [vmem:[%s1806 + $0xb0] sm:$0xff]
        %v4233 = vld [vmem:[%s1806 + $0xc8] sm:$0xff]
        %v4234 = vld [vmem:[%s1806 + $0xd0] sm:$0xff]
        %v4235 = vld [vmem:[%s1806 + $0xe8] sm:$0xff]
        %v4236 = vld [vmem:[%s1806 + $0xf0] sm:$0xff]
        %v4237 = vld [vmem:[%s1806 + $0x108] sm:$0xff]
        %v4238 = vld [vmem:[%s1806 + $0x110] sm:$0xff]
        %v4239 = vld [vmem:[%s1806 + $0x128] sm:$0xff]
        %v4240 = vld [vmem:[%s1806 + $0x130] sm:$0xff]
        %v4241 = vld [vmem:[%s1806 + $0x148] sm:$0xff]
        %v4242 = vld [vmem:[%s1806 + $0x150] sm:$0xff]
        %v4243 = vld [vmem:[%s1806 + $0x168] sm:$0xff]
        %v4244 = vld [vmem:[%s1806 + $0x170] sm:$0xff]
        %v4245 = vld [vmem:[%s1806 + $0x188] sm:$0xff]
        %v4246 = vld [vmem:[%s1806 + $0x190] sm:$0xff]
        %v4247 = vld [vmem:[%s1806 + $0x1a8] sm:$0xff]
        %v4248 = vld [vmem:[%s1806 + $0x1b0] sm:$0xff]
        %v4249 = vld [vmem:[%s1806 + $0x1c8] sm:$0xff]
        %v4250 = vld [vmem:[%s1806 + $0x1d0] sm:$0xff]
        %v4251 = vld [vmem:[%s1806 + $0x1e8] sm:$0xff]
        %v4252 = vld [vmem:[%s1806 + $0x1f0] sm:$0xff]
        %v4253 = vpack.c.bf16 %v4222, %v4221
        %v4254 = vpack.c.bf16 %v4224, %v4223
        %v4255 = vpack.c.bf16 %v4226, %v4225
        %v4256 = vpack.c.bf16 %v4228, %v4227
        %v4257 = vpack.c.bf16 %v4230, %v4229
        %v4258 = vpack.c.bf16 %v4232, %v4231
        %v4259 = vpack.c.bf16 %v4234, %v4233
        %v4260 = vpack.c.bf16 %v4236, %v4235
        %v4261 = vpack.c.bf16 %v4238, %v4237
        %v4262 = vpack.c.bf16 %v4240, %v4239
        %v4263 = vpack.c.bf16 %v4242, %v4241
        %v4264 = vpack.c.bf16 %v4244, %v4243
        %v4265 = vpack.c.bf16 %v4246, %v4245
        %v4266 = vpack.c.bf16 %v4248, %v4247
        %v4267 = vpack.c.bf16 %v4250, %v4249
        %v4268 = vpack.c.bf16 %v4252, %v4251
        %v4269 = vld [vmem:[#allocation5 + $0x400] sm:$0xf]
        %v4270 = vld [vmem:[#allocation5 + $0x404] sm:$0xf]
        %v4271 = vld [vmem:[#allocation5 + $0x408] sm:$0xf]
        %v4272 = vld [vmem:[#allocation5 + $0x40c] sm:$0xf]
        %v4273 = vld [vmem:[#allocation5 + $0x410] sm:$0xf]
        %v4274 = vld [vmem:[#allocation5 + $0x414] sm:$0xf]
        %v4275 = vld [vmem:[#allocation5 + $0x418] sm:$0xf]
        %v4276 = vld [vmem:[#allocation5 + $0x41c] sm:$0xf]
        %v4277 = vld [vmem:[#allocation5 + $0x420] sm:$0xf]
        %v4278 = vld [vmem:[#allocation5 + $0x424] sm:$0xf]
        %v4279 = vld [vmem:[#allocation5 + $0x428] sm:$0xf]
        %v4280 = vld [vmem:[#allocation5 + $0x42c] sm:$0xf]
        %v4281 = vld [vmem:[#allocation5 + $0x430] sm:$0xf]
        %v4282 = vld [vmem:[#allocation5 + $0x434] sm:$0xf]
        %v4283 = vld [vmem:[#allocation5 + $0x438] sm:$0xf]
        %v4284 = vld [vmem:[#allocation5 + $0x43c] sm:$0xf]
        %v4301 = vunpack.c.l.b16 %v4269
        %v4302 = vunpack.c.l.b16 %v4270
        %v4303 = vunpack.c.l.b16 %v4271
        %v4304 = vunpack.c.l.b16 %v4272
        %v4305 = vunpack.c.l.b16 %v4273
        %v4306 = vunpack.c.l.b16 %v4274
        %v4307 = vunpack.c.l.b16 %v4275
        %v4308 = vunpack.c.l.b16 %v4276
        %v4309 = vunpack.c.l.b16 %v4277
        %v4310 = vunpack.c.l.b16 %v4278
        %v4311 = vunpack.c.l.b16 %v4279
        %v4312 = vunpack.c.l.b16 %v4280
        %v4313 = vunpack.c.l.b16 %v4281
        %v4314 = vunpack.c.l.b16 %v4282
        %v4315 = vunpack.c.l.b16 %v4283
        %v4316 = vunpack.c.l.b16 %v4284
        %v4317 = vpack.c.b16 %v4302, %v4301
        %v4318 = vpack.c.b16 %v4304, %v4303
        %v4319 = vpack.c.b16 %v4306, %v4305
        %v4320 = vpack.c.b16 %v4308, %v4307
        %v4321 = vpack.c.b16 %v4310, %v4309
        %v4322 = vpack.c.b16 %v4312, %v4311
        %v4323 = vpack.c.b16 %v4314, %v4313
        %v4324 = vpack.c.b16 %v4316, %v4315
        %4333 = vmatpush.bf16.msra.mxu0 %v4324
        %4334 = vmatpush.bf16.msra.mxu0 %v4323
        %4335 = vmatpush.bf16.msra.mxu0 %v4322
        %4336 = vmatpush.bf16.msra.mxu0 %v4321
        %4337 = vmatpush.bf16.msra.mxu0 %v4320
        %4338 = vmatpush.bf16.msra.mxu0 %v4319
        %4339 = vmatpush.bf16.msra.mxu0 %v4318
        %4340 = vmatpush.bf16.msra.mxu0 %v4317
        %4341 = vmatmul.bf16.gmra.mxu0 %v4253
        %v4342 = vpop.f32.mrf.mxu0
        %v4343 = vadd.f32 0.0, %v4342
        %v4344 = vpop.f32.mrf.mxu0
        %v4345 = vadd.f32 0.0, %v4344
        %4346 = vmatmul.bf16.gmra.mxu0 %v4254
        %v4347 = vpop.f32.mrf.mxu0
        %v4348 = vadd.f32 0.0, %v4347
        %v4349 = vpop.f32.mrf.mxu0
        %v4350 = vadd.f32 0.0, %v4349
        %4351 = vmatmul.bf16.gmra.mxu0 %v4255
        %v4352 = vpop.f32.mrf.mxu0
        %v4353 = vadd.f32 0.0, %v4352
        %v4354 = vpop.f32.mrf.mxu0
        %v4355 = vadd.f32 0.0, %v4354
        %4356 = vmatmul.bf16.gmra.mxu0 %v4256
        %v4357 = vpop.f32.mrf.mxu0
        %v4358 = vadd.f32 0.0, %v4357
        %v4359 = vpop.f32.mrf.mxu0
        %v4360 = vadd.f32 0.0, %v4359
        %4361 = vmatmul.bf16.gmra.mxu0 %v4257
        %v4362 = vpop.f32.mrf.mxu0
        %v4363 = vadd.f32 0.0, %v4362
        %v4364 = vpop.f32.mrf.mxu0
        %v4365 = vadd.f32 0.0, %v4364
        %4366 = vmatmul.bf16.gmra.mxu0 %v4258
        %v4367 = vpop.f32.mrf.mxu0
        %v4368 = vadd.f32 0.0, %v4367
        %v4369 = vpop.f32.mrf.mxu0
        %v4370 = vadd.f32 0.0, %v4369
        %4371 = vmatmul.bf16.gmra.mxu0 %v4259
        %v4372 = vpop.f32.mrf.mxu0
        %v4373 = vadd.f32 0.0, %v4372
        %v4374 = vpop.f32.mrf.mxu0
        %v4375 = vadd.f32 0.0, %v4374
        %4376 = vmatmul.bf16.gmra.mxu0 %v4260
        %v4377 = vpop.f32.mrf.mxu0
        %v4378 = vadd.f32 0.0, %v4377
        %v4379 = vpop.f32.mrf.mxu0
        %v4380 = vadd.f32 0.0, %v4379
        %4381 = vmatmul.bf16.gmra.mxu0 %v4261
        %v4382 = vpop.f32.mrf.mxu0
        %v4383 = vadd.f32 0.0, %v4382
        %v4384 = vpop.f32.mrf.mxu0
        %v4385 = vadd.f32 0.0, %v4384
        %4386 = vmatmul.bf16.gmra.mxu0 %v4262
        %v4387 = vpop.f32.mrf.mxu0
        %v4388 = vadd.f32 0.0, %v4387
        %v4389 = vpop.f32.mrf.mxu0
        %v4390 = vadd.f32 0.0, %v4389
        %4391 = vmatmul.bf16.gmra.mxu0 %v4263
        %v4392 = vpop.f32.mrf.mxu0
        %v4393 = vadd.f32 0.0, %v4392
        %v4394 = vpop.f32.mrf.mxu0
        %v4395 = vadd.f32 0.0, %v4394
        %4396 = vmatmul.bf16.gmra.mxu0 %v4264
        %v4397 = vpop.f32.mrf.mxu0
        %v4398 = vadd.f32 0.0, %v4397
        %v4399 = vpop.f32.mrf.mxu0
        %v4400 = vadd.f32 0.0, %v4399
        %4401 = vmatmul.bf16.gmra.mxu0 %v4265
        %v4402 = vpop.f32.mrf.mxu0
        %v4403 = vadd.f32 0.0, %v4402
        %v4404 = vpop.f32.mrf.mxu0
        %v4405 = vadd.f32 0.0, %v4404
        %4406 = vmatmul.bf16.gmra.mxu0 %v4266
        %v4407 = vpop.f32.mrf.mxu0
        %v4408 = vadd.f32 0.0, %v4407
        %v4409 = vpop.f32.mrf.mxu0
        %v4410 = vadd.f32 0.0, %v4409
        %4411 = vmatmul.bf16.gmra.mxu0 %v4267
        %v4412 = vpop.f32.mrf.mxu0
        %v4413 = vadd.f32 0.0, %v4412
        %v4414 = vpop.f32.mrf.mxu0
        %v4415 = vadd.f32 0.0, %v4414
        %4416 = vmatmul.bf16.gmra.mxu0 %v4268
        %v4417 = vpop.f32.mrf.mxu0
        %v4418 = vadd.f32 0.0, %v4417
        %v4419 = vpop.f32.mrf.mxu0
        %v4420 = vadd.f32 0.0, %v4419
        %4421 = vdwg.mxu0
        %v4422 = vadd.f32 %v4189, %v4343
        %v4423 = vadd.f32 %v4190, %v4345
        %v4424 = vadd.f32 %v4191, %v4348
        %v4425 = vadd.f32 %v4192, %v4350
        %v4426 = vadd.f32 %v4193, %v4353
        %v4427 = vadd.f32 %v4194, %v4355
        %v4428 = vadd.f32 %v4195, %v4358
        %v4429 = vadd.f32 %v4196, %v4360
        %v4430 = vadd.f32 %v4197, %v4363
        %v4431 = vadd.f32 %v4198, %v4365
        %v4432 = vadd.f32 %v4199, %v4368
        %v4433 = vadd.f32 %v4200, %v4370
        %v4434 = vadd.f32 %v4201, %v4373
        %v4435 = vadd.f32 %v4202, %v4375
        %v4436 = vadd.f32 %v4203, %v4378
        %v4437 = vadd.f32 %v4204, %v4380
        %v4438 = vadd.f32 %v4205, %v4383
        %v4439 = vadd.f32 %v4206, %v4385
        %v4440 = vadd.f32 %v4207, %v4388
        %v4441 = vadd.f32 %v4208, %v4390
        %v4442 = vadd.f32 %v4209, %v4393
        %v4443 = vadd.f32 %v4210, %v4395
        %v4444 = vadd.f32 %v4211, %v4398
        %v4445 = vadd.f32 %v4212, %v4400
        %v4446 = vadd.f32 %v4213, %v4403
        %v4447 = vadd.f32 %v4214, %v4405
        %v4448 = vadd.f32 %v4215, %v4408
        %v4449 = vadd.f32 %v4216, %v4410
        %v4450 = vadd.f32 %v4217, %v4413
        %v4451 = vadd.f32 %v4218, %v4415
        %v4452 = vadd.f32 %v4219, %v4418
        %v4453 = vadd.f32 %v4220, %v4420
        %v4454 = vld [vmem:[%s1806 + $0x9] sm:$0xff]
        %v4455 = vld [vmem:[%s1806 + $0x11] sm:$0xff]
        %v4456 = vld [vmem:[%s1806 + $0x29] sm:$0xff]
        %v4457 = vld [vmem:[%s1806 + $0x31] sm:$0xff]
        %v4458 = vld [vmem:[%s1806 + $0x49] sm:$0xff]
        %v4459 = vld [vmem:[%s1806 + $0x51] sm:$0xff]
        %v4460 = vld [vmem:[%s1806 + $0x69] sm:$0xff]
        %v4461 = vld [vmem:[%s1806 + $0x71] sm:$0xff]
        %v4462 = vld [vmem:[%s1806 + $0x89] sm:$0xff]
        %v4463 = vld [vmem:[%s1806 + $0x91] sm:$0xff]
        %v4464 = vld [vmem:[%s1806 + $0xa9] sm:$0xff]
        %v4465 = vld [vmem:[%s1806 + $0xb1] sm:$0xff]
        %v4466 = vld [vmem:[%s1806 + $0xc9] sm:$0xff]
        %v4467 = vld [vmem:[%s1806 + $0xd1] sm:$0xff]
        %v4468 = vld [vmem:[%s1806 + $0xe9] sm:$0xff]
        %v4469 = vld [vmem:[%s1806 + $0xf1] sm:$0xff]
        %v4470 = vld [vmem:[%s1806 + $0x109] sm:$0xff]
        %v4471 = vld [vmem:[%s1806 + $0x111] sm:$0xff]
        %v4472 = vld [vmem:[%s1806 + $0x129] sm:$0xff]
        %v4473 = vld [vmem:[%s1806 + $0x131] sm:$0xff]
        %v4474 = vld [vmem:[%s1806 + $0x149] sm:$0xff]
        %v4475 = vld [vmem:[%s1806 + $0x151] sm:$0xff]
        %v4476 = vld [vmem:[%s1806 + $0x169] sm:$0xff]
        %v4477 = vld [vmem:[%s1806 + $0x171] sm:$0xff]
        %v4478 = vld [vmem:[%s1806 + $0x189] sm:$0xff]
        %v4479 = vld [vmem:[%s1806 + $0x191] sm:$0xff]
        %v4480 = vld [vmem:[%s1806 + $0x1a9] sm:$0xff]
        %v4481 = vld [vmem:[%s1806 + $0x1b1] sm:$0xff]
        %v4482 = vld [vmem:[%s1806 + $0x1c9] sm:$0xff]
        %v4483 = vld [vmem:[%s1806 + $0x1d1] sm:$0xff]
        %v4484 = vld [vmem:[%s1806 + $0x1e9] sm:$0xff]
        %v4485 = vld [vmem:[%s1806 + $0x1f1] sm:$0xff]
        %v4486 = vpack.c.bf16 %v4455, %v4454
        %v4487 = vpack.c.bf16 %v4457, %v4456
        %v4488 = vpack.c.bf16 %v4459, %v4458
        %v4489 = vpack.c.bf16 %v4461, %v4460
        %v4490 = vpack.c.bf16 %v4463, %v4462
        %v4491 = vpack.c.bf16 %v4465, %v4464
        %v4492 = vpack.c.bf16 %v4467, %v4466
        %v4493 = vpack.c.bf16 %v4469, %v4468
        %v4494 = vpack.c.bf16 %v4471, %v4470
        %v4495 = vpack.c.bf16 %v4473, %v4472
        %v4496 = vpack.c.bf16 %v4475, %v4474
        %v4497 = vpack.c.bf16 %v4477, %v4476
        %v4498 = vpack.c.bf16 %v4479, %v4478
        %v4499 = vpack.c.bf16 %v4481, %v4480
        %v4500 = vpack.c.bf16 %v4483, %v4482
        %v4501 = vpack.c.bf16 %v4485, %v4484
        %v4502 = vld [vmem:[#allocation5 + $0x440] sm:$0xf]
        %v4503 = vld [vmem:[#allocation5 + $0x444] sm:$0xf]
        %v4504 = vld [vmem:[#allocation5 + $0x448] sm:$0xf]
        %v4505 = vld [vmem:[#allocation5 + $0x44c] sm:$0xf]
        %v4506 = vld [vmem:[#allocation5 + $0x450] sm:$0xf]
        %v4507 = vld [vmem:[#allocation5 + $0x454] sm:$0xf]
        %v4508 = vld [vmem:[#allocation5 + $0x458] sm:$0xf]
        %v4509 = vld [vmem:[#allocation5 + $0x45c] sm:$0xf]
        %v4510 = vld [vmem:[#allocation5 + $0x460] sm:$0xf]
        %v4511 = vld [vmem:[#allocation5 + $0x464] sm:$0xf]
        %v4512 = vld [vmem:[#allocation5 + $0x468] sm:$0xf]
        %v4513 = vld [vmem:[#allocation5 + $0x46c] sm:$0xf]
        %v4514 = vld [vmem:[#allocation5 + $0x470] sm:$0xf]
        %v4515 = vld [vmem:[#allocation5 + $0x474] sm:$0xf]
        %v4516 = vld [vmem:[#allocation5 + $0x478] sm:$0xf]
        %v4517 = vld [vmem:[#allocation5 + $0x47c] sm:$0xf]
        %v4534 = vunpack.c.l.b16 %v4502
        %v4535 = vunpack.c.l.b16 %v4503
        %v4536 = vunpack.c.l.b16 %v4504
        %v4537 = vunpack.c.l.b16 %v4505
        %v4538 = vunpack.c.l.b16 %v4506
        %v4539 = vunpack.c.l.b16 %v4507
        %v4540 = vunpack.c.l.b16 %v4508
        %v4541 = vunpack.c.l.b16 %v4509
        %v4542 = vunpack.c.l.b16 %v4510
        %v4543 = vunpack.c.l.b16 %v4511
        %v4544 = vunpack.c.l.b16 %v4512
        %v4545 = vunpack.c.l.b16 %v4513
        %v4546 = vunpack.c.l.b16 %v4514
        %v4547 = vunpack.c.l.b16 %v4515
        %v4548 = vunpack.c.l.b16 %v4516
        %v4549 = vunpack.c.l.b16 %v4517
        %v4550 = vpack.c.b16 %v4535, %v4534
        %v4551 = vpack.c.b16 %v4537, %v4536
        %v4552 = vpack.c.b16 %v4539, %v4538
        %v4553 = vpack.c.b16 %v4541, %v4540
        %v4554 = vpack.c.b16 %v4543, %v4542
        %v4555 = vpack.c.b16 %v4545, %v4544
        %v4556 = vpack.c.b16 %v4547, %v4546
        %v4557 = vpack.c.b16 %v4549, %v4548
        %4566 = vmatpush.bf16.msra.mxu0 %v4557
        %4567 = vmatpush.bf16.msra.mxu0 %v4556
        %4568 = vmatpush.bf16.msra.mxu0 %v4555
        %4569 = vmatpush.bf16.msra.mxu0 %v4554
        %4570 = vmatpush.bf16.msra.mxu0 %v4553
        %4571 = vmatpush.bf16.msra.mxu0 %v4552
        %4572 = vmatpush.bf16.msra.mxu0 %v4551
        %4573 = vmatpush.bf16.msra.mxu0 %v4550
        %4574 = vmatmul.bf16.gmra.mxu0 %v4486
        %v4575 = vpop.f32.mrf.mxu0
        %v4576 = vadd.f32 0.0, %v4575
        %v4577 = vpop.f32.mrf.mxu0
        %v4578 = vadd.f32 0.0, %v4577
        %4579 = vmatmul.bf16.gmra.mxu0 %v4487
        %v4580 = vpop.f32.mrf.mxu0
        %v4581 = vadd.f32 0.0, %v4580
        %v4582 = vpop.f32.mrf.mxu0
        %v4583 = vadd.f32 0.0, %v4582
        %4584 = vmatmul.bf16.gmra.mxu0 %v4488
        %v4585 = vpop.f32.mrf.mxu0
        %v4586 = vadd.f32 0.0, %v4585
        %v4587 = vpop.f32.mrf.mxu0
        %v4588 = vadd.f32 0.0, %v4587
        %4589 = vmatmul.bf16.gmra.mxu0 %v4489
        %v4590 = vpop.f32.mrf.mxu0
        %v4591 = vadd.f32 0.0, %v4590
        %v4592 = vpop.f32.mrf.mxu0
        %v4593 = vadd.f32 0.0, %v4592
        %4594 = vmatmul.bf16.gmra.mxu0 %v4490
        %v4595 = vpop.f32.mrf.mxu0
        %v4596 = vadd.f32 0.0, %v4595
        %v4597 = vpop.f32.mrf.mxu0
        %v4598 = vadd.f32 0.0, %v4597
        %4599 = vmatmul.bf16.gmra.mxu0 %v4491
        %v4600 = vpop.f32.mrf.mxu0
        %v4601 = vadd.f32 0.0, %v4600
        %v4602 = vpop.f32.mrf.mxu0
        %v4603 = vadd.f32 0.0, %v4602
        %4604 = vmatmul.bf16.gmra.mxu0 %v4492
        %v4605 = vpop.f32.mrf.mxu0
        %v4606 = vadd.f32 0.0, %v4605
        %v4607 = vpop.f32.mrf.mxu0
        %v4608 = vadd.f32 0.0, %v4607
        %4609 = vmatmul.bf16.gmra.mxu0 %v4493
        %v4610 = vpop.f32.mrf.mxu0
        %v4611 = vadd.f32 0.0, %v4610
        %v4612 = vpop.f32.mrf.mxu0
        %v4613 = vadd.f32 0.0, %v4612
        %4614 = vmatmul.bf16.gmra.mxu0 %v4494
        %v4615 = vpop.f32.mrf.mxu0
        %v4616 = vadd.f32 0.0, %v4615
        %v4617 = vpop.f32.mrf.mxu0
        %v4618 = vadd.f32 0.0, %v4617
        %4619 = vmatmul.bf16.gmra.mxu0 %v4495
        %v4620 = vpop.f32.mrf.mxu0
        %v4621 = vadd.f32 0.0, %v4620
        %v4622 = vpop.f32.mrf.mxu0
        %v4623 = vadd.f32 0.0, %v4622
        %4624 = vmatmul.bf16.gmra.mxu0 %v4496
        %v4625 = vpop.f32.mrf.mxu0
        %v4626 = vadd.f32 0.0, %v4625
        %v4627 = vpop.f32.mrf.mxu0
        %v4628 = vadd.f32 0.0, %v4627
        %4629 = vmatmul.bf16.gmra.mxu0 %v4497
        %v4630 = vpop.f32.mrf.mxu0
        %v4631 = vadd.f32 0.0, %v4630
        %v4632 = vpop.f32.mrf.mxu0
        %v4633 = vadd.f32 0.0, %v4632
        %4634 = vmatmul.bf16.gmra.mxu0 %v4498
        %v4635 = vpop.f32.mrf.mxu0
        %v4636 = vadd.f32 0.0, %v4635
        %v4637 = vpop.f32.mrf.mxu0
        %v4638 = vadd.f32 0.0, %v4637
        %4639 = vmatmul.bf16.gmra.mxu0 %v4499
        %v4640 = vpop.f32.mrf.mxu0
        %v4641 = vadd.f32 0.0, %v4640
        %v4642 = vpop.f32.mrf.mxu0
        %v4643 = vadd.f32 0.0, %v4642
        %4644 = vmatmul.bf16.gmra.mxu0 %v4500
        %v4645 = vpop.f32.mrf.mxu0
        %v4646 = vadd.f32 0.0, %v4645
        %v4647 = vpop.f32.mrf.mxu0
        %v4648 = vadd.f32 0.0, %v4647
        %4649 = vmatmul.bf16.gmra.mxu0 %v4501
        %v4650 = vpop.f32.mrf.mxu0
        %v4651 = vadd.f32 0.0, %v4650
        %v4652 = vpop.f32.mrf.mxu0
        %v4653 = vadd.f32 0.0, %v4652
        %4654 = vdwg.mxu0
        %v4655 = vadd.f32 %v4422, %v4576
        %v4656 = vadd.f32 %v4423, %v4578
        %v4657 = vadd.f32 %v4424, %v4581
        %v4658 = vadd.f32 %v4425, %v4583
        %v4659 = vadd.f32 %v4426, %v4586
        %v4660 = vadd.f32 %v4427, %v4588
        %v4661 = vadd.f32 %v4428, %v4591
        %v4662 = vadd.f32 %v4429, %v4593
        %v4663 = vadd.f32 %v4430, %v4596
        %v4664 = vadd.f32 %v4431, %v4598
        %v4665 = vadd.f32 %v4432, %v4601
        %v4666 = vadd.f32 %v4433, %v4603
        %v4667 = vadd.f32 %v4434, %v4606
        %v4668 = vadd.f32 %v4435, %v4608
        %v4669 = vadd.f32 %v4436, %v4611
        %v4670 = vadd.f32 %v4437, %v4613
        %v4671 = vadd.f32 %v4438, %v4616
        %v4672 = vadd.f32 %v4439, %v4618
        %v4673 = vadd.f32 %v4440, %v4621
        %v4674 = vadd.f32 %v4441, %v4623
        %v4675 = vadd.f32 %v4442, %v4626
        %v4676 = vadd.f32 %v4443, %v4628
        %v4677 = vadd.f32 %v4444, %v4631
        %v4678 = vadd.f32 %v4445, %v4633
        %v4679 = vadd.f32 %v4446, %v4636
        %v4680 = vadd.f32 %v4447, %v4638
        %v4681 = vadd.f32 %v4448, %v4641
        %v4682 = vadd.f32 %v4449, %v4643
        %v4683 = vadd.f32 %v4450, %v4646
        %v4684 = vadd.f32 %v4451, %v4648
        %v4685 = vadd.f32 %v4452, %v4651
        %v4686 = vadd.f32 %v4453, %v4653
        %s4687 = scalar_lea.vmem %s2, 1
        %v4688 = vld [vmem:[%s4687] sm:$0x1]
        %v4690 = vperm.slane %v4688, 0
        %v4692 = vadd.f32 %v4655, %v4690
        %v4693 = vadd.f32 %v4656, %v4690
        %v4694 = vadd.f32 %v4657, %v4690
        %v4695 = vadd.f32 %v4658, %v4690
        %v4696 = vadd.f32 %v4659, %v4690
        %v4697 = vadd.f32 %v4660, %v4690
        %v4698 = vadd.f32 %v4661, %v4690
        %v4699 = vadd.f32 %v4662, %v4690
        %v4700 = vadd.f32 %v4663, %v4690
        %v4701 = vadd.f32 %v4664, %v4690
        %v4702 = vadd.f32 %v4665, %v4690
        %v4703 = vadd.f32 %v4666, %v4690
        %v4704 = vadd.f32 %v4667, %v4690
        %v4705 = vadd.f32 %v4668, %v4690
        %v4706 = vadd.f32 %v4669, %v4690
        %v4707 = vadd.f32 %v4670, %v4690
        %v4708 = vadd.f32 %v4671, %v4690
        %v4709 = vadd.f32 %v4672, %v4690
        %v4710 = vadd.f32 %v4673, %v4690
        %v4711 = vadd.f32 %v4674, %v4690
        %v4712 = vadd.f32 %v4675, %v4690
        %v4713 = vadd.f32 %v4676, %v4690
        %v4714 = vadd.f32 %v4677, %v4690
        %v4715 = vadd.f32 %v4678, %v4690
        %v4716 = vadd.f32 %v4679, %v4690
        %v4717 = vadd.f32 %v4680, %v4690
        %v4718 = vadd.f32 %v4681, %v4690
        %v4719 = vadd.f32 %v4682, %v4690
        %v4720 = vadd.f32 %v4683, %v4690
        %v4721 = vadd.f32 %v4684, %v4690
        %v4722 = vadd.f32 %v4685, %v4690
        %v4723 = vadd.f32 %v4686, %v4690
        %v4724 = vmax.f32 %v4692, 0.0
        %v4725 = vmax.f32 %v4693, 0.0
        %v4726 = vmax.f32 %v4694, 0.0
        %v4727 = vmax.f32 %v4695, 0.0
        %v4728 = vmax.f32 %v4696, 0.0
        %v4729 = vmax.f32 %v4697, 0.0
        %v4730 = vmax.f32 %v4698, 0.0
        %v4731 = vmax.f32 %v4699, 0.0
        %v4732 = vmax.f32 %v4700, 0.0
        %v4733 = vmax.f32 %v4701, 0.0
        %v4734 = vmax.f32 %v4702, 0.0
        %v4735 = vmax.f32 %v4703, 0.0
        %v4736 = vmax.f32 %v4704, 0.0
        %v4737 = vmax.f32 %v4705, 0.0
        %v4738 = vmax.f32 %v4706, 0.0
        %v4739 = vmax.f32 %v4707, 0.0
        %v4740 = vmax.f32 %v4708, 0.0
        %v4741 = vmax.f32 %v4709, 0.0
        %v4742 = vmax.f32 %v4710, 0.0
        %v4743 = vmax.f32 %v4711, 0.0
        %v4744 = vmax.f32 %v4712, 0.0
        %v4745 = vmax.f32 %v4713, 0.0
        %v4746 = vmax.f32 %v4714, 0.0
        %v4747 = vmax.f32 %v4715, 0.0
        %v4748 = vmax.f32 %v4716, 0.0
        %v4749 = vmax.f32 %v4717, 0.0
        %v4750 = vmax.f32 %v4718, 0.0
        %v4751 = vmax.f32 %v4719, 0.0
        %v4752 = vmax.f32 %v4720, 0.0
        %v4753 = vmax.f32 %v4721, 0.0
        %v4754 = vmax.f32 %v4722, 0.0
        %v4755 = vmax.f32 %v4723, 0.0
        %v4756 = vld [vmem:[%s3] sm:$0xf]
        %v4757 = vld [vmem:[%s3 + $0x4] sm:$0x1]
        %v4758 = vpack.c.bf16 %v4725, %v4724
        %v4759 = vpack.c.bf16 %v4727, %v4726
        %v4760 = vpack.c.bf16 %v4729, %v4728
        %v4761 = vpack.c.bf16 %v4731, %v4730
        %v4762 = vpack.c.bf16 %v4733, %v4732
        %v4763 = vpack.c.bf16 %v4735, %v4734
        %v4764 = vpack.c.bf16 %v4737, %v4736
        %v4765 = vpack.c.bf16 %v4739, %v4738
        %v4766 = vpack.c.bf16 %v4741, %v4740
        %v4767 = vpack.c.bf16 %v4743, %v4742
        %v4768 = vpack.c.bf16 %v4745, %v4744
        %v4769 = vpack.c.bf16 %v4747, %v4746
        %v4770 = vpack.c.bf16 %v4749, %v4748
        %v4771 = vpack.c.bf16 %v4751, %v4750
        %v4772 = vpack.c.bf16 %v4753, %v4752
        %v4773 = vpack.c.bf16 %v4755, %v4754
        %v4774 = vld [vmem:[%s4] sm:$0xff]
        %v4775 = vld [vmem:[%s4 + $0x8] sm:$0x1]
        %4777 = vset.pattern.permute.xlu0 0
        %4778 = vperm.xlu0 %4777, %v4774
        %v4779 = vpop.permute.xlu0 %4778
        %4782 = vset.pattern.permute.xlu0 0
        %4783 = vperm.xlu0 %4782, %v4775
        %v4784 = vpop.permute.xlu0 %4783
        %v4788 = vunpack.c.l.b16 %v4756
        %v4789 = vunpack.c.l.b16 %v4757
        %v4790 = vpack.c.b16 %v4789, %v4788
        %4792 = vmatpush.bf16.xpose.msra.mxu0 %v4765
        %4793 = vmatpush.bf16.xpose.msra.mxu0 %v4764
        %4794 = vmatpush.bf16.xpose.msra.mxu0 %v4763
        %4795 = vmatpush.bf16.xpose.msra.mxu0 %v4762
        %4796 = vmatpush.bf16.xpose.msra.mxu0 %v4761
        %4797 = vmatpush.bf16.xpose.msra.mxu0 %v4760
        %4798 = vmatpush.bf16.xpose.msra.mxu0 %v4759
        %4799 = vmatpush.bf16.xpose.msra.mxu0 %v4758
        %4800 = vmatmul.bf16.gmra.mxu0 %v4790
        %v4801 = vpop.f32.mrf.mxu0
        %v4802 = vadd.f32 %v4779, %v4801
        %v4803 = vpop.f32.mrf.mxu0
        %v4804 = vadd.f32 %v4784, %v4803
        %4805 = vdwg.mxu0
        %4806 = vmatpush.bf16.xpose.msra.mxu0 %v4773
        %4807 = vmatpush.bf16.xpose.msra.mxu0 %v4772
        %4808 = vmatpush.bf16.xpose.msra.mxu0 %v4771
        %4809 = vmatpush.bf16.xpose.msra.mxu0 %v4770
        %4810 = vmatpush.bf16.xpose.msra.mxu0 %v4769
        %4811 = vmatpush.bf16.xpose.msra.mxu0 %v4768
        %4812 = vmatpush.bf16.xpose.msra.mxu0 %v4767
        %4813 = vmatpush.bf16.xpose.msra.mxu0 %v4766
        %4814 = vmatmul.bf16.gmra.mxu0 %v4790
        %v4815 = vpop.f32.mrf.mxu0
        %v4816 = vadd.f32 %v4779, %v4815
        %v4817 = vpop.f32.mrf.mxu0
        %v4818 = vadd.f32 %v4784, %v4817
        %4819 = vdwg.mxu0
        %4820 = vst [vmem:[%s263] sm:$0xff] %v4802
        %4821 = vst [vmem:[%s263 + $0x8] sm:$0xff] %v4816
        %4822 = vst [vmem:[%s263 + $0x10] sm:$0x1] %v4804
        %4823 = vst [vmem:[%s263 + $0x18] sm:$0x1] %v4818
        %p4824 = scmp.lt.s32.totalorder %s20, 1
        %s4825 = scalar_select %p4824, %s20, 1
        %s4826 = smul.addr %s4825, 4
        %s4827 = smul.addr %s4826, 8
        %s4828 = scalar_lea.vmem %s5, %s4827
        // Predicated region
        $region49: #{tpu_custom_call.1} parent=39 // pred_check
          %p4829 = pneg %p148
        $region50: #{tpu_custom_call.1} parent=39 // pred_check_branch
          %4831 = sbr.rel (%p4829) target = $region52
        $region51: #{tpu_custom_call.1} parent=39 // pred_region
          _
        $region52: #{tpu_custom_call.1} parent=39 // pred_fallthru
          _
      $region40: #{tpu_custom_call.1} parent=5 // pred_fallthru
        _
      %p4832 = scmp.le.s32.totalorder 2, %s15
      // Predicated region
      $region53: #{tpu_custom_call.1} parent=5 // pred_check
        %p4833 = pneg %p4832
      $region54: #{tpu_custom_call.1} parent=5 // pred_check_branch
        %4835 = sbr.rel (%p4833) target = $region56
      $region55: #{tpu_custom_call.1} parent=5 // pred_region
        %s4836 = ssub.s32 %s15, 2
        // Predicated region
        $region57: #{tpu_custom_call.1} parent=55 // pred_check
          %p4837 = pneg %p154
        $region58: #{tpu_custom_call.1} parent=55 // pred_check_branch
          %4839 = sbr.rel (%p4837) target = $region60
        $region59: #{tpu_custom_call.1} parent=55 // pred_region
          %p4840 = scmp.lt.s32.totalorder %s21, 1
          %s4841 = scalar_select %p4840, %s21, 1
          %s4842 = smul.addr %s4841, 4
          %s4843 = smul.addr %s4842, 8
          %s4844 = scalar_lea.vmem %s5, %s4843
        $region60: #{tpu_custom_call.1} parent=55 // pred_fallthru
          _
      $region56: #{tpu_custom_call.1} parent=5 // pred_fallthru
        _
    $region6: #{tpu_custom_call.1} parent=1 // loop_footer
      %s19 = sadd.s32 1, %s15
    $region7: #{tpu_custom_call.1} parent=1 // loop_footer_branch
      %14 = sbr.rel target = $region3
    $region8: #{tpu_custom_call.1} parent=1 // loop_exit
      _
    %4845 = vsyncpa [#allocation4], 1
    %s4846 = scalar_lea.sflag [#allocation4], 1
    %4847 = vsyncpa %s4846, 1
    %4848 = vsyncpa [#allocation6], 1

</llo_original>
